<compile_context>
chip_gen: v7x
topology: tpu7x:2x2x1
jax: 0.10.0
libtpu: 0.0.40
codegen_flags: <defaults>
</compile_context>

<pallas_src>
import functools

import jax
import jax.numpy as jnp
from jax.experimental import pallas as pl
from jax.experimental.pallas import tpu as pltpu


def _round_up(x, m):
    return pl.cdiv(x, m) * m


def _mask_pred_kernel(w3_ref, x_ref, att_ref, w1_ref, b1_ref, w2_ref, b2_ref,
                      o_ref, *, g, c_midp, c_clsp, compute_dtype):
    # w3_ref : SMEM (4,) f32              deconv_upscale 2x2 weights, k = kh*2 + kw
    # x_ref  : (g, C_in, HW)  caller dtype  activations, channels on sublanes
    # att_ref: (g, 1, HW)     f32           attention map
    # w1_ref : (4*c_midp, C_in)             conv5_mask, k-major row blocks of c_midp
    # b1_ref : (c_midp, 1)    f32
    # w2_ref : (c_clsp, c_midp)             mask_fcn_logits 1x1 conv (zero padded)
    # b2_ref : (c_clsp, 1)    f32           logits bias + deconv_upscale bias
    # o_ref  : (g, 4*c_clsp, HW)            lane-dense output, k-major row blocks
    w2 = w2_ref[...]
    b1 = b1_ref[...]
    b2 = b2_ref[...]
    for j in range(g):                                   # images in this block
        xj = x_ref[j].astype(compute_dtype)              # (C_in, HW)
        attj = att_ref[j].astype(jnp.float32)            # (1, HW)
        for k in range(4):                               # 2x2 sub-positions
            w1k = w1_ref[k * c_midp:(k + 1) * c_midp, :]           # (c_midp, C_in)
            # Stage 1: conv5_mask for sub-position k (f32 accumulation).
            y = jnp.dot(w1k, xj, preferred_element_type=jnp.float32)
            y = jnp.maximum(y + b1, 0.0)                            # bias + ReLU
            y = y.astype(compute_dtype)
            # Stage 2: 1x1 conv to class logits.
            # TODO(synk): on v5e (MXU-bound) drive the MXU explicitly so the
            # constant w2 RHS is staged once instead of per (j, k) matmul.
            logit = jnp.dot(w2, y, preferred_element_type=jnp.float32) + b2
            logit = logit + attj * w3_ref[k]                        # SMEM scalar
            o_ref[j, k * c_clsp:(k + 1) * c_clsp, :] = logit.astype(o_ref.dtype)


def omp_mask_predictor(x, att_map, params, *, images_per_block=8,
                       compute_dtype=jnp.bfloat16, out_dtype=jnp.bfloat16):
    """x: (N, C_in, H, W) f32, att_map: (N, H, W) f32 -> (N, num_classes, 2H, 2W)."""
    w1, b1, w2, b2, w3, b3 = params
    N, C_in, H, W = x.shape
    C_mid = w1.shape[1]
    C_cls = w2.shape[0]
    HW = H * W

    # Lane padding (multiples of 128) so in-kernel slices and stores are aligned.
    C_midp = _round_up(C_mid, 128)
    C_clsp = _round_up(C_cls, 128)

    # Images per grid step: largest divisor of N that keeps >= 2 grid steps when
    # N >= 2 (so the "parallel" axis shards across both v7x TensorCores) without
    # needing any host-side padding pass over x.
    g = 1
    for d in range(min(images_per_block, max(N // 2, 1)), 0, -1):
        if N % d == 0:
            g = d
            break
    grid = (N // g,)

    # ---- glue: free reshapes only (no relayout pass over x) -------------------
    x3 = x.reshape(N, C_in, HW)
    att3 = att_map.reshape(N, 1, HW).astype(jnp.float32)

    # conv5_mask: (C_in, C_mid, 2, 2) -> (4*C_midp, C_in), k = kh*2 + kw row blocks.
    w1t = jnp.transpose(w1, (2, 3, 1, 0)).reshape(4, C_mid, C_in)
    w1t = jnp.pad(w1t, ((0, 0), (0, C_midp - C_mid), (0, 0)))
    w1t = w1t.reshape(4 * C_midp, C_in).astype(compute_dtype)
    b1p = jnp.pad(b1, (0, C_midp - C_mid)).reshape(C_midp, 1).astype(jnp.float32)

    # mask_fcn_logits 1x1 conv: (C_cls, C_mid, 1, 1) -> (C_clsp, C_midp).
    w2p = jnp.pad(w2[:, :, 0, 0],
                  ((0, C_clsp - C_cls), (0, C_midp - C_mid))).astype(compute_dtype)
    # Fold the deconv_upscale bias into the logits bias.
    b2p = jnp.pad(b2 + b3[0], (0, C_clsp - C_cls)).reshape(C_clsp, 1).astype(jnp.float32)

    # deconv_upscale 2x2 weights -> 4 scalars, prefetched into SMEM.
    w3k = w3.reshape(4).astype(jnp.float32)

    kernel = functools.partial(_mask_pred_kernel, g=g, c_midp=C_midp,
                               c_clsp=C_clsp, compute_dtype=compute_dtype)

    def build(weight_mode):
        def wspec(shape):
            if weight_mode is None:
                return pl.BlockSpec(shape, lambda i, *_: (0, 0))
            return pl.BlockSpec(shape, lambda i, *_: (0, 0),
                                pipeline_mode=weight_mode)
        return pl.pallas_call(
            kernel,
            out_shape=jax.ShapeDtypeStruct((N, 4 * C_clsp, HW), out_dtype),
            grid_spec=pltpu.PrefetchScalarGridSpec(
                num_scalar_prefetch=1,                     # w3 -> SMEM scalars
                grid=grid,
                in_specs=[
                    pl.BlockSpec((g, C_in, HW), lambda i, *_: (i, 0, 0)),
                    pl.BlockSpec((g, 1, HW), lambda i, *_: (i, 0, 0)),
                    wspec((4 * C_midp, C_in)),
                    wspec((C_midp, 1)),
                    wspec((C_clsp, C_midp)),
                    wspec((C_clsp, 1)),
                ],
                out_specs=pl.BlockSpec((g, 4 * C_clsp, HW),
                                       lambda i, *_: (i, 0, 0)),
            ),
            compiler_params=pltpu.CompilerParams(
                dimension_semantics=("parallel",),         # shards across TCs (v7x)
                # 32 MiB is the v7x-safe setting; on v5e/v6e this could be raised
                # to 64-96 MiB to allow a larger images_per_block.
                vmem_limit_bytes=32 * 1024 * 1024,
            ),
        )

    # Prefer single-buffered resident weights; fall back to default buffering if
    # this Pallas build does not support pipeline_mode on pallas_call inputs.
    try:
        out = build(pl.Buffered(1))(w3k, x3, att3, w1t, b1p, w2p, b2p)
    except Exception:  # noqa: BLE001 - lowering feature probe, retry w/ default
        out = build(None)(w3k, x3, att3, w1t, b1p, w2p, b2p)

    # Epilogue (kept in out_dtype): (N, 4*C_clsp, HW) -> NCHW (N, C_cls, 2H, 2W).
    # TODO(synk): consumers that can take the (N, kh, kw, C, H, W) layout directly
    # should skip this interleaving transpose pass entirely.
    out = out.reshape(N, 2, 2, C_clsp, H, W)[:, :, :, :C_cls]
    out = jnp.transpose(out, (0, 3, 4, 1, 5, 2)).reshape(N, C_cls, 2 * H, 2 * W)
    return out


def init_params(key, in_channels, dim_reduced, num_classes):
    """kaiming_normal(fan_out, relu)-style weights, zero biases (as in the module)."""
    k1, k2, k3 = jax.random.split(key, 3)

    def kaiming(k, shape):
        fan_out = shape[0] * shape[2] * shape[3]   # PyTorch fan_out for conv tensors
        std = (2.0 / fan_out) ** 0.5
        return jax.random.normal(k, shape, jnp.float32) * std

    w1 = kaiming(k1, (in_channels, dim_reduced, 2, 2))   # conv5_mask (ConvTranspose2d)
    b1 = jnp.zeros((dim_reduced,), jnp.float32)
    w2 = kaiming(k2, (num_classes, dim_reduced, 1, 1))   # mask_fcn_logits (Conv2d 1x1)
    b2 = jnp.zeros((num_classes,), jnp.float32)
    w3 = kaiming(k3, (1, 1, 2, 2))                       # deconv_upscale (ConvTranspose2d)
    b3 = jnp.zeros((1,), jnp.float32)
    return (w1, b1, w2, b2, w3, b3)


def reference(x, att_map, params):
    """Pure-JAX f32 reference for the same math (NCHW), used only for verification."""
    w1, b1, w2, b2, w3, b3 = params
    N, _, H, W = x.shape
    C_mid = w1.shape[1]
    y = jnp.einsum("nihw,iokl->nohkwl", x, w1).reshape(N, C_mid, 2 * H, 2 * W)
    y = jnp.maximum(y + b1[None, :, None, None], 0.0)
    logits = jnp.einsum("nchw,oc->nohw", y, w2[:, :, 0, 0]) + b2[None, :, None, None]
    a = jnp.einsum("nhw,kl->nhkwl", att_map, w3[0, 0]).reshape(N, 1, 2 * H, 2 * W) + b3[0]
    return logits + a


if __name__ == "__main__":
    # Small synthetic config: in_channels=32, dim_reduced=16, num_classes=8,
    # N=2, 16x16 ROI features -> 2 grid steps (one image each).
    N, C_in, H, W = 2, 32, 16, 16
    dim_reduced, num_classes = 16, 8

    key = jax.random.PRNGKey(0)
    kx, ka, kp = jax.random.split(key, 3)
    x = jax.random.normal(kx, (N, C_in, H, W), jnp.float32)
    att_map = jax.random.normal(ka, (N, H, W), jnp.float32)
    params = init_params(kp, C_in, dim_reduced, num_classes)

    ref = reference(x, att_map, params)

    # 1) f32 compute + f32 output: tight check of kernel structure / packing.
    out_f32 = jax.block_until_ready(
        omp_mask_predictor(x, att_map, params,
                           compute_dtype=jnp.float32, out_dtype=jnp.float32))
    assert out_f32.shape == (N, num_classes, 2 * H, 2 * W), out_f32.shape
    assert jnp.allclose(out_f32, ref, rtol=1e-3, atol=1e-3), \
        float(jnp.max(jnp.abs(out_f32 - ref)))

    # 2) default fast path (bf16 compute, bf16 output): loose tolerance vs. f32 ref.
    out_bf16 = jax.block_until_ready(omp_mask_predictor(x, att_map, params))
    assert out_bf16.shape == (N, num_classes, 2 * H, 2 * W), out_bf16.shape
    assert out_bf16.dtype == jnp.bfloat16, out_bf16.dtype
    assert jnp.allclose(out_bf16.astype(jnp.float32), ref, rtol=5e-2, atol=2e-1), \
        float(jnp.max(jnp.abs(out_bf16.astype(jnp.float32) - ref)))

    print("KERNEL_OK")
</pallas_src>

<mosaic_0001>
module attributes {stable_mosaic.version = 11 : i64} {
  func.func @_mask_pred_kernel(%arg0: i32, %arg1: memref<4xf32, #tpu.memory_space<smem>>, %arg2: memref<1x32x256xf32, #tpu.memory_space<vmem>>, %arg3: memref<1x1x256xf32, #tpu.memory_space<vmem>>, %arg4: memref<512x32xf32, #tpu.memory_space<vmem>>, %arg5: memref<128x1xf32, #tpu.memory_space<vmem>>, %arg6: memref<128x128xf32, #tpu.memory_space<vmem>>, %arg7: memref<128x1xf32, #tpu.memory_space<vmem>>, %arg8: memref<1x512x256xf32, #tpu.memory_space<vmem>>) attributes {dimension_semantics = [#tpu.dimension_semantics<parallel>], iteration_bounds = array<i64: 2>, scalar_prefetch = 1 : i64, scratch_operands = 0 : i64, tpu.core_type = #tpu.core_type<tc>, window_params = [{transform_indices = @transform_0, window_bounds = array<i64: 1, 32, 256>}, {transform_indices = @transform_1, window_bounds = array<i64: 1, 1, 256>}, {pipeline_mode = #tpu.pipeline_mode<synchronous>, transform_indices = @transform_2, window_bounds = array<i64: 512, 32>}, {pipeline_mode = #tpu.pipeline_mode<synchronous>, transform_indices = @transform_3, window_bounds = array<i64: 128, 1>}, {pipeline_mode = #tpu.pipeline_mode<synchronous>, transform_indices = @transform_4, window_bounds = array<i64: 128, 128>}, {pipeline_mode = #tpu.pipeline_mode<synchronous>, transform_indices = @transform_5, window_bounds = array<i64: 128, 1>}, {transform_indices = @transform_6, window_bounds = array<i64: 1, 512, 256>}]} {
    %c0 = arith.constant 0 : index
    %c0_0 = arith.constant 0 : index
    %0 = vector.load %arg6[%c0, %c0_0] : memref<128x128xf32, #tpu.memory_space<vmem>>, vector<128x128xf32>
    %c0_1 = arith.constant 0 : index
    %c0_2 = arith.constant 0 : index
    %1 = vector.load %arg5[%c0_1, %c0_2] : memref<128x1xf32, #tpu.memory_space<vmem>>, vector<128x1xf32>
    %c0_3 = arith.constant 0 : index
    %c0_4 = arith.constant 0 : index
    %2 = vector.load %arg7[%c0_3, %c0_4] : memref<128x1xf32, #tpu.memory_space<vmem>>, vector<128x1xf32>
    %c0_5 = arith.constant 0 : index
    %c0_6 = arith.constant 0 : index
    %c0_7 = arith.constant 0 : index
    %3 = vector.load %arg2[%c0_5, %c0_6, %c0_7] : memref<1x32x256xf32, #tpu.memory_space<vmem>>, vector<1x32x256xf32>
    %4 = vector.shape_cast %3 : vector<1x32x256xf32> to vector<32x256xf32>
    %c0_8 = arith.constant 0 : index
    %c0_9 = arith.constant 0 : index
    %c0_10 = arith.constant 0 : index
    %5 = vector.load %arg3[%c0_8, %c0_9, %c0_10] : memref<1x1x256xf32, #tpu.memory_space<vmem>>, vector<1x1x256xf32>
    %6 = vector.shape_cast %5 : vector<1x1x256xf32> to vector<1x256xf32>
    %c0_11 = arith.constant 0 : index
    %c0_12 = arith.constant 0 : index
    %7 = vector.load %arg4[%c0_11, %c0_12] : memref<512x32xf32, #tpu.memory_space<vmem>>, vector<128x32xf32>
    %cst = arith.constant dense<0.000000e+00> : vector<128x256xf32>
    %8 = tpu.matmul %7, %4, %cst {dimension_numbers = #tpu.dot_dimension_numbers<[1], [0], [0], [1], [0, 0, 1, 1], [], []>} : vector<128x32xf32>, vector<32x256xf32>, vector<128x256xf32> -> vector<128x256xf32>
    %9 = vector.broadcast %1 : vector<128x1xf32> to vector<128x256xf32>
    %10 = arith.addf %8, %9 : vector<128x256xf32>
    %cst_13 = arith.constant 0.000000e+00 : f32
    %11 = vector.broadcast %cst_13 : f32 to vector<128x256xf32>
    %12 = arith.maximumf %10, %11 : vector<128x256xf32>
    %cst_14 = arith.constant dense<0.000000e+00> : vector<128x256xf32>
    %13 = tpu.matmul %0, %12, %cst_14 {dimension_numbers = #tpu.dot_dimension_numbers<[1], [0], [0], [1], [0, 0, 1, 1], [], []>} : vector<128x128xf32>, vector<128x256xf32>, vector<128x256xf32> -> vector<128x256xf32>
    %14 = vector.broadcast %2 : vector<128x1xf32> to vector<128x256xf32>
    %15 = arith.addf %13, %14 : vector<128x256xf32>
    %c0_15 = arith.constant 0 : index
    %16 = memref.load %arg1[%c0_15] : memref<4xf32, #tpu.memory_space<smem>>
    %17 = vector.broadcast %16 : f32 to vector<1x256xf32>
    %18 = arith.mulf %6, %17 : vector<1x256xf32>
    %19 = vector.broadcast %18 : vector<1x256xf32> to vector<128x256xf32>
    %20 = arith.addf %15, %19 : vector<128x256xf32>
    %c0_16 = arith.constant 0 : index
    %c0_17 = arith.constant 0 : index
    %c0_18 = arith.constant 0 : index
    %21 = vector.load %arg8[%c0_16, %c0_17, %c0_18] : memref<1x512x256xf32, #tpu.memory_space<vmem>>, vector<1x128x256xf32>
    %22 = vector.shape_cast %21 : vector<1x128x256xf32> to vector<128x256xf32>
    %23 = vector.shape_cast %20 : vector<128x256xf32> to vector<1x128x256xf32>
    tpu.vector_store %arg8[%c0_16, %c0_17, %c0_18], %23 {strides = array<i32>} : memref<1x512x256xf32, #tpu.memory_space<vmem>>, vector<1x128x256xf32>,
    %c128 = arith.constant 128 : index
    %c0_19 = arith.constant 0 : index
    %24 = vector.load %arg4[%c128, %c0_19] : memref<512x32xf32, #tpu.memory_space<vmem>>, vector<128x32xf32>
    %cst_20 = arith.constant dense<0.000000e+00> : vector<128x256xf32>
    %25 = tpu.matmul %24, %4, %cst_20 {dimension_numbers = #tpu.dot_dimension_numbers<[1], [0], [0], [1], [0, 0, 1, 1], [], []>} : vector<128x32xf32>, vector<32x256xf32>, vector<128x256xf32> -> vector<128x256xf32>
    %26 = vector.broadcast %1 : vector<128x1xf32> to vector<128x256xf32>
    %27 = arith.addf %25, %26 : vector<128x256xf32>
    %cst_21 = arith.constant 0.000000e+00 : f32
    %28 = vector.broadcast %cst_21 : f32 to vector<128x256xf32>
    %29 = arith.maximumf %27, %28 : vector<128x256xf32>
    %cst_22 = arith.constant dense<0.000000e+00> : vector<128x256xf32>
    %30 = tpu.matmul %0, %29, %cst_22 {dimension_numbers = #tpu.dot_dimension_numbers<[1], [0], [0], [1], [0, 0, 1, 1], [], []>} : vector<128x128xf32>, vector<128x256xf32>, vector<128x256xf32> -> vector<128x256xf32>
    %31 = vector.broadcast %2 : vector<128x1xf32> to vector<128x256xf32>
    %32 = arith.addf %30, %31 : vector<128x256xf32>
    %c1 = arith.constant 1 : index
    %33 = memref.load %arg1[%c1] : memref<4xf32, #tpu.memory_space<smem>>
    %34 = vector.broadcast %33 : f32 to vector<1x256xf32>
    %35 = arith.mulf %6, %34 : vector<1x256xf32>
    %36 = vector.broadcast %35 : vector<1x256xf32> to vector<128x256xf32>
    %37 = arith.addf %32, %36 : vector<128x256xf32>
    %c0_23 = arith.constant 0 : index
    %c128_24 = arith.constant 128 : index
    %c0_25 = arith.constant 0 : index
    %38 = vector.load %arg8[%c0_23, %c128_24, %c0_25] : memref<1x512x256xf32, #tpu.memory_space<vmem>>, vector<1x128x256xf32>
    %39 = vector.shape_cast %38 : vector<1x128x256xf32> to vector<128x256xf32>
    %40 = vector.shape_cast %37 : vector<128x256xf32> to vector<1x128x256xf32>
    tpu.vector_store %arg8[%c0_23, %c128_24, %c0_25], %40 {strides = array<i32>} : memref<1x512x256xf32, #tpu.memory_space<vmem>>, vector<1x128x256xf32>,
    %c256 = arith.constant 256 : index
    %c0_26 = arith.constant 0 : index
    %41 = vector.load %arg4[%c256, %c0_26] : memref<512x32xf32, #tpu.memory_space<vmem>>, vector<128x32xf32>
    %cst_27 = arith.constant dense<0.000000e+00> : vector<128x256xf32>
    %42 = tpu.matmul %41, %4, %cst_27 {dimension_numbers = #tpu.dot_dimension_numbers<[1], [0], [0], [1], [0, 0, 1, 1], [], []>} : vector<128x32xf32>, vector<32x256xf32>, vector<128x256xf32> -> vector<128x256xf32>
    %43 = vector.broadcast %1 : vector<128x1xf32> to vector<128x256xf32>
    %44 = arith.addf %42, %43 : vector<128x256xf32>
    %cst_28 = arith.constant 0.000000e+00 : f32
    %45 = vector.broadcast %cst_28 : f32 to vector<128x256xf32>
    %46 = arith.maximumf %44, %45 : vector<128x256xf32>
    %cst_29 = arith.constant dense<0.000000e+00> : vector<128x256xf32>
    %47 = tpu.matmul %0, %46, %cst_29 {dimension_numbers = #tpu.dot_dimension_numbers<[1], [0], [0], [1], [0, 0, 1, 1], [], []>} : vector<128x128xf32>, vector<128x256xf32>, vector<128x256xf32> -> vector<128x256xf32>
    %48 = vector.broadcast %2 : vector<128x1xf32> to vector<128x256xf32>
    %49 = arith.addf %47, %48 : vector<128x256xf32>
    %c2 = arith.constant 2 : index
    %50 = memref.load %arg1[%c2] : memref<4xf32, #tpu.memory_space<smem>>
    %51 = vector.broadcast %50 : f32 to vector<1x256xf32>
    %52 = arith.mulf %6, %51 : vector<1x256xf32>
    %53 = vector.broadcast %52 : vector<1x256xf32> to vector<128x256xf32>
    %54 = arith.addf %49, %53 : vector<128x256xf32>
    %c0_30 = arith.constant 0 : index
    %c256_31 = arith.constant 256 : index
    %c0_32 = arith.constant 0 : index
    %55 = vector.load %arg8[%c0_30, %c256_31, %c0_32] : memref<1x512x256xf32, #tpu.memory_space<vmem>>, vector<1x128x256xf32>
    %56 = vector.shape_cast %55 : vector<1x128x256xf32> to vector<128x256xf32>
    %57 = vector.shape_cast %54 : vector<128x256xf32> to vector<1x128x256xf32>
    tpu.vector_store %arg8[%c0_30, %c256_31, %c0_32], %57 {strides = array<i32>} : memref<1x512x256xf32, #tpu.memory_space<vmem>>, vector<1x128x256xf32>,
    %c384 = arith.constant 384 : index
    %c0_33 = arith.constant 0 : index
    %58 = vector.load %arg4[%c384, %c0_33] : memref<512x32xf32, #tpu.memory_space<vmem>>, vector<128x32xf32>
    %cst_34 = arith.constant dense<0.000000e+00> : vector<128x256xf32>
    %59 = tpu.matmul %58, %4, %cst_34 {dimension_numbers = #tpu.dot_dimension_numbers<[1], [0], [0], [1], [0, 0, 1, 1], [], []>} : vector<128x32xf32>, vector<32x256xf32>, vector<128x256xf32> -> vector<128x256xf32>
    %60 = vector.broadcast %1 : vector<128x1xf32> to vector<128x256xf32>
    %61 = arith.addf %59, %60 : vector<128x256xf32>
    %cst_35 = arith.constant 0.000000e+00 : f32
    %62 = vector.broadcast %cst_35 : f32 to vector<128x256xf32>
    %63 = arith.maximumf %61, %62 : vector<128x256xf32>
    %cst_36 = arith.constant dense<0.000000e+00> : vector<128x256xf32>
    %64 = tpu.matmul %0, %63, %cst_36 {dimension_numbers = #tpu.dot_dimension_numbers<[1], [0], [0], [1], [0, 0, 1, 1], [], []>} : vector<128x128xf32>, vector<128x256xf32>, vector<128x256xf32> -> vector<128x256xf32>
    %65 = vector.broadcast %2 : vector<128x1xf32> to vector<128x256xf32>
    %66 = arith.addf %64, %65 : vector<128x256xf32>
    %c3 = arith.constant 3 : index
    %67 = memref.load %arg1[%c3] : memref<4xf32, #tpu.memory_space<smem>>
    %68 = vector.broadcast %67 : f32 to vector<1x256xf32>
    %69 = arith.mulf %6, %68 : vector<1x256xf32>
    %70 = vector.broadcast %69 : vector<1x256xf32> to vector<128x256xf32>
    %71 = arith.addf %66, %70 : vector<128x256xf32>
    %c0_37 = arith.constant 0 : index
    %c384_38 = arith.constant 384 : index
    %c0_39 = arith.constant 0 : index
    %72 = vector.load %arg8[%c0_37, %c384_38, %c0_39] : memref<1x512x256xf32, #tpu.memory_space<vmem>>, vector<1x128x256xf32>
    %73 = vector.shape_cast %72 : vector<1x128x256xf32> to vector<128x256xf32>
    %74 = vector.shape_cast %71 : vector<128x256xf32> to vector<1x128x256xf32>
    tpu.vector_store %arg8[%c0_37, %c384_38, %c0_39], %74 {strides = array<i32>} : memref<1x512x256xf32, #tpu.memory_space<vmem>>, vector<1x128x256xf32>,
    return
  }
  func.func @transform_0(%arg0: i32, %arg1: memref<4xf32, #tpu.memory_space<smem>>) -> (i32, i32, i32) {
    %c0_i32 = arith.constant 0 : i32
    %c0_i32_0 = arith.constant 0 : i32
    %c0_i32_1 = arith.constant 0 : i32
    return %arg0, %c0_i32, %c0_i32_0 : i32, i32, i32
  }
  func.func @transform_1(%arg0: i32, %arg1: memref<4xf32, #tpu.memory_space<smem>>) -> (i32, i32, i32) {
    %c0_i32 = arith.constant 0 : i32
    %c0_i32_0 = arith.constant 0 : i32
    %c0_i32_1 = arith.constant 0 : i32
    return %arg0, %c0_i32, %c0_i32_0 : i32, i32, i32
  }
  func.func @transform_2(%arg0: i32, %arg1: memref<4xf32, #tpu.memory_space<smem>>) -> (i32, i32) {
    %c0_i32 = arith.constant 0 : i32
    %c0_i32_0 = arith.constant 0 : i32
    %c0_i32_1 = arith.constant 0 : i32
    return %c0_i32, %c0_i32_0 : i32, i32
  }
  func.func @transform_3(%arg0: i32, %arg1: memref<4xf32, #tpu.memory_space<smem>>) -> (i32, i32) {
    %c0_i32 = arith.constant 0 : i32
    %c0_i32_0 = arith.constant 0 : i32
    %c0_i32_1 = arith.constant 0 : i32
    return %c0_i32, %c0_i32_0 : i32, i32
  }
  func.func @transform_4(%arg0: i32, %arg1: memref<4xf32, #tpu.memory_space<smem>>) -> (i32, i32) {
    %c0_i32 = arith.constant 0 : i32
    %c0_i32_0 = arith.constant 0 : i32
    %c0_i32_1 = arith.constant 0 : i32
    return %c0_i32, %c0_i32_0 : i32, i32
  }
  func.func @transform_5(%arg0: i32, %arg1: memref<4xf32, #tpu.memory_space<smem>>) -> (i32, i32) {
    %c0_i32 = arith.constant 0 : i32
    %c0_i32_0 = arith.constant 0 : i32
    %c0_i32_1 = arith.constant 0 : i32
    return %c0_i32, %c0_i32_0 : i32, i32
  }
  func.func @transform_6(%arg0: i32, %arg1: memref<4xf32, #tpu.memory_space<smem>>) -> (i32, i32, i32) {
    %c0_i32 = arith.constant 0 : i32
    %c0_i32_0 = arith.constant 0 : i32
    %c0_i32_1 = arith.constant 0 : i32
    return %arg0, %c0_i32, %c0_i32_0 : i32, i32, i32
  }
}

module attributes {stable_mosaic.version = 11 : i64} {
  func.func @_mask_pred_kernel(%arg0: i32, %arg1: memref<4xf32, #tpu.memory_space<smem>>, %arg2: memref<1x32x256xf32, #tpu.memory_space<vmem>>, %arg3: memref<1x1x256xf32, #tpu.memory_space<vmem>>, %arg4: memref<512x32xf32, #tpu.memory_space<vmem>>, %arg5: memref<128x1xf32, #tpu.memory_space<vmem>>, %arg6: memref<128x128xf32, #tpu.memory_space<vmem>>, %arg7: memref<128x1xf32, #tpu.memory_space<vmem>>, %arg8: memref<1x512x256xf32, #tpu.memory_space<vmem>>) attributes {dimension_semantics = [#tpu.dimension_semantics<parallel>], iteration_bounds = array<i64: 2>, scalar_prefetch = 1 : i64, scratch_operands = 0 : i64, tpu.core_type = #tpu.core_type<tc>, window_params = [{transform_indices = @transform_0, window_bounds = array<i64: 1, 32, 256>}, {transform_indices = @transform_1, window_bounds = array<i64: 1, 1, 256>}, {pipeline_mode = #tpu.pipeline_mode<synchronous>, transform_indices = @transform_2, window_bounds = array<i64: 512, 32>}, {pipeline_mode = #tpu.pipeline_mode<synchronous>, transform_indices = @transform_3, window_bounds = array<i64: 128, 1>}, {pipeline_mode = #tpu.pipeline_mode<synchronous>, transform_indices = @transform_4, window_bounds = array<i64: 128, 128>}, {pipeline_mode = #tpu.pipeline_mode<synchronous>, transform_indices = @transform_5, window_bounds = array<i64: 128, 1>}, {transform_indices = @transform_6, window_bounds = array<i64: 1, 512, 256>}]} {
    %c0 = arith.constant 0 : index
    %c0_0 = arith.constant 0 : index
    %0 = vector.load %arg6[%c0, %c0_0] : memref<128x128xf32, #tpu.memory_space<vmem>>, vector<128x128xf32>
    %c0_1 = arith.constant 0 : index
    %c0_2 = arith.constant 0 : index
    %1 = vector.load %arg5[%c0_1, %c0_2] : memref<128x1xf32, #tpu.memory_space<vmem>>, vector<128x1xf32>
    %c0_3 = arith.constant 0 : index
    %c0_4 = arith.constant 0 : index
    %2 = vector.load %arg7[%c0_3, %c0_4] : memref<128x1xf32, #tpu.memory_space<vmem>>, vector<128x1xf32>
    %c0_5 = arith.constant 0 : index
    %c0_6 = arith.constant 0 : index
    %c0_7 = arith.constant 0 : index
    %3 = vector.load %arg2[%c0_5, %c0_6, %c0_7] : memref<1x32x256xf32, #tpu.memory_space<vmem>>, vector<1x32x256xf32>
    %4 = vector.shape_cast %3 : vector<1x32x256xf32> to vector<32x256xf32>
    %c0_8 = arith.constant 0 : index
    %c0_9 = arith.constant 0 : index
    %c0_10 = arith.constant 0 : index
    %5 = vector.load %arg3[%c0_8, %c0_9, %c0_10] : memref<1x1x256xf32, #tpu.memory_space<vmem>>, vector<1x1x256xf32>
    %6 = vector.shape_cast %5 : vector<1x1x256xf32> to vector<1x256xf32>
    %c0_11 = arith.constant 0 : index
    %c0_12 = arith.constant 0 : index
    %7 = vector.load %arg4[%c0_11, %c0_12] : memref<512x32xf32, #tpu.memory_space<vmem>>, vector<128x32xf32>
    %cst = arith.constant dense<0.000000e+00> : vector<128x256xf32>
    %8 = tpu.matmul %7, %4, %cst {dimension_numbers = #tpu.dot_dimension_numbers<[1], [0], [0], [1], [0, 0, 1, 1], [], []>} : vector<128x32xf32>, vector<32x256xf32>, vector<128x256xf32> -> vector<128x256xf32>
    %9 = vector.broadcast %1 : vector<128x1xf32> to vector<128x256xf32>
    %10 = arith.addf %8, %9 : vector<128x256xf32>
    %cst_13 = arith.constant 0.000000e+00 : f32
    %11 = vector.broadcast %cst_13 : f32 to vector<128x256xf32>
    %12 = arith.maximumf %10, %11 : vector<128x256xf32>
    %cst_14 = arith.constant dense<0.000000e+00> : vector<128x256xf32>
    %13 = tpu.matmul %0, %12, %cst_14 {dimension_numbers = #tpu.dot_dimension_numbers<[1], [0], [0], [1], [0, 0, 1, 1], [], []>} : vector<128x128xf32>, vector<128x256xf32>, vector<128x256xf32> -> vector<128x256xf32>
    %14 = vector.broadcast %2 : vector<128x1xf32> to vector<128x256xf32>
    %15 = arith.addf %13, %14 : vector<128x256xf32>
    %c0_15 = arith.constant 0 : index
    %16 = memref.load %arg1[%c0_15] : memref<4xf32, #tpu.memory_space<smem>>
    %17 = vector.broadcast %16 : f32 to vector<1x256xf32>
    %18 = arith.mulf %6, %17 : vector<1x256xf32>
    %19 = vector.broadcast %18 : vector<1x256xf32> to vector<128x256xf32>
    %20 = arith.addf %15, %19 : vector<128x256xf32>
    %c0_16 = arith.constant 0 : index
    %c0_17 = arith.constant 0 : index
    %c0_18 = arith.constant 0 : index
    %21 = vector.load %arg8[%c0_16, %c0_17, %c0_18] : memref<1x512x256xf32, #tpu.memory_space<vmem>>, vector<1x128x256xf32>
    %22 = vector.shape_cast %21 : vector<1x128x256xf32> to vector<128x256xf32>
    %23 = vector.shape_cast %20 : vector<128x256xf32> to vector<1x128x256xf32>
    tpu.vector_store %arg8[%c0_16, %c0_17, %c0_18], %23 {strides = array<i32>} : memref<1x512x256xf32, #tpu.memory_space<vmem>>, vector<1x128x256xf32>,
    %c128 = arith.constant 128 : index
    %c0_19 = arith.constant 0 : index
    %24 = vector.load %arg4[%c128, %c0_19] : memref<512x32xf32, #tpu.memory_space<vmem>>, vector<128x32xf32>
    %cst_20 = arith.constant dense<0.000000e+00> : vector<128x256xf32>
    %25 = tpu.matmul %24, %4, %cst_20 {dimension_numbers = #tpu.dot_dimension_numbers<[1], [0], [0], [1], [0, 0, 1, 1], [], []>} : vector<128x32xf32>, vector<32x256xf32>, vector<128x256xf32> -> vector<128x256xf32>
    %26 = vector.broadcast %1 : vector<128x1xf32> to vector<128x256xf32>
    %27 = arith.addf %25, %26 : vector<128x256xf32>
    %cst_21 = arith.constant 0.000000e+00 : f32
    %28 = vector.broadcast %cst_21 : f32 to vector<128x256xf32>
    %29 = arith.maximumf %27, %28 : vector<128x256xf32>
    %cst_22 = arith.constant dense<0.000000e+00> : vector<128x256xf32>
    %30 = tpu.matmul %0, %29, %cst_22 {dimension_numbers = #tpu.dot_dimension_numbers<[1], [0], [0], [1], [0, 0, 1, 1], [], []>} : vector<128x128xf32>, vector<128x256xf32>, vector<128x256xf32> -> vector<128x256xf32>
    %31 = vector.broadcast %2 : vector<128x1xf32> to vector<128x256xf32>
    %32 = arith.addf %30, %31 : vector<128x256xf32>
    %c1 = arith.constant 1 : index
    %33 = memref.load %arg1[%c1] : memref<4xf32, #tpu.memory_space<smem>>
    %34 = vector.broadcast %33 : f32 to vector<1x256xf32>
    %35 = arith.mulf %6, %34 : vector<1x256xf32>
    %36 = vector.broadcast %35 : vector<1x256xf32> to vector<128x256xf32>
    %37 = arith.addf %32, %36 : vector<128x256xf32>
    %c0_23 = arith.constant 0 : index
    %c128_24 = arith.constant 128 : index
    %c0_25 = arith.constant 0 : index
    %38 = vector.load %arg8[%c0_23, %c128_24, %c0_25] : memref<1x512x256xf32, #tpu.memory_space<vmem>>, vector<1x128x256xf32>
    %39 = vector.shape_cast %38 : vector<1x128x256xf32> to vector<128x256xf32>
    %40 = vector.shape_cast %37 : vector<128x256xf32> to vector<1x128x256xf32>
    tpu.vector_store %arg8[%c0_23, %c128_24, %c0_25], %40 {strides = array<i32>} : memref<1x512x256xf32, #tpu.memory_space<vmem>>, vector<1x128x256xf32>,
    %c256 = arith.constant 256 : index
    %c0_26 = arith.constant 0 : index
    %41 = vector.load %arg4[%c256, %c0_26] : memref<512x32xf32, #tpu.memory_space<vmem>>, vector<128x32xf32>
    %cst_27 = arith.constant dense<0.000000e+00> : vector<128x256xf32>
    %42 = tpu.matmul %41, %4, %cst_27 {dimension_numbers = #tpu.dot_dimension_numbers<[1], [0], [0], [1], [0, 0, 1, 1], [], []>} : vector<128x32xf32>, vector<32x256xf32>, vector<128x256xf32> -> vector<128x256xf32>
    %43 = vector.broadcast %1 : vector<128x1xf32> to vector<128x256xf32>
    %44 = arith.addf %42, %43 : vector<128x256xf32>
    %cst_28 = arith.constant 0.000000e+00 : f32
    %45 = vector.broadcast %cst_28 : f32 to vector<128x256xf32>
    %46 = arith.maximumf %44, %45 : vector<128x256xf32>
    %cst_29 = arith.constant dense<0.000000e+00> : vector<128x256xf32>
    %47 = tpu.matmul %0, %46, %cst_29 {dimension_numbers = #tpu.dot_dimension_numbers<[1], [0], [0], [1], [0, 0, 1, 1], [], []>} : vector<128x128xf32>, vector<128x256xf32>, vector<128x256xf32> -> vector<128x256xf32>
    %48 = vector.broadcast %2 : vector<128x1xf32> to vector<128x256xf32>
    %49 = arith.addf %47, %48 : vector<128x256xf32>
    %c2 = arith.constant 2 : index
    %50 = memref.load %arg1[%c2] : memref<4xf32, #tpu.memory_space<smem>>
    %51 = vector.broadcast %50 : f32 to vector<1x256xf32>
    %52 = arith.mulf %6, %51 : vector<1x256xf32>
    %53 = vector.broadcast %52 : vector<1x256xf32> to vector<128x256xf32>
    %54 = arith.addf %49, %53 : vector<128x256xf32>
    %c0_30 = arith.constant 0 : index
    %c256_31 = arith.constant 256 : index
    %c0_32 = arith.constant 0 : index
    %55 = vector.load %arg8[%c0_30, %c256_31, %c0_32] : memref<1x512x256xf32, #tpu.memory_space<vmem>>, vector<1x128x256xf32>
    %56 = vector.shape_cast %55 : vector<1x128x256xf32> to vector<128x256xf32>
    %57 = vector.shape_cast %54 : vector<128x256xf32> to vector<1x128x256xf32>
    tpu.vector_store %arg8[%c0_30, %c256_31, %c0_32], %57 {strides = array<i32>} : memref<1x512x256xf32, #tpu.memory_space<vmem>>, vector<1x128x256xf32>,
    %c384 = arith.constant 384 : index
    %c0_33 = arith.constant 0 : index
    %58 = vector.load %arg4[%c384, %c0_33] : memref<512x32xf32, #tpu.memory_space<vmem>>, vector<128x32xf32>
    %cst_34 = arith.constant dense<0.000000e+00> : vector<128x256xf32>
    %59 = tpu.matmul %58, %4, %cst_34 {dimension_numbers = #tpu.dot_dimension_numbers<[1], [0], [0], [1], [0, 0, 1, 1], [], []>} : vector<128x32xf32>, vector<32x256xf32>, vector<128x256xf32> -> vector<128x256xf32>
    %60 = vector.broadcast %1 : vector<128x1xf32> to vector<128x256xf32>
    %61 = arith.addf %59, %60 : vector<128x256xf32>
    %cst_35 = arith.constant 0.000000e+00 : f32
    %62 = vector.broadcast %cst_35 : f32 to vector<128x256xf32>
    %63 = arith.maximumf %61, %62 : vector<128x256xf32>
    %cst_36 = arith.constant dense<0.000000e+00> : vector<128x256xf32>
    %64 = tpu.matmul %0, %63, %cst_36 {dimension_numbers = #tpu.dot_dimension_numbers<[1], [0], [0], [1], [0, 0, 1, 1], [], []>} : vector<128x128xf32>, vector<128x256xf32>, vector<128x256xf32> -> vector<128x256xf32>
    %65 = vector.broadcast %2 : vector<128x1xf32> to vector<128x256xf32>
    %66 = arith.addf %64, %65 : vector<128x256xf32>
    %c3 = arith.constant 3 : index
    %67 = memref.load %arg1[%c3] : memref<4xf32, #tpu.memory_space<smem>>
    %68 = vector.broadcast %67 : f32 to vector<1x256xf32>
    %69 = arith.mulf %6, %68 : vector<1x256xf32>
    %70 = vector.broadcast %69 : vector<1x256xf32> to vector<128x256xf32>
    %71 = arith.addf %66, %70 : vector<128x256xf32>
    %c0_37 = arith.constant 0 : index
    %c384_38 = arith.constant 384 : index
    %c0_39 = arith.constant 0 : index
    %72 = vector.load %arg8[%c0_37, %c384_38, %c0_39] : memref<1x512x256xf32, #tpu.memory_space<vmem>>, vector<1x128x256xf32>
    %73 = vector.shape_cast %72 : vector<1x128x256xf32> to vector<128x256xf32>
    %74 = vector.shape_cast %71 : vector<128x256xf32> to vector<1x128x256xf32>
    tpu.vector_store %arg8[%c0_37, %c384_38, %c0_39], %74 {strides = array<i32>} : memref<1x512x256xf32, #tpu.memory_space<vmem>>, vector<1x128x256xf32>,
    return
  }
  func.func @transform_0(%arg0: i32, %arg1: memref<4xf32, #tpu.memory_space<smem>>) -> (i32, i32, i32) {
    %c0_i32 = arith.constant 0 : i32
    %c0_i32_0 = arith.constant 0 : i32
    %c0_i32_1 = arith.constant 0 : i32
    return %arg0, %c0_i32, %c0_i32_0 : i32, i32, i32
  }
  func.func @transform_1(%arg0: i32, %arg1: memref<4xf32, #tpu.memory_space<smem>>) -> (i32, i32, i32) {
    %c0_i32 = arith.constant 0 : i32
    %c0_i32_0 = arith.constant 0 : i32
    %c0_i32_1 = arith.constant 0 : i32
    return %arg0, %c0_i32, %c0_i32_0 : i32, i32, i32
  }
  func.func @transform_2(%arg0: i32, %arg1: memref<4xf32, #tpu.memory_space<smem>>) -> (i32, i32) {
    %c0_i32 = arith.constant 0 : i32
    %c0_i32_0 = arith.constant 0 : i32
    %c0_i32_1 = arith.constant 0 : i32
    return %c0_i32, %c0_i32_0 : i32, i32
  }
  func.func @transform_3(%arg0: i32, %arg1: memref<4xf32, #tpu.memory_space<smem>>) -> (i32, i32) {
    %c0_i32 = arith.constant 0 : i32
    %c0_i32_0 = arith.constant 0 : i32
    %c0_i32_1 = arith.constant 0 : i32
    return %c0_i32, %c0_i32_0 : i32, i32
  }
  func.func @transform_4(%arg0: i32, %arg1: memref<4xf32, #tpu.memory_space<smem>>) -> (i32, i32) {
    %c0_i32 = arith.constant 0 : i32
    %c0_i32_0 = arith.constant 0 : i32
    %c0_i32_1 = arith.constant 0 : i32
    return %c0_i32, %c0_i32_0 : i32, i32
  }
  func.func @transform_5(%arg0: i32, %arg1: memref<4xf32, #tpu.memory_space<smem>>) -> (i32, i32) {
    %c0_i32 = arith.constant 0 : i32
    %c0_i32_0 = arith.constant 0 : i32
    %c0_i32_1 = arith.constant 0 : i32
    return %c0_i32, %c0_i32_0 : i32, i32
  }
  func.func @transform_6(%arg0: i32, %arg1: memref<4xf32, #tpu.memory_space<smem>>) -> (i32, i32, i32) {
    %c0_i32 = arith.constant 0 : i32
    %c0_i32_0 = arith.constant 0 : i32
    %c0_i32_1 = arith.constant 0 : i32
    return %arg0, %c0_i32, %c0_i32_0 : i32, i32, i32
  }
}

</mosaic_0001>

<llo_original>
// kernel: tpu_custom_call.1
$region0: #{tpu_custom_call.1}
  #allocation0 [shape = 'u32[]', space=smem, size = 0x4, offset = 0x4, fixed_abs, tag = 'smem constant byte address 0x4 - core index']
  #allocation1 [shape = 'u32[144,128]{1,0:T(1,128)}', space=vmem, size = 0x12000, scoped, tag = 'internal scratch']
  #allocation2 [shape = 's32[1]{0}', space=sflag, size = 0x4, scoped, tag = 'scoped memory for tpu_custom_call.1']
  #allocation3 [shape = 'u8[512]{0}', space=smem, size = 0x200, scoped, tag = 'prefetched SMEM operand 0']
  %s0 = inlined_call_operand.vmem [shape: f32[4], index: 0, kind: input, shape index: {}]
  %s1 = inlined_call_operand.vmem [shape: f32[2,32,256], index: 1, kind: input, shape index: {}]
  %s2 = inlined_call_operand.vmem [shape: f32[2,1,256], index: 2, kind: input, shape index: {}]
  %s3 = inlined_call_operand.vmem [shape: f32[512,32], index: 3, kind: input, shape index: {}]
  %s4 = inlined_call_operand.vmem [shape: f32[128,1], index: 4, kind: input, shape index: {}]
  %s5 = inlined_call_operand.vmem [shape: f32[128,128], index: 5, kind: input, shape index: {}]
  %s6 = inlined_call_operand.vmem [shape: f32[128,1], index: 6, kind: input, shape index: {}]
  %s7 = inlined_call_operand.hbm [shape: f32[2,512,256], index: 7, kind: output, shape index: {}]
  %s8 = sld [smem:[#allocation0]]
  $region57: #{tpu_custom_call.1} parent=0
    _
  %s10 = ssub.s32 1, %s8
  %s11 = scalar_select 0, %s10, %s8
  %s12 = sshll.u32 %s0, 4
  %s13 = int_to_ptr.vmem [resolvable:$true] %s12
  %15 = dma.vmem_to_smem %s13, 16, [#allocation3], [#allocation2]
  %16 = dma.done [#allocation2], 16
  %17 = sfence
  $region1: #{tpu_custom_call.1} parent=0
    #allocation4 [shape = 'u8[1048576]{0}', space=vmem, size = 0x100000, scoped, tag = 'output window, operand 0']
    #allocation5 [shape = 's32[2]{0}', space=sflag, size = 0x8, scoped, tag = 'scoped memory for tpu_custom_call.1']
    %18 = vsyncpa [#allocation5], 0
    %s19 = scalar_lea.sflag [#allocation5], 1
    %20 = vsyncpa %s19, 0
    loop: start=0, step=1, limit=4
    $region2: #{tpu_custom_call.1} parent=1 // loop_pre_header
      _
    $region3: #{tpu_custom_call.1} parent=1 // loop_header
      %s22 = sphi 0, %s26
      %p23 = scmp.ge.s32.totalorder %s22, 4
      %s32 = sphi 0, %s34
      %s35 = sphi 0, %s32
      %s36 = sphi 0, %s35
      %s52 = sphi 0, %s36
      %s58 = sphi 0, %s60
      %s61 = sphi 0, %s58
      %s62 = sphi 0, %s61
      %s78 = sphi 0, %s62
      %s82 = sphi 0, %s82
      %s84 = sphi 0, %s82
      %s85 = sphi 0, %s84
      %s99 = sphi 0, %s85
      %s103 = sphi 0, %s103
      %s105 = sphi 0, %s103
      %s106 = sphi 0, %s105
      %s120 = sphi 0, %s106
      %s124 = sphi 0, %s124
      %s126 = sphi 0, %s124
      %s127 = sphi 0, %s126
      %s141 = sphi 0, %s127
      %s145 = sphi 0, %s145
      %s147 = sphi 0, %s145
      %s148 = sphi 0, %s147
      %s162 = sphi 0, %s148
      %s168 = sphi 0, %s170
      %s171 = sphi 0, %s168
      %s172 = sphi 0, %s171
      %s188 = sphi 0, %s172
    $region4: #{tpu_custom_call.1} parent=1 // loop_header_branch
      %25 = sbr.rel (%p23) target = $region8
    $region5: #{tpu_custom_call.1} parent=1 // loop_body
      %s27 = ssub.s32 %s22, 1
      %s28 = ssub.s32 %s22, 2
      %s29 = sadd.s32 %s22, 1
      %s30 = ssub.s32 %s22, %s29
      %p31 = scmp.eq.s32.totalorder %s30, 0
      %s33 = sadd.s32 %s32, 1
      %s34 = scalar_select %p31, %s32, %s33
      %p37 = pneg %p31
      %p38 = scmp.eq.s32.totalorder %s22, 1
      %p39 = por %p37, %p38
      %p40 = scmp.ne.s32.totalorder %s32, %s35
      %p41 = scmp.eq.s32.totalorder %s22, 0
      %p42 = por %p40, %p41
      %p43 = scmp.ne.s32.totalorder %s32, %s35
      %p44 = scmp.eq.s32.totalorder %s27, 1
      %p45 = por %p43, %p44
      %p46 = scmp.ne.s32.totalorder %s35, %s36
      %p47 = scmp.eq.s32.totalorder %s27, 0
      %p48 = por %p46, %p47
      %p49 = scmp.ne.s32.totalorder %s35, %s36
      %p50 = scmp.eq.s32.totalorder %s28, 1
      %p51 = por %p49, %p50
      %p53 = scmp.ne.s32.totalorder %s36, %s52
      %p54 = scmp.eq.s32.totalorder %s28, 0
      %p55 = por %p53, %p54
      %s56 = ssub.s32 %s22, %s29
      %p57 = scmp.eq.s32.totalorder %s56, 0
      %s59 = sadd.s32 %s58, 1
      %s60 = scalar_select %p57, %s58, %s59
      %p63 = pneg %p57
      %p64 = scmp.eq.s32.totalorder %s22, 1
      %p65 = por %p63, %p64
      %p66 = scmp.ne.s32.totalorder %s58, %s61
      %p67 = scmp.eq.s32.totalorder %s22, 0
      %p68 = por %p66, %p67
      %p69 = scmp.ne.s32.totalorder %s58, %s61
      %p70 = scmp.eq.s32.totalorder %s27, 1
      %p71 = por %p69, %p70
      %p72 = scmp.ne.s32.totalorder %s61, %s62
      %p73 = scmp.eq.s32.totalorder %s27, 0
      %p74 = por %p72, %p73
      %p75 = scmp.ne.s32.totalorder %s61, %s62
      %p76 = scmp.eq.s32.totalorder %s28, 1
      %p77 = por %p75, %p76
      %p79 = scmp.ne.s32.totalorder %s62, %s78
      %p80 = scmp.eq.s32.totalorder %s28, 0
      %p81 = por %p79, %p80
      %s83 = sadd.s32 %s82, 1
      %p86 = scmp.eq.s32.totalorder %s22, 1
      %p87 = scmp.ne.s32.totalorder %s82, %s84
      %p88 = scmp.eq.s32.totalorder %s22, 0
      %p89 = por %p87, %p88
      %p90 = scmp.ne.s32.totalorder %s82, %s84
      %p91 = scmp.eq.s32.totalorder %s27, 1
      %p92 = por %p90, %p91
      %p93 = scmp.ne.s32.totalorder %s84, %s85
      %p94 = scmp.eq.s32.totalorder %s27, 0
      %p95 = por %p93, %p94
      %p96 = scmp.ne.s32.totalorder %s84, %s85
      %p97 = scmp.eq.s32.totalorder %s28, 1
      %p98 = por %p96, %p97
      %p100 = scmp.ne.s32.totalorder %s85, %s99
      %p101 = scmp.eq.s32.totalorder %s28, 0
      %p102 = por %p100, %p101
      %s104 = sadd.s32 %s103, 1
      %p107 = scmp.eq.s32.totalorder %s22, 1
      %p108 = scmp.ne.s32.totalorder %s103, %s105
      %p109 = scmp.eq.s32.totalorder %s22, 0
      %p110 = por %p108, %p109
      %p111 = scmp.ne.s32.totalorder %s103, %s105
      %p112 = scmp.eq.s32.totalorder %s27, 1
      %p113 = por %p111, %p112
      %p114 = scmp.ne.s32.totalorder %s105, %s106
      %p115 = scmp.eq.s32.totalorder %s27, 0
      %p116 = por %p114, %p115
      %p117 = scmp.ne.s32.totalorder %s105, %s106
      %p118 = scmp.eq.s32.totalorder %s28, 1
      %p119 = por %p117, %p118
      %p121 = scmp.ne.s32.totalorder %s106, %s120
      %p122 = scmp.eq.s32.totalorder %s28, 0
      %p123 = por %p121, %p122
      %s125 = sadd.s32 %s124, 1
      %p128 = scmp.eq.s32.totalorder %s22, 1
      %p129 = scmp.ne.s32.totalorder %s124, %s126
      %p130 = scmp.eq.s32.totalorder %s22, 0
      %p131 = por %p129, %p130
      %p132 = scmp.ne.s32.totalorder %s124, %s126
      %p133 = scmp.eq.s32.totalorder %s27, 1
      %p134 = por %p132, %p133
      %p135 = scmp.ne.s32.totalorder %s126, %s127
      %p136 = scmp.eq.s32.totalorder %s27, 0
      %p137 = por %p135, %p136
      %p138 = scmp.ne.s32.totalorder %s126, %s127
      %p139 = scmp.eq.s32.totalorder %s28, 1
      %p140 = por %p138, %p139
      %p142 = scmp.ne.s32.totalorder %s127, %s141
      %p143 = scmp.eq.s32.totalorder %s28, 0
      %p144 = por %p142, %p143
      %s146 = sadd.s32 %s145, 1
      %p149 = scmp.eq.s32.totalorder %s22, 1
      %p150 = scmp.ne.s32.totalorder %s145, %s147
      %p151 = scmp.eq.s32.totalorder %s22, 0
      %p152 = por %p150, %p151
      %p153 = scmp.ne.s32.totalorder %s145, %s147
      %p154 = scmp.eq.s32.totalorder %s27, 1
      %p155 = por %p153, %p154
      %p156 = scmp.ne.s32.totalorder %s147, %s148
      %p157 = scmp.eq.s32.totalorder %s27, 0
      %p158 = por %p156, %p157
      %p159 = scmp.ne.s32.totalorder %s147, %s148
      %p160 = scmp.eq.s32.totalorder %s28, 1
      %p161 = por %p159, %p160
      %p163 = scmp.ne.s32.totalorder %s148, %s162
      %p164 = scmp.eq.s32.totalorder %s28, 0
      %p165 = por %p163, %p164
      %s166 = ssub.s32 %s22, %s29
      %p167 = scmp.eq.s32.totalorder %s166, 0
      %s169 = sadd.s32 %s168, 1
      %s170 = scalar_select %p167, %s168, %s169
      %p173 = pneg %p167
      %p174 = scmp.eq.s32.totalorder %s22, 1
      %p175 = por %p173, %p174
      %p176 = scmp.ne.s32.totalorder %s168, %s171
      %p177 = scmp.eq.s32.totalorder %s22, 0
      %p178 = por %p176, %p177
      %p179 = scmp.ne.s32.totalorder %s168, %s171
      %p180 = scmp.eq.s32.totalorder %s27, 1
      %p181 = por %p179, %p180
      %p182 = scmp.ne.s32.totalorder %s171, %s172
      %p183 = scmp.eq.s32.totalorder %s27, 0
      %p184 = por %p182, %p183
      %p185 = scmp.ne.s32.totalorder %s171, %s172
      %p186 = scmp.eq.s32.totalorder %s28, 1
      %p187 = por %p185, %p186
      %p189 = scmp.ne.s32.totalorder %s172, %s188
      %p190 = scmp.eq.s32.totalorder %s28, 0
      %p191 = por %p189, %p190
      %p192 = scmp.le.s32.totalorder 1, %s22
      %p193 = scmp.lt.s32.totalorder %s22, 3
      %p194 = pnand %p192, %p193
      %p195 = pneg %p194
      // Predicated region
      $region9: #{tpu_custom_call.1} parent=5 // pred_check
        _
      $region10: #{tpu_custom_call.1} parent=5 // pred_check_branch
        %197 = sbr.rel (%p194) target = $region12
      $region11: #{tpu_custom_call.1} parent=5 // pred_region
        %s198 = ssub.s32 %s22, 1
        // Predicated region
        $region13: #{tpu_custom_call.1} parent=11 // pred_check
          %p199 = pneg %p95
        $region14: #{tpu_custom_call.1} parent=11 // pred_check_branch
          %201 = sbr.rel (%p199) target = $region16
        $region15: #{tpu_custom_call.1} parent=11 // pred_region
          _
        $region16: #{tpu_custom_call.1} parent=11 // pred_fallthru
          _
        // Predicated region
        $region17: #{tpu_custom_call.1} parent=11 // pred_check
          %p202 = pneg %p116
        $region18: #{tpu_custom_call.1} parent=11 // pred_check_branch
          %204 = sbr.rel (%p202) target = $region20
        $region19: #{tpu_custom_call.1} parent=11 // pred_region
          _
        $region20: #{tpu_custom_call.1} parent=11 // pred_fallthru
          _
        // Predicated region
        $region21: #{tpu_custom_call.1} parent=11 // pred_check
          %p205 = pneg %p137
        $region22: #{tpu_custom_call.1} parent=11 // pred_check_branch
          %207 = sbr.rel (%p205) target = $region24
        $region23: #{tpu_custom_call.1} parent=11 // pred_region
          _
        $region24: #{tpu_custom_call.1} parent=11 // pred_fallthru
          _
        // Predicated region
        $region25: #{tpu_custom_call.1} parent=11 // pred_check
          %p208 = pneg %p158
        $region26: #{tpu_custom_call.1} parent=11 // pred_check_branch
          %210 = sbr.rel (%p208) target = $region28
        $region27: #{tpu_custom_call.1} parent=11 // pred_region
          _
        $region28: #{tpu_custom_call.1} parent=11 // pred_fallthru
          _
      $region12: #{tpu_custom_call.1} parent=5 // pred_fallthru
        _
      %p211 = scmp.lt.s32.totalorder %s22, 2
      // Predicated region
      $region29: #{tpu_custom_call.1} parent=5 // pred_check
        %p212 = pneg %p211
      $region30: #{tpu_custom_call.1} parent=5 // pred_check_branch
        %214 = sbr.rel (%p212) target = $region32
      $region31: #{tpu_custom_call.1} parent=5 // pred_region
        // Predicated region
        $region33: #{tpu_custom_call.1} parent=31 // pred_check
          %p215 = pneg %p42
        $region34: #{tpu_custom_call.1} parent=31 // pred_check_branch
          %217 = sbr.rel (%p215) target = $region36
        $region35: #{tpu_custom_call.1} parent=31 // pred_region
          %p218 = scmp.lt.s32.totalorder %s22, 1
          %s219 = scalar_select %p218, %s22, 1
          %s220 = smul.addr %s219, 8
          %s221 = smul.addr %s220, 8
          %s222 = scalar_lea.vmem %s1, %s221
        $region36: #{tpu_custom_call.1} parent=31 // pred_fallthru
          _
        // Predicated region
        $region37: #{tpu_custom_call.1} parent=31 // pred_check
          %p223 = pneg %p68
        $region38: #{tpu_custom_call.1} parent=31 // pred_check_branch
          %225 = sbr.rel (%p223) target = $region40
        $region39: #{tpu_custom_call.1} parent=31 // pred_region
          %p226 = scmp.lt.s32.totalorder %s22, 1
          %s227 = scalar_select %p226, %s22, 1
          %s228 = smul.addr %s227, 2
          %s229 = scalar_lea.vmem %s2, %s228
        $region40: #{tpu_custom_call.1} parent=31 // pred_fallthru
          _
      $region32: #{tpu_custom_call.1} parent=5 // pred_fallthru
        _
      %p230 = scmp.le.s32.totalorder 1, %s22
      %p231 = scmp.lt.s32.totalorder %s22, 3
      %p232 = pnand %p230, %p231
      %p233 = pneg %p232
      // Predicated region
      $region41: #{tpu_custom_call.1} parent=5 // pred_check
        _
      $region42: #{tpu_custom_call.1} parent=5 // pred_check_branch
        %235 = sbr.rel (%p232) target = $region44
      $region43: #{tpu_custom_call.1} parent=5 // pred_region
        %s236 = ssub.s32 %s22, 1
        %p237 = scmp.lt.s32.totalorder %s27, 1
        %s238 = scalar_select %p237, %s27, 1
        %s239 = smul.addr %s238, 8
        %s240 = smul.addr %s239, 8
        %s241 = scalar_lea.vmem %s1, %s240
        %p242 = pneg %p48
        %p243 = pneg %p45
        %p244 = scmp.lt.s32.totalorder %s27, 1
        %s245 = scalar_select %p244, %s27, 1
        %s246 = smul.addr %s245, 2
        %s247 = scalar_lea.vmem %s2, %s246
        %p248 = pneg %p74
        %p249 = pneg %p71
        %p250 = pneg %p95
        %p251 = pneg %p92
        %p252 = pneg %p116
        %p253 = pneg %p113
        %p254 = pneg %p137
        %p255 = pneg %p134
        %p256 = pneg %p158
        %p257 = pneg %p155
        %p258 = pneg %p184
        %p259 = pneg %p181
        %s260 = sand.u32 %s171, 1
        %s261 = scalar_lea.sflag [#allocation5], %s260
        %s262 = sand.u32 %s171, 1
        %s263 = smul.addr %s262, 1024
        %s264 = scalar_lea.vmem [#allocation4], %s263
        %p265 = scmp.lt.s32.totalorder %s27, 1
        %s266 = scalar_select %p265, %s27, 1
        %s267 = smul.addr %s266, 8
        %s268 = smul.addr %s267, 8
        %s269 = scalar_lea.vmem %s1, %s268
        %p270 = scmp.lt.s32.totalorder %s27, 1
        %s271 = scalar_select %p270, %s27, 1
        %s272 = smul.addr %s271, 2
        %s273 = scalar_lea.vmem %s2, %s272
        %v274 = vld [vmem:[%s5] sm:$0xff]
        %v275 = vld [vmem:[%s5 + $0x8] sm:$0xff]
        %v276 = vld [vmem:[%s5 + $0x10] sm:$0xff]
        %v277 = vld [vmem:[%s5 + $0x18] sm:$0xff]
        %v278 = vld [vmem:[%s5 + $0x20] sm:$0xff]
        %v279 = vld [vmem:[%s5 + $0x28] sm:$0xff]
        %v280 = vld [vmem:[%s5 + $0x30] sm:$0xff]
        %v281 = vld [vmem:[%s5 + $0x38] sm:$0xff]
        %v282 = vld [vmem:[%s5 + $0x40] sm:$0xff]
        %v283 = vld [vmem:[%s5 + $0x48] sm:$0xff]
        %v284 = vld [vmem:[%s5 + $0x50] sm:$0xff]
        %v285 = vld [vmem:[%s5 + $0x58] sm:$0xff]
        %v286 = vld [vmem:[%s5 + $0x60] sm:$0xff]
        %v287 = vld [vmem:[%s5 + $0x68] sm:$0xff]
        %v288 = vld [vmem:[%s5 + $0x70] sm:$0xff]
        %v289 = vld [vmem:[%s5 + $0x78] sm:$0xff]
        %v290 = vld [vmem:[%s4] sm:$0xff]
        %v291 = vld [vmem:[%s4 + $0x8] sm:$0xff]
        %v292 = vld [vmem:[%s4 + $0x10] sm:$0xff]
        %v293 = vld [vmem:[%s4 + $0x18] sm:$0xff]
        %v294 = vld [vmem:[%s4 + $0x20] sm:$0xff]
        %v295 = vld [vmem:[%s4 + $0x28] sm:$0xff]
        %v296 = vld [vmem:[%s4 + $0x30] sm:$0xff]
        %v297 = vld [vmem:[%s4 + $0x38] sm:$0xff]
        %v298 = vld [vmem:[%s4 + $0x40] sm:$0xff]
        %v299 = vld [vmem:[%s4 + $0x48] sm:$0xff]
        %v300 = vld [vmem:[%s4 + $0x50] sm:$0xff]
        %v301 = vld [vmem:[%s4 + $0x58] sm:$0xff]
        %v302 = vld [vmem:[%s4 + $0x60] sm:$0xff]
        %v303 = vld [vmem:[%s4 + $0x68] sm:$0xff]
        %v304 = vld [vmem:[%s4 + $0x70] sm:$0xff]
        %v305 = vld [vmem:[%s4 + $0x78] sm:$0xff]
        %v306 = vld [vmem:[%s6] sm:$0xff]
        %v307 = vld [vmem:[%s6 + $0x8] sm:$0xff]
        %v308 = vld [vmem:[%s6 + $0x10] sm:$0xff]
        %v309 = vld [vmem:[%s6 + $0x18] sm:$0xff]
        %v310 = vld [vmem:[%s6 + $0x20] sm:$0xff]
        %v311 = vld [vmem:[%s6 + $0x28] sm:$0xff]
        %v312 = vld [vmem:[%s6 + $0x30] sm:$0xff]
        %v313 = vld [vmem:[%s6 + $0x38] sm:$0xff]
        %v314 = vld [vmem:[%s6 + $0x40] sm:$0xff]
        %v315 = vld [vmem:[%s6 + $0x48] sm:$0xff]
        %v316 = vld [vmem:[%s6 + $0x50] sm:$0xff]
        %v317 = vld [vmem:[%s6 + $0x58] sm:$0xff]
        %v318 = vld [vmem:[%s6 + $0x60] sm:$0xff]
        %v319 = vld [vmem:[%s6 + $0x68] sm:$0xff]
        %v320 = vld [vmem:[%s6 + $0x70] sm:$0xff]
        %v321 = vld [vmem:[%s6 + $0x78] sm:$0xff]
        %v322 = vld [vmem:[%s269] sm:$0xff]
        %v323 = vld [vmem:[%s269 + $0x8] sm:$0xff]
        %v324 = vld [vmem:[%s269 + $0x10] sm:$0xff]
        %v325 = vld [vmem:[%s269 + $0x18] sm:$0xff]
        %v326 = vld [vmem:[%s269 + $0x20] sm:$0xff]
        %v327 = vld [vmem:[%s269 + $0x28] sm:$0xff]
        %v328 = vld [vmem:[%s269 + $0x30] sm:$0xff]
        %v329 = vld [vmem:[%s269 + $0x38] sm:$0xff]
        %v330 = vld [vmem:[%s273] sm:$0x3]
        %v331 = vld [vmem:[%s3] sm:$0xff]
        %v332 = vld [vmem:[%s3 + $0x8] sm:$0xff]
        %v333 = vld [vmem:[%s3 + $0x10] sm:$0xff]
        %v334 = vld [vmem:[%s3 + $0x18] sm:$0xff]
        %v335 = vld [vmem:[%s3 + $0x20] sm:$0xff]
        %v336 = vld [vmem:[%s3 + $0x28] sm:$0xff]
        %v337 = vld [vmem:[%s3 + $0x30] sm:$0xff]
        %v338 = vld [vmem:[%s3 + $0x38] sm:$0xff]
        %v339 = vld [vmem:[%s3 + $0x40] sm:$0xff]
        %v340 = vld [vmem:[%s3 + $0x48] sm:$0xff]
        %v341 = vld [vmem:[%s3 + $0x50] sm:$0xff]
        %v342 = vld [vmem:[%s3 + $0x58] sm:$0xff]
        %v343 = vld [vmem:[%s3 + $0x60] sm:$0xff]
        %v344 = vld [vmem:[%s3 + $0x68] sm:$0xff]
        %v345 = vld [vmem:[%s3 + $0x70] sm:$0xff]
        %v346 = vld [vmem:[%s3 + $0x78] sm:$0xff]
        %348 = vset.pattern.permute.xlu0 0
        %349 = vperm.xlu0 %348, %v290
        %v350 = vpop.permute.xlu0 %349
        %353 = vset.pattern.permute.xlu0 0
        %354 = vperm.xlu0 %353, %v291
        %v355 = vpop.permute.xlu0 %354
        %358 = vset.pattern.permute.xlu0 0
        %359 = vperm.xlu0 %358, %v292
        %v360 = vpop.permute.xlu0 %359
        %363 = vset.pattern.permute.xlu0 0
        %364 = vperm.xlu0 %363, %v293
        %v365 = vpop.permute.xlu0 %364
        %368 = vset.pattern.permute.xlu0 0
        %369 = vperm.xlu0 %368, %v294
        %v370 = vpop.permute.xlu0 %369
        %373 = vset.pattern.permute.xlu0 0
        %374 = vperm.xlu0 %373, %v295
        %v375 = vpop.permute.xlu0 %374
        %378 = vset.pattern.permute.xlu0 0
        %379 = vperm.xlu0 %378, %v296
        %v380 = vpop.permute.xlu0 %379
        %383 = vset.pattern.permute.xlu0 0
        %384 = vperm.xlu0 %383, %v297
        %v385 = vpop.permute.xlu0 %384
        %388 = vset.pattern.permute.xlu0 0
        %389 = vperm.xlu0 %388, %v298
        %v390 = vpop.permute.xlu0 %389
        %393 = vset.pattern.permute.xlu0 0
        %394 = vperm.xlu0 %393, %v299
        %v395 = vpop.permute.xlu0 %394
        %398 = vset.pattern.permute.xlu0 0
        %399 = vperm.xlu0 %398, %v300
        %v400 = vpop.permute.xlu0 %399
        %403 = vset.pattern.permute.xlu0 0
        %404 = vperm.xlu0 %403, %v301
        %v405 = vpop.permute.xlu0 %404
        %408 = vset.pattern.permute.xlu0 0
        %409 = vperm.xlu0 %408, %v302
        %v410 = vpop.permute.xlu0 %409
        %413 = vset.pattern.permute.xlu0 0
        %414 = vperm.xlu0 %413, %v303
        %v415 = vpop.permute.xlu0 %414
        %418 = vset.pattern.permute.xlu0 0
        %419 = vperm.xlu0 %418, %v304
        %v420 = vpop.permute.xlu0 %419
        %423 = vset.pattern.permute.xlu0 0
        %424 = vperm.xlu0 %423, %v305
        %v425 = vpop.permute.xlu0 %424
        %vm427 = vcmask 261120
        %v429 = vsel %vm427, %v331, 0
        %v432 = vsel %vm427, %v332, 0
        %v435 = vsel %vm427, %v333, 0
        %v438 = vsel %vm427, %v334, 0
        %v441 = vsel %vm427, %v335, 0
        %v444 = vsel %vm427, %v336, 0
        %v447 = vsel %vm427, %v337, 0
        %v450 = vsel %vm427, %v338, 0
        %v453 = vsel %vm427, %v339, 0
        %v456 = vsel %vm427, %v340, 0
        %v459 = vsel %vm427, %v341, 0
        %v462 = vsel %vm427, %v342, 0
        %v465 = vsel %vm427, %v343, 0
        %v468 = vsel %vm427, %v344, 0
        %v471 = vsel %vm427, %v345, 0
        %v474 = vsel %vm427, %v346, 0
        %476 = vmatprep.subr.mxu0 %v323
        %477 = vmatpush1.msra.mxu0 %v322
        %478 = vmatprep.subr.mxu0 %v325
        %479 = vmatpush1.msra.mxu0 %v324
        %480 = vmatprep.subr.mxu0 %v327
        %481 = vmatpush1.msra.mxu0 %v326
        %482 = vmatprep.subr.mxu0 %v329
        %483 = vmatpush1.msra.mxu0 %v328
        %484 = vmatprep.subr.mxu0 0.0
        %485 = vmatpush1.msra.mxu0 0.0
        %486 = vmatprep.subr.mxu0 0.0
        %487 = vmatpush1.msra.mxu0 0.0
        %488 = vmatprep.subr.mxu0 0.0
        %489 = vmatpush1.msra.mxu0 0.0
        %490 = vmatprep.subr.mxu0 0.0
        %491 = vmatpush1.msra.mxu0 0.0
        %492 = vmatprep.subr.mxu0 0.0
        %493 = vmatpush1.msra.mxu0 0.0
        %494 = vmatprep.subr.mxu0 0.0
        %495 = vmatpush1.msra.mxu0 0.0
        %496 = vmatprep.subr.mxu0 0.0
        %497 = vmatpush1.msra.mxu0 0.0
        %498 = vmatprep.subr.mxu0 0.0
        %499 = vmatpush1.msra.mxu0 0.0
        %500 = vmatprep.subr.mxu0 0.0
        %501 = vmatpush1.msra.mxu0 0.0
        %502 = vmatprep.subr.mxu0 0.0
        %503 = vmatpush1.msra.mxu0 0.0
        %504 = vmatprep.subr.mxu0 0.0
        %505 = vmatpush1.msra.mxu0 0.0
        %506 = vmatprep.subr.mxu0 0.0
        %507 = vmatpush1.msra.mxu0 0.0
        %508 = vmatprep.subr.mxu0 0.0
        %509 = vmatpush1.msra.mxu0 0.0
        %510 = vmatprep.subr.mxu0 0.0
        %511 = vmatpush1.msra.mxu0 0.0
        %512 = vmatprep.subr.mxu0 0.0
        %513 = vmatpush1.msra.mxu0 0.0
        %514 = vmatprep.subr.mxu0 0.0
        %515 = vmatpush1.msra.mxu0 0.0
        %516 = vmatprep.subr.mxu0 0.0
        %517 = vmatpush1.msra.mxu0 0.0
        %518 = vmatprep.subr.mxu0 0.0
        %519 = vmatpush1.msra.mxu0 0.0
        %520 = vmatprep.subr.mxu0 0.0
        %521 = vmatpush1.msra.mxu0 0.0
        %522 = vmatprep.subr.mxu0 0.0
        %523 = vmatpush1.msra.mxu0 0.0
        %524 = vmatprep.subr.mxu0 0.0
        %525 = vmatpush1.msra.mxu0 0.0
        %526 = vmatprep.subr.mxu0 0.0
        %527 = vmatpush1.msra.mxu0 0.0
        %528 = vmatprep.subr.mxu0 0.0
        %529 = vmatpush1.msra.mxu0 0.0
        %530 = vmatprep.subr.mxu0 0.0
        %531 = vmatpush1.msra.mxu0 0.0
        %532 = vmatprep.subr.mxu0 0.0
        %533 = vmatpush1.msra.mxu0 0.0
        %534 = vmatprep.subr.mxu0 0.0
        %535 = vmatpush1.msra.mxu0 0.0
        %536 = vmatprep.subr.mxu0 0.0
        %537 = vmatpush1.msra.mxu0 0.0
        %538 = vmatprep.subr.mxu0 0.0
        %539 = vmatpush1.msra.mxu0 0.0
        %540 = vmatprep.mubr.f32.mxu0 0.0
        %541 = vmatmul.mubr.f32.gmra.mrb[0].mxu0 %v429
        %v542 = vpop.f32.mrb[0].mxu0
        %v543 = vadd.f32 %v350, %v542
        %v544 = vpop.f32.mrb[0].mxu0
        %v545 = vadd.f32 %v350, %v544
        %546 = vmatprep.mubr.f32.mxu0 0.0
        %547 = vmatmul.mubr.f32.gmra.mrb[0].mxu0 %v432
        %v548 = vpop.f32.mrb[0].mxu0
        %v549 = vadd.f32 %v355, %v548
        %v550 = vpop.f32.mrb[0].mxu0
        %v551 = vadd.f32 %v355, %v550
        %552 = vmatprep.mubr.f32.mxu0 0.0
        %553 = vmatmul.mubr.f32.gmra.mrb[0].mxu0 %v435
        %v554 = vpop.f32.mrb[0].mxu0
        %v555 = vadd.f32 %v360, %v554
        %v556 = vpop.f32.mrb[0].mxu0
        %v557 = vadd.f32 %v360, %v556
        %558 = vmatprep.mubr.f32.mxu0 0.0
        %559 = vmatmul.mubr.f32.gmra.mrb[0].mxu0 %v438
        %v560 = vpop.f32.mrb[0].mxu0
        %v561 = vadd.f32 %v365, %v560
        %v562 = vpop.f32.mrb[0].mxu0
        %v563 = vadd.f32 %v365, %v562
        %564 = vmatprep.mubr.f32.mxu0 0.0
        %565 = vmatmul.mubr.f32.gmra.mrb[0].mxu0 %v441
        %v566 = vpop.f32.mrb[0].mxu0
        %v567 = vadd.f32 %v370, %v566
        %v568 = vpop.f32.mrb[0].mxu0
        %v569 = vadd.f32 %v370, %v568
        %570 = vmatprep.mubr.f32.mxu0 0.0
        %571 = vmatmul.mubr.f32.gmra.mrb[0].mxu0 %v444
        %v572 = vpop.f32.mrb[0].mxu0
        %v573 = vadd.f32 %v375, %v572
        %v574 = vpop.f32.mrb[0].mxu0
        %v575 = vadd.f32 %v375, %v574
        %576 = vmatprep.mubr.f32.mxu0 0.0
        %577 = vmatmul.mubr.f32.gmra.mrb[0].mxu0 %v447
        %v578 = vpop.f32.mrb[0].mxu0
        %v579 = vadd.f32 %v380, %v578
        %v580 = vpop.f32.mrb[0].mxu0
        %v581 = vadd.f32 %v380, %v580
        %582 = vmatprep.mubr.f32.mxu0 0.0
        %583 = vmatmul.mubr.f32.gmra.mrb[0].mxu0 %v450
        %v584 = vpop.f32.mrb[0].mxu0
        %v585 = vadd.f32 %v385, %v584
        %v586 = vpop.f32.mrb[0].mxu0
        %v587 = vadd.f32 %v385, %v586
        %588 = vmatprep.mubr.f32.mxu0 0.0
        %589 = vmatmul.mubr.f32.gmra.mrb[0].mxu0 %v453
        %v590 = vpop.f32.mrb[0].mxu0
        %v591 = vadd.f32 %v390, %v590
        %v592 = vpop.f32.mrb[0].mxu0
        %v593 = vadd.f32 %v390, %v592
        %594 = vmatprep.mubr.f32.mxu0 0.0
        %595 = vmatmul.mubr.f32.gmra.mrb[0].mxu0 %v456
        %v596 = vpop.f32.mrb[0].mxu0
        %v597 = vadd.f32 %v395, %v596
        %v598 = vpop.f32.mrb[0].mxu0
        %v599 = vadd.f32 %v395, %v598
        %600 = vmatprep.mubr.f32.mxu0 0.0
        %601 = vmatmul.mubr.f32.gmra.mrb[0].mxu0 %v459
        %v602 = vpop.f32.mrb[0].mxu0
        %v603 = vadd.f32 %v400, %v602
        %v604 = vpop.f32.mrb[0].mxu0
        %v605 = vadd.f32 %v400, %v604
        %606 = vmatprep.mubr.f32.mxu0 0.0
        %607 = vmatmul.mubr.f32.gmra.mrb[0].mxu0 %v462
        %v608 = vpop.f32.mrb[0].mxu0
        %v609 = vadd.f32 %v405, %v608
        %v610 = vpop.f32.mrb[0].mxu0
        %v611 = vadd.f32 %v405, %v610
        %612 = vmatprep.mubr.f32.mxu0 0.0
        %613 = vmatmul.mubr.f32.gmra.mrb[0].mxu0 %v465
        %v614 = vpop.f32.mrb[0].mxu0
        %v615 = vadd.f32 %v410, %v614
        %v616 = vpop.f32.mrb[0].mxu0
        %v617 = vadd.f32 %v410, %v616
        %618 = vmatprep.mubr.f32.mxu0 0.0
        %619 = vmatmul.mubr.f32.gmra.mrb[0].mxu0 %v468
        %v620 = vpop.f32.mrb[0].mxu0
        %v621 = vadd.f32 %v415, %v620
        %v622 = vpop.f32.mrb[0].mxu0
        %v623 = vadd.f32 %v415, %v622
        %624 = vmatprep.mubr.f32.mxu0 0.0
        %625 = vmatmul.mubr.f32.gmra.mrb[0].mxu0 %v471
        %v626 = vpop.f32.mrb[0].mxu0
        %v627 = vadd.f32 %v420, %v626
        %v628 = vpop.f32.mrb[0].mxu0
        %v629 = vadd.f32 %v420, %v628
        %630 = vmatprep.mubr.f32.mxu0 0.0
        %631 = vmatmul.mubr.f32.gmra.mrb[0].mxu0 %v474
        %v632 = vpop.f32.mrb[0].mxu0
        %v633 = vadd.f32 %v425, %v632
        %v634 = vpop.f32.mrb[0].mxu0
        %v635 = vadd.f32 %v425, %v634
        %636 = vdwg.mxu0
        %v637 = vmax.f32 %v543, 0.0
        %v638 = vmax.f32 %v545, 0.0
        %v639 = vmax.f32 %v549, 0.0
        %v640 = vmax.f32 %v551, 0.0
        %v641 = vmax.f32 %v555, 0.0
        %v642 = vmax.f32 %v557, 0.0
        %v643 = vmax.f32 %v561, 0.0
        %v644 = vmax.f32 %v563, 0.0
        %v645 = vmax.f32 %v567, 0.0
        %v646 = vmax.f32 %v569, 0.0
        %v647 = vmax.f32 %v573, 0.0
        %v648 = vmax.f32 %v575, 0.0
        %v649 = vmax.f32 %v579, 0.0
        %v650 = vmax.f32 %v581, 0.0
        %v651 = vmax.f32 %v585, 0.0
        %v652 = vmax.f32 %v587, 0.0
        %v653 = vmax.f32 %v591, 0.0
        %v654 = vmax.f32 %v593, 0.0
        %v655 = vmax.f32 %v597, 0.0
        %v656 = vmax.f32 %v599, 0.0
        %v657 = vmax.f32 %v603, 0.0
        %v658 = vmax.f32 %v605, 0.0
        %v659 = vmax.f32 %v609, 0.0
        %v660 = vmax.f32 %v611, 0.0
        %v661 = vmax.f32 %v615, 0.0
        %v662 = vmax.f32 %v617, 0.0
        %v663 = vmax.f32 %v621, 0.0
        %v664 = vmax.f32 %v623, 0.0
        %v665 = vmax.f32 %v627, 0.0
        %v666 = vmax.f32 %v629, 0.0
        %v667 = vmax.f32 %v633, 0.0
        %v668 = vmax.f32 %v635, 0.0
        %670 = vset.pattern.permute.xlu0 0
        %671 = vperm.xlu0 %670, %v306
        %v672 = vpop.permute.xlu0 %671
        %675 = vset.pattern.permute.xlu0 0
        %676 = vperm.xlu0 %675, %v307
        %v677 = vpop.permute.xlu0 %676
        %680 = vset.pattern.permute.xlu0 0
        %681 = vperm.xlu0 %680, %v308
        %v682 = vpop.permute.xlu0 %681
        %685 = vset.pattern.permute.xlu0 0
        %686 = vperm.xlu0 %685, %v309
        %v687 = vpop.permute.xlu0 %686
        %690 = vset.pattern.permute.xlu0 0
        %691 = vperm.xlu0 %690, %v310
        %v692 = vpop.permute.xlu0 %691
        %695 = vset.pattern.permute.xlu0 0
        %696 = vperm.xlu0 %695, %v311
        %v697 = vpop.permute.xlu0 %696
        %700 = vset.pattern.permute.xlu0 0
        %701 = vperm.xlu0 %700, %v312
        %v702 = vpop.permute.xlu0 %701
        %705 = vset.pattern.permute.xlu0 0
        %706 = vperm.xlu0 %705, %v313
        %v707 = vpop.permute.xlu0 %706
        %710 = vset.pattern.permute.xlu0 0
        %711 = vperm.xlu0 %710, %v314
        %v712 = vpop.permute.xlu0 %711
        %715 = vset.pattern.permute.xlu0 0
        %716 = vperm.xlu0 %715, %v315
        %v717 = vpop.permute.xlu0 %716
        %720 = vset.pattern.permute.xlu0 0
        %721 = vperm.xlu0 %720, %v316
        %v722 = vpop.permute.xlu0 %721
        %725 = vset.pattern.permute.xlu0 0
        %726 = vperm.xlu0 %725, %v317
        %v727 = vpop.permute.xlu0 %726
        %730 = vset.pattern.permute.xlu0 0
        %731 = vperm.xlu0 %730, %v318
        %v732 = vpop.permute.xlu0 %731
        %735 = vset.pattern.permute.xlu0 0
        %736 = vperm.xlu0 %735, %v319
        %v737 = vpop.permute.xlu0 %736
        %740 = vset.pattern.permute.xlu0 0
        %741 = vperm.xlu0 %740, %v320
        %v742 = vpop.permute.xlu0 %741
        %745 = vset.pattern.permute.xlu0 0
        %746 = vperm.xlu0 %745, %v321
        %v747 = vpop.permute.xlu0 %746
        %749 = vmatprep.subr.mxu0 %v638
        %750 = vmatpush1.msra.mxu0 %v637
        %751 = vmatprep.subr.mxu0 %v640
        %752 = vmatpush1.msra.mxu0 %v639
        %753 = vmatprep.subr.mxu0 %v642
        %754 = vmatpush1.msra.mxu0 %v641
        %755 = vmatprep.subr.mxu0 %v644
        %756 = vmatpush1.msra.mxu0 %v643
        %757 = vmatprep.subr.mxu0 %v646
        %758 = vmatpush1.msra.mxu0 %v645
        %759 = vmatprep.subr.mxu0 %v648
        %760 = vmatpush1.msra.mxu0 %v647
        %761 = vmatprep.subr.mxu0 %v650
        %762 = vmatpush1.msra.mxu0 %v649
        %763 = vmatprep.subr.mxu0 %v652
        %764 = vmatpush1.msra.mxu0 %v651
        %765 = vmatprep.subr.mxu0 %v654
        %766 = vmatpush1.msra.mxu0 %v653
        %767 = vmatprep.subr.mxu0 %v656
        %768 = vmatpush1.msra.mxu0 %v655
        %769 = vmatprep.subr.mxu0 %v658
        %770 = vmatpush1.msra.mxu0 %v657
        %771 = vmatprep.subr.mxu0 %v660
        %772 = vmatpush1.msra.mxu0 %v659
        %773 = vmatprep.subr.mxu0 %v662
        %774 = vmatpush1.msra.mxu0 %v661
        %775 = vmatprep.subr.mxu0 %v664
        %776 = vmatpush1.msra.mxu0 %v663
        %777 = vmatprep.subr.mxu0 %v666
        %778 = vmatpush1.msra.mxu0 %v665
        %779 = vmatprep.subr.mxu0 %v668
        %780 = vmatpush1.msra.mxu0 %v667
        %781 = vmatprep.subr.mxu0 0.0
        %782 = vmatpush1.msra.mxu0 0.0
        %783 = vmatprep.subr.mxu0 0.0
        %784 = vmatpush1.msra.mxu0 0.0
        %785 = vmatprep.subr.mxu0 0.0
        %786 = vmatpush1.msra.mxu0 0.0
        %787 = vmatprep.subr.mxu0 0.0
        %788 = vmatpush1.msra.mxu0 0.0
        %789 = vmatprep.subr.mxu0 0.0
        %790 = vmatpush1.msra.mxu0 0.0
        %791 = vmatprep.subr.mxu0 0.0
        %792 = vmatpush1.msra.mxu0 0.0
        %793 = vmatprep.subr.mxu0 0.0
        %794 = vmatpush1.msra.mxu0 0.0
        %795 = vmatprep.subr.mxu0 0.0
        %796 = vmatpush1.msra.mxu0 0.0
        %797 = vmatprep.subr.mxu0 0.0
        %798 = vmatpush1.msra.mxu0 0.0
        %799 = vmatprep.subr.mxu0 0.0
        %800 = vmatpush1.msra.mxu0 0.0
        %801 = vmatprep.subr.mxu0 0.0
        %802 = vmatpush1.msra.mxu0 0.0
        %803 = vmatprep.subr.mxu0 0.0
        %804 = vmatpush1.msra.mxu0 0.0
        %805 = vmatprep.subr.mxu0 0.0
        %806 = vmatpush1.msra.mxu0 0.0
        %807 = vmatprep.subr.mxu0 0.0
        %808 = vmatpush1.msra.mxu0 0.0
        %809 = vmatprep.subr.mxu0 0.0
        %810 = vmatpush1.msra.mxu0 0.0
        %811 = vmatprep.subr.mxu0 0.0
        %812 = vmatpush1.msra.mxu0 0.0
        %813 = vmatprep.mubr.f32.mxu0 0.0
        %814 = vmatmul.mubr.f32.gmra.mrb[0].mxu0 %v274
        %v815 = vpop.f32.mrb[0].mxu0
        %v816 = vadd.f32 %v672, %v815
        %v817 = vpop.f32.mrb[0].mxu0
        %v818 = vadd.f32 %v672, %v817
        %819 = vmatprep.mubr.f32.mxu0 0.0
        %820 = vmatmul.mubr.f32.gmra.mrb[0].mxu0 %v275
        %v821 = vpop.f32.mrb[0].mxu0
        %v822 = vadd.f32 %v677, %v821
        %v823 = vpop.f32.mrb[0].mxu0
        %v824 = vadd.f32 %v677, %v823
        %825 = vmatprep.mubr.f32.mxu0 0.0
        %826 = vmatmul.mubr.f32.gmra.mrb[0].mxu0 %v276
        %v827 = vpop.f32.mrb[0].mxu0
        %v828 = vadd.f32 %v682, %v827
        %v829 = vpop.f32.mrb[0].mxu0
        %v830 = vadd.f32 %v682, %v829
        %831 = vmatprep.mubr.f32.mxu0 0.0
        %832 = vmatmul.mubr.f32.gmra.mrb[0].mxu0 %v277
        %v833 = vpop.f32.mrb[0].mxu0
        %v834 = vadd.f32 %v687, %v833
        %v835 = vpop.f32.mrb[0].mxu0
        %v836 = vadd.f32 %v687, %v835
        %837 = vmatprep.mubr.f32.mxu0 0.0
        %838 = vmatmul.mubr.f32.gmra.mrb[0].mxu0 %v278
        %v839 = vpop.f32.mrb[0].mxu0
        %v840 = vadd.f32 %v692, %v839
        %v841 = vpop.f32.mrb[0].mxu0
        %v842 = vadd.f32 %v692, %v841
        %843 = vmatprep.mubr.f32.mxu0 0.0
        %844 = vmatmul.mubr.f32.gmra.mrb[0].mxu0 %v279
        %v845 = vpop.f32.mrb[0].mxu0
        %v846 = vadd.f32 %v697, %v845
        %v847 = vpop.f32.mrb[0].mxu0
        %v848 = vadd.f32 %v697, %v847
        %849 = vmatprep.mubr.f32.mxu0 0.0
        %850 = vmatmul.mubr.f32.gmra.mrb[0].mxu0 %v280
        %v851 = vpop.f32.mrb[0].mxu0
        %v852 = vadd.f32 %v702, %v851
        %v853 = vpop.f32.mrb[0].mxu0
        %v854 = vadd.f32 %v702, %v853
        %855 = vmatprep.mubr.f32.mxu0 0.0
        %856 = vmatmul.mubr.f32.gmra.mrb[0].mxu0 %v281
        %v857 = vpop.f32.mrb[0].mxu0
        %v858 = vadd.f32 %v707, %v857
        %v859 = vpop.f32.mrb[0].mxu0
        %v860 = vadd.f32 %v707, %v859
        %861 = vmatprep.mubr.f32.mxu0 0.0
        %862 = vmatmul.mubr.f32.gmra.mrb[0].mxu0 %v282
        %v863 = vpop.f32.mrb[0].mxu0
        %v864 = vadd.f32 %v712, %v863
        %v865 = vpop.f32.mrb[0].mxu0
        %v866 = vadd.f32 %v712, %v865
        %867 = vmatprep.mubr.f32.mxu0 0.0
        %868 = vmatmul.mubr.f32.gmra.mrb[0].mxu0 %v283
        %v869 = vpop.f32.mrb[0].mxu0
        %v870 = vadd.f32 %v717, %v869
        %v871 = vpop.f32.mrb[0].mxu0
        %v872 = vadd.f32 %v717, %v871
        %873 = vmatprep.mubr.f32.mxu0 0.0
        %874 = vmatmul.mubr.f32.gmra.mrb[0].mxu0 %v284
        %v875 = vpop.f32.mrb[0].mxu0
        %v876 = vadd.f32 %v722, %v875
        %v877 = vpop.f32.mrb[0].mxu0
        %v878 = vadd.f32 %v722, %v877
        %879 = vmatprep.mubr.f32.mxu0 0.0
        %880 = vmatmul.mubr.f32.gmra.mrb[0].mxu0 %v285
        %v881 = vpop.f32.mrb[0].mxu0
        %v882 = vadd.f32 %v727, %v881
        %v883 = vpop.f32.mrb[0].mxu0
        %v884 = vadd.f32 %v727, %v883
        %885 = vmatprep.mubr.f32.mxu0 0.0
        %886 = vmatmul.mubr.f32.gmra.mrb[0].mxu0 %v286
        %v887 = vpop.f32.mrb[0].mxu0
        %v888 = vadd.f32 %v732, %v887
        %v889 = vpop.f32.mrb[0].mxu0
        %v890 = vadd.f32 %v732, %v889
        %891 = vmatprep.mubr.f32.mxu0 0.0
        %892 = vmatmul.mubr.f32.gmra.mrb[0].mxu0 %v287
        %v893 = vpop.f32.mrb[0].mxu0
        %v894 = vadd.f32 %v737, %v893
        %v895 = vpop.f32.mrb[0].mxu0
        %v896 = vadd.f32 %v737, %v895
        %897 = vmatprep.mubr.f32.mxu0 0.0
        %898 = vmatmul.mubr.f32.gmra.mrb[0].mxu0 %v288
        %v899 = vpop.f32.mrb[0].mxu0
        %v900 = vadd.f32 %v742, %v899
        %v901 = vpop.f32.mrb[0].mxu0
        %v902 = vadd.f32 %v742, %v901
        %903 = vmatprep.mubr.f32.mxu0 0.0
        %904 = vmatmul.mubr.f32.gmra.mrb[0].mxu0 %v289
        %v905 = vpop.f32.mrb[0].mxu0
        %v906 = vadd.f32 %v747, %v905
        %v907 = vpop.f32.mrb[0].mxu0
        %v908 = vadd.f32 %v747, %v907
        %909 = vdwg.mxu0
        %s910 = sld [smem:[#allocation3]]
        %v911 = vstv %s910
        %v912 = vmul.f32 %v330, %v911
        %v914 = vlaneseq
        %v915 = vshrl.u32 %v914, 7
        %v916 = vsub.s32 0, %v915
        %v917 = vrot.slane %v912, %v916
        %v918 = vlaneseq
        %v919 = vshrl.u32 %v918, 7
        %v920 = vsub.s32 1, %v919
        %v921 = vrot.slane %v912, %v920
        %v924 = vadd.f32 %v816, %v917
        %v925 = vadd.f32 %v818, %v921
        %v926 = vadd.f32 %v822, %v917
        %v927 = vadd.f32 %v824, %v921
        %v928 = vadd.f32 %v828, %v917
        %v929 = vadd.f32 %v830, %v921
        %v930 = vadd.f32 %v834, %v917
        %v931 = vadd.f32 %v836, %v921
        %v932 = vadd.f32 %v840, %v917
        %v933 = vadd.f32 %v842, %v921
        %v934 = vadd.f32 %v846, %v917
        %v935 = vadd.f32 %v848, %v921
        %v936 = vadd.f32 %v852, %v917
        %v937 = vadd.f32 %v854, %v921
        %v938 = vadd.f32 %v858, %v917
        %v939 = vadd.f32 %v860, %v921
        %v940 = vadd.f32 %v864, %v917
        %v941 = vadd.f32 %v866, %v921
        %v942 = vadd.f32 %v870, %v917
        %v943 = vadd.f32 %v872, %v921
        %v944 = vadd.f32 %v876, %v917
        %v945 = vadd.f32 %v878, %v921
        %v946 = vadd.f32 %v882, %v917
        %v947 = vadd.f32 %v884, %v921
        %v948 = vadd.f32 %v888, %v917
        %v949 = vadd.f32 %v890, %v921
        %v950 = vadd.f32 %v894, %v917
        %v951 = vadd.f32 %v896, %v921
        %v952 = vadd.f32 %v900, %v917
        %v953 = vadd.f32 %v902, %v921
        %v954 = vadd.f32 %v906, %v917
        %v955 = vadd.f32 %v908, %v921
        %956 = vst [vmem:[%s264] sm:$0xff] %v924
        %957 = vst [vmem:[%s264 + $0x8] sm:$0xff] %v925
        %958 = vst [vmem:[%s264 + $0x10] sm:$0xff] %v926
        %959 = vst [vmem:[%s264 + $0x18] sm:$0xff] %v927
        %960 = vst [vmem:[%s264 + $0x20] sm:$0xff] %v928
        %961 = vst [vmem:[%s264 + $0x28] sm:$0xff] %v929
        %962 = vst [vmem:[%s264 + $0x30] sm:$0xff] %v930
        %963 = vst [vmem:[%s264 + $0x38] sm:$0xff] %v931
        %964 = vst [vmem:[%s264 + $0x40] sm:$0xff] %v932
        %965 = vst [vmem:[%s264 + $0x48] sm:$0xff] %v933
        %966 = vst [vmem:[%s264 + $0x50] sm:$0xff] %v934
        %967 = vst [vmem:[%s264 + $0x58] sm:$0xff] %v935
        %968 = vst [vmem:[%s264 + $0x60] sm:$0xff] %v936
        %969 = vst [vmem:[%s264 + $0x68] sm:$0xff] %v937
        %970 = vst [vmem:[%s264 + $0x70] sm:$0xff] %v938
        %971 = vst [vmem:[%s264 + $0x78] sm:$0xff] %v939
        %972 = vst [vmem:[%s264 + $0x80] sm:$0xff] %v940
        %973 = vst [vmem:[%s264 + $0x88] sm:$0xff] %v941
        %974 = vst [vmem:[%s264 + $0x90] sm:$0xff] %v942
        %975 = vst [vmem:[%s264 + $0x98] sm:$0xff] %v943
        %976 = vst [vmem:[%s264 + $0xa0] sm:$0xff] %v944
        %977 = vst [vmem:[%s264 + $0xa8] sm:$0xff] %v945
        %978 = vst [vmem:[%s264 + $0xb0] sm:$0xff] %v946
        %979 = vst [vmem:[%s264 + $0xb8] sm:$0xff] %v947
        %980 = vst [vmem:[%s264 + $0xc0] sm:$0xff] %v948
        %981 = vst [vmem:[%s264 + $0xc8] sm:$0xff] %v949
        %982 = vst [vmem:[%s264 + $0xd0] sm:$0xff] %v950
        %983 = vst [vmem:[%s264 + $0xd8] sm:$0xff] %v951
        %984 = vst [vmem:[%s264 + $0xe0] sm:$0xff] %v952
        %985 = vst [vmem:[%s264 + $0xe8] sm:$0xff] %v953
        %986 = vst [vmem:[%s264 + $0xf0] sm:$0xff] %v954
        %987 = vst [vmem:[%s264 + $0xf8] sm:$0xff] %v955
        %v988 = vld [vmem:[%s3 + $0x80] sm:$0xff]
        %v989 = vld [vmem:[%s3 + $0x88] sm:$0xff]
        %v990 = vld [vmem:[%s3 + $0x90] sm:$0xff]
        %v991 = vld [vmem:[%s3 + $0x98] sm:$0xff]
        %v992 = vld [vmem:[%s3 + $0xa0] sm:$0xff]
        %v993 = vld [vmem:[%s3 + $0xa8] sm:$0xff]
        %v994 = vld [vmem:[%s3 + $0xb0] sm:$0xff]
        %v995 = vld [vmem:[%s3 + $0xb8] sm:$0xff]
        %v996 = vld [vmem:[%s3 + $0xc0] sm:$0xff]
        %v997 = vld [vmem:[%s3 + $0xc8] sm:$0xff]
        %v998 = vld [vmem:[%s3 + $0xd0] sm:$0xff]
        %v999 = vld [vmem:[%s3 + $0xd8] sm:$0xff]
        %v1000 = vld [vmem:[%s3 + $0xe0] sm:$0xff]
        %v1001 = vld [vmem:[%s3 + $0xe8] sm:$0xff]
        %v1002 = vld [vmem:[%s3 + $0xf0] sm:$0xff]
        %v1003 = vld [vmem:[%s3 + $0xf8] sm:$0xff]
        %v1005 = vsel %vm427, %v988, 0
        %v1008 = vsel %vm427, %v989, 0
        %v1011 = vsel %vm427, %v990, 0
        %v1014 = vsel %vm427, %v991, 0
        %v1017 = vsel %vm427, %v992, 0
        %v1020 = vsel %vm427, %v993, 0
        %v1023 = vsel %vm427, %v994, 0
        %v1026 = vsel %vm427, %v995, 0
        %v1029 = vsel %vm427, %v996, 0
        %v1032 = vsel %vm427, %v997, 0
        %v1035 = vsel %vm427, %v998, 0
        %v1038 = vsel %vm427, %v999, 0
        %v1041 = vsel %vm427, %v1000, 0
        %v1044 = vsel %vm427, %v1001, 0
        %v1047 = vsel %vm427, %v1002, 0
        %v1050 = vsel %vm427, %v1003, 0
        %1052 = vmatprep.subr.mxu0 %v323
        %1053 = vmatpush1.msra.mxu0 %v322
        %1054 = vmatprep.subr.mxu0 %v325
        %1055 = vmatpush1.msra.mxu0 %v324
        %1056 = vmatprep.subr.mxu0 %v327
        %1057 = vmatpush1.msra.mxu0 %v326
        %1058 = vmatprep.subr.mxu0 %v329
        %1059 = vmatpush1.msra.mxu0 %v328
        %1060 = vmatprep.subr.mxu0 0.0
        %1061 = vmatpush1.msra.mxu0 0.0
        %1062 = vmatprep.subr.mxu0 0.0
        %1063 = vmatpush1.msra.mxu0 0.0
        %1064 = vmatprep.subr.mxu0 0.0
        %1065 = vmatpush1.msra.mxu0 0.0
        %1066 = vmatprep.subr.mxu0 0.0
        %1067 = vmatpush1.msra.mxu0 0.0
        %1068 = vmatprep.subr.mxu0 0.0
        %1069 = vmatpush1.msra.mxu0 0.0
        %1070 = vmatprep.subr.mxu0 0.0
        %1071 = vmatpush1.msra.mxu0 0.0
        %1072 = vmatprep.subr.mxu0 0.0
        %1073 = vmatpush1.msra.mxu0 0.0
        %1074 = vmatprep.subr.mxu0 0.0
        %1075 = vmatpush1.msra.mxu0 0.0
        %1076 = vmatprep.subr.mxu0 0.0
        %1077 = vmatpush1.msra.mxu0 0.0
        %1078 = vmatprep.subr.mxu0 0.0
        %1079 = vmatpush1.msra.mxu0 0.0
        %1080 = vmatprep.subr.mxu0 0.0
        %1081 = vmatpush1.msra.mxu0 0.0
        %1082 = vmatprep.subr.mxu0 0.0
        %1083 = vmatpush1.msra.mxu0 0.0
        %1084 = vmatprep.subr.mxu0 0.0
        %1085 = vmatpush1.msra.mxu0 0.0
        %1086 = vmatprep.subr.mxu0 0.0
        %1087 = vmatpush1.msra.mxu0 0.0
        %1088 = vmatprep.subr.mxu0 0.0
        %1089 = vmatpush1.msra.mxu0 0.0
        %1090 = vmatprep.subr.mxu0 0.0
        %1091 = vmatpush1.msra.mxu0 0.0
        %1092 = vmatprep.subr.mxu0 0.0
        %1093 = vmatpush1.msra.mxu0 0.0
        %1094 = vmatprep.subr.mxu0 0.0
        %1095 = vmatpush1.msra.mxu0 0.0
        %1096 = vmatprep.subr.mxu0 0.0
        %1097 = vmatpush1.msra.mxu0 0.0
        %1098 = vmatprep.subr.mxu0 0.0
        %1099 = vmatpush1.msra.mxu0 0.0
        %1100 = vmatprep.subr.mxu0 0.0
        %1101 = vmatpush1.msra.mxu0 0.0
        %1102 = vmatprep.subr.mxu0 0.0
        %1103 = vmatpush1.msra.mxu0 0.0
        %1104 = vmatprep.subr.mxu0 0.0
        %1105 = vmatpush1.msra.mxu0 0.0
        %1106 = vmatprep.subr.mxu0 0.0
        %1107 = vmatpush1.msra.mxu0 0.0
        %1108 = vmatprep.subr.mxu0 0.0
        %1109 = vmatpush1.msra.mxu0 0.0
        %1110 = vmatprep.subr.mxu0 0.0
        %1111 = vmatpush1.msra.mxu0 0.0
        %1112 = vmatprep.subr.mxu0 0.0
        %1113 = vmatpush1.msra.mxu0 0.0
        %1114 = vmatprep.subr.mxu0 0.0
        %1115 = vmatpush1.msra.mxu0 0.0
        %1116 = vmatprep.mubr.f32.mxu0 0.0
        %1117 = vmatmul.mubr.f32.gmra.mrb[0].mxu0 %v1005
        %v1118 = vpop.f32.mrb[0].mxu0
        %v1119 = vadd.f32 %v350, %v1118
        %v1120 = vpop.f32.mrb[0].mxu0
        %v1121 = vadd.f32 %v350, %v1120
        %1122 = vmatprep.mubr.f32.mxu0 0.0
        %1123 = vmatmul.mubr.f32.gmra.mrb[0].mxu0 %v1008
        %v1124 = vpop.f32.mrb[0].mxu0
        %v1125 = vadd.f32 %v355, %v1124
        %v1126 = vpop.f32.mrb[0].mxu0
        %v1127 = vadd.f32 %v355, %v1126
        %1128 = vmatprep.mubr.f32.mxu0 0.0
        %1129 = vmatmul.mubr.f32.gmra.mrb[0].mxu0 %v1011
        %v1130 = vpop.f32.mrb[0].mxu0
        %v1131 = vadd.f32 %v360, %v1130
        %v1132 = vpop.f32.mrb[0].mxu0
        %v1133 = vadd.f32 %v360, %v1132
        %1134 = vmatprep.mubr.f32.mxu0 0.0
        %1135 = vmatmul.mubr.f32.gmra.mrb[0].mxu0 %v1014
        %v1136 = vpop.f32.mrb[0].mxu0
        %v1137 = vadd.f32 %v365, %v1136
        %v1138 = vpop.f32.mrb[0].mxu0
        %v1139 = vadd.f32 %v365, %v1138
        %1140 = vmatprep.mubr.f32.mxu0 0.0
        %1141 = vmatmul.mubr.f32.gmra.mrb[0].mxu0 %v1017
        %v1142 = vpop.f32.mrb[0].mxu0
        %v1143 = vadd.f32 %v370, %v1142
        %v1144 = vpop.f32.mrb[0].mxu0
        %v1145 = vadd.f32 %v370, %v1144
        %1146 = vmatprep.mubr.f32.mxu0 0.0
        %1147 = vmatmul.mubr.f32.gmra.mrb[0].mxu0 %v1020
        %v1148 = vpop.f32.mrb[0].mxu0
        %v1149 = vadd.f32 %v375, %v1148
        %v1150 = vpop.f32.mrb[0].mxu0
        %v1151 = vadd.f32 %v375, %v1150
        %1152 = vmatprep.mubr.f32.mxu0 0.0
        %1153 = vmatmul.mubr.f32.gmra.mrb[0].mxu0 %v1023
        %v1154 = vpop.f32.mrb[0].mxu0
        %v1155 = vadd.f32 %v380, %v1154
        %v1156 = vpop.f32.mrb[0].mxu0
        %v1157 = vadd.f32 %v380, %v1156
        %1158 = vmatprep.mubr.f32.mxu0 0.0
        %1159 = vmatmul.mubr.f32.gmra.mrb[0].mxu0 %v1026
        %v1160 = vpop.f32.mrb[0].mxu0
        %v1161 = vadd.f32 %v385, %v1160
        %v1162 = vpop.f32.mrb[0].mxu0
        %v1163 = vadd.f32 %v385, %v1162
        %1164 = vmatprep.mubr.f32.mxu0 0.0
        %1165 = vmatmul.mubr.f32.gmra.mrb[0].mxu0 %v1029
        %v1166 = vpop.f32.mrb[0].mxu0
        %v1167 = vadd.f32 %v390, %v1166
        %v1168 = vpop.f32.mrb[0].mxu0
        %v1169 = vadd.f32 %v390, %v1168
        %1170 = vmatprep.mubr.f32.mxu0 0.0
        %1171 = vmatmul.mubr.f32.gmra.mrb[0].mxu0 %v1032
        %v1172 = vpop.f32.mrb[0].mxu0
        %v1173 = vadd.f32 %v395, %v1172
        %v1174 = vpop.f32.mrb[0].mxu0
        %v1175 = vadd.f32 %v395, %v1174
        %1176 = vmatprep.mubr.f32.mxu0 0.0
        %1177 = vmatmul.mubr.f32.gmra.mrb[0].mxu0 %v1035
        %v1178 = vpop.f32.mrb[0].mxu0
        %v1179 = vadd.f32 %v400, %v1178
        %v1180 = vpop.f32.mrb[0].mxu0
        %v1181 = vadd.f32 %v400, %v1180
        %1182 = vmatprep.mubr.f32.mxu0 0.0
        %1183 = vmatmul.mubr.f32.gmra.mrb[0].mxu0 %v1038
        %v1184 = vpop.f32.mrb[0].mxu0
        %v1185 = vadd.f32 %v405, %v1184
        %v1186 = vpop.f32.mrb[0].mxu0
        %v1187 = vadd.f32 %v405, %v1186
        %1188 = vmatprep.mubr.f32.mxu0 0.0
        %1189 = vmatmul.mubr.f32.gmra.mrb[0].mxu0 %v1041
        %v1190 = vpop.f32.mrb[0].mxu0
        %v1191 = vadd.f32 %v410, %v1190
        %v1192 = vpop.f32.mrb[0].mxu0
        %v1193 = vadd.f32 %v410, %v1192
        %1194 = vmatprep.mubr.f32.mxu0 0.0
        %1195 = vmatmul.mubr.f32.gmra.mrb[0].mxu0 %v1044
        %v1196 = vpop.f32.mrb[0].mxu0
        %v1197 = vadd.f32 %v415, %v1196
        %v1198 = vpop.f32.mrb[0].mxu0
        %v1199 = vadd.f32 %v415, %v1198
        %1200 = vmatprep.mubr.f32.mxu0 0.0
        %1201 = vmatmul.mubr.f32.gmra.mrb[0].mxu0 %v1047
        %v1202 = vpop.f32.mrb[0].mxu0
        %v1203 = vadd.f32 %v420, %v1202
        %v1204 = vpop.f32.mrb[0].mxu0
        %v1205 = vadd.f32 %v420, %v1204
        %1206 = vmatprep.mubr.f32.mxu0 0.0
        %1207 = vmatmul.mubr.f32.gmra.mrb[0].mxu0 %v1050
        %v1208 = vpop.f32.mrb[0].mxu0
        %v1209 = vadd.f32 %v425, %v1208
        %v1210 = vpop.f32.mrb[0].mxu0
        %v1211 = vadd.f32 %v425, %v1210
        %1212 = vdwg.mxu0
        %v1213 = vmax.f32 %v1119, 0.0
        %v1214 = vmax.f32 %v1121, 0.0
        %v1215 = vmax.f32 %v1125, 0.0
        %v1216 = vmax.f32 %v1127, 0.0
        %v1217 = vmax.f32 %v1131, 0.0
        %v1218 = vmax.f32 %v1133, 0.0
        %v1219 = vmax.f32 %v1137, 0.0
        %v1220 = vmax.f32 %v1139, 0.0
        %v1221 = vmax.f32 %v1143, 0.0
        %v1222 = vmax.f32 %v1145, 0.0
        %v1223 = vmax.f32 %v1149, 0.0
        %v1224 = vmax.f32 %v1151, 0.0
        %v1225 = vmax.f32 %v1155, 0.0
        %v1226 = vmax.f32 %v1157, 0.0
        %v1227 = vmax.f32 %v1161, 0.0
        %v1228 = vmax.f32 %v1163, 0.0
        %v1229 = vmax.f32 %v1167, 0.0
        %v1230 = vmax.f32 %v1169, 0.0
        %v1231 = vmax.f32 %v1173, 0.0
        %v1232 = vmax.f32 %v1175, 0.0
        %v1233 = vmax.f32 %v1179, 0.0
        %v1234 = vmax.f32 %v1181, 0.0
        %v1235 = vmax.f32 %v1185, 0.0
        %v1236 = vmax.f32 %v1187, 0.0
        %v1237 = vmax.f32 %v1191, 0.0
        %v1238 = vmax.f32 %v1193, 0.0
        %v1239 = vmax.f32 %v1197, 0.0
        %v1240 = vmax.f32 %v1199, 0.0
        %v1241 = vmax.f32 %v1203, 0.0
        %v1242 = vmax.f32 %v1205, 0.0
        %v1243 = vmax.f32 %v1209, 0.0
        %v1244 = vmax.f32 %v1211, 0.0
        %1245 = vmatprep.subr.mxu0 %v1214
        %1246 = vmatpush1.msra.mxu0 %v1213
        %1247 = vmatprep.subr.mxu0 %v1216
        %1248 = vmatpush1.msra.mxu0 %v1215
        %1249 = vmatprep.subr.mxu0 %v1218
        %1250 = vmatpush1.msra.mxu0 %v1217
        %1251 = vmatprep.subr.mxu0 %v1220
        %1252 = vmatpush1.msra.mxu0 %v1219
        %1253 = vmatprep.subr.mxu0 %v1222
        %1254 = vmatpush1.msra.mxu0 %v1221
        %1255 = vmatprep.subr.mxu0 %v1224
        %1256 = vmatpush1.msra.mxu0 %v1223
        %1257 = vmatprep.subr.mxu0 %v1226
        %1258 = vmatpush1.msra.mxu0 %v1225
        %1259 = vmatprep.subr.mxu0 %v1228
        %1260 = vmatpush1.msra.mxu0 %v1227
        %1261 = vmatprep.subr.mxu0 %v1230
        %1262 = vmatpush1.msra.mxu0 %v1229
        %1263 = vmatprep.subr.mxu0 %v1232
        %1264 = vmatpush1.msra.mxu0 %v1231
        %1265 = vmatprep.subr.mxu0 %v1234
        %1266 = vmatpush1.msra.mxu0 %v1233
        %1267 = vmatprep.subr.mxu0 %v1236
        %1268 = vmatpush1.msra.mxu0 %v1235
        %1269 = vmatprep.subr.mxu0 %v1238
        %1270 = vmatpush1.msra.mxu0 %v1237
        %1271 = vmatprep.subr.mxu0 %v1240
        %1272 = vmatpush1.msra.mxu0 %v1239
        %1273 = vmatprep.subr.mxu0 %v1242
        %1274 = vmatpush1.msra.mxu0 %v1241
        %1275 = vmatprep.subr.mxu0 %v1244
        %1276 = vmatpush1.msra.mxu0 %v1243
        %1277 = vmatprep.subr.mxu0 0.0
        %1278 = vmatpush1.msra.mxu0 0.0
        %1279 = vmatprep.subr.mxu0 0.0
        %1280 = vmatpush1.msra.mxu0 0.0
        %1281 = vmatprep.subr.mxu0 0.0
        %1282 = vmatpush1.msra.mxu0 0.0
        %1283 = vmatprep.subr.mxu0 0.0
        %1284 = vmatpush1.msra.mxu0 0.0
        %1285 = vmatprep.subr.mxu0 0.0
        %1286 = vmatpush1.msra.mxu0 0.0
        %1287 = vmatprep.subr.mxu0 0.0
        %1288 = vmatpush1.msra.mxu0 0.0
        %1289 = vmatprep.subr.mxu0 0.0
        %1290 = vmatpush1.msra.mxu0 0.0
        %1291 = vmatprep.subr.mxu0 0.0
        %1292 = vmatpush1.msra.mxu0 0.0
        %1293 = vmatprep.subr.mxu0 0.0
        %1294 = vmatpush1.msra.mxu0 0.0
        %1295 = vmatprep.subr.mxu0 0.0
        %1296 = vmatpush1.msra.mxu0 0.0
        %1297 = vmatprep.subr.mxu0 0.0
        %1298 = vmatpush1.msra.mxu0 0.0
        %1299 = vmatprep.subr.mxu0 0.0
        %1300 = vmatpush1.msra.mxu0 0.0
        %1301 = vmatprep.subr.mxu0 0.0
        %1302 = vmatpush1.msra.mxu0 0.0
        %1303 = vmatprep.subr.mxu0 0.0
        %1304 = vmatpush1.msra.mxu0 0.0
        %1305 = vmatprep.subr.mxu0 0.0
        %1306 = vmatpush1.msra.mxu0 0.0
        %1307 = vmatprep.subr.mxu0 0.0
        %1308 = vmatpush1.msra.mxu0 0.0
        %1309 = vmatprep.mubr.f32.mxu0 0.0
        %1310 = vmatmul.mubr.f32.gmra.mrb[0].mxu0 %v274
        %v1311 = vpop.f32.mrb[0].mxu0
        %v1312 = vadd.f32 %v672, %v1311
        %v1313 = vpop.f32.mrb[0].mxu0
        %v1314 = vadd.f32 %v672, %v1313
        %1315 = vmatprep.mubr.f32.mxu0 0.0
        %1316 = vmatmul.mubr.f32.gmra.mrb[0].mxu0 %v275
        %v1317 = vpop.f32.mrb[0].mxu0
        %v1318 = vadd.f32 %v677, %v1317
        %v1319 = vpop.f32.mrb[0].mxu0
        %v1320 = vadd.f32 %v677, %v1319
        %1321 = vmatprep.mubr.f32.mxu0 0.0
        %1322 = vmatmul.mubr.f32.gmra.mrb[0].mxu0 %v276
        %v1323 = vpop.f32.mrb[0].mxu0
        %v1324 = vadd.f32 %v682, %v1323
        %v1325 = vpop.f32.mrb[0].mxu0
        %v1326 = vadd.f32 %v682, %v1325
        %1327 = vmatprep.mubr.f32.mxu0 0.0
        %1328 = vmatmul.mubr.f32.gmra.mrb[0].mxu0 %v277
        %v1329 = vpop.f32.mrb[0].mxu0
        %v1330 = vadd.f32 %v687, %v1329
        %v1331 = vpop.f32.mrb[0].mxu0
        %v1332 = vadd.f32 %v687, %v1331
        %1333 = vmatprep.mubr.f32.mxu0 0.0
        %1334 = vmatmul.mubr.f32.gmra.mrb[0].mxu0 %v278
        %v1335 = vpop.f32.mrb[0].mxu0
        %v1336 = vadd.f32 %v692, %v1335
        %v1337 = vpop.f32.mrb[0].mxu0
        %v1338 = vadd.f32 %v692, %v1337
        %1339 = vmatprep.mubr.f32.mxu0 0.0
        %1340 = vmatmul.mubr.f32.gmra.mrb[0].mxu0 %v279
        %v1341 = vpop.f32.mrb[0].mxu0
        %v1342 = vadd.f32 %v697, %v1341
        %v1343 = vpop.f32.mrb[0].mxu0
        %v1344 = vadd.f32 %v697, %v1343
        %1345 = vmatprep.mubr.f32.mxu0 0.0
        %1346 = vmatmul.mubr.f32.gmra.mrb[0].mxu0 %v280
        %v1347 = vpop.f32.mrb[0].mxu0
        %v1348 = vadd.f32 %v702, %v1347
        %v1349 = vpop.f32.mrb[0].mxu0
        %v1350 = vadd.f32 %v702, %v1349
        %1351 = vmatprep.mubr.f32.mxu0 0.0
        %1352 = vmatmul.mubr.f32.gmra.mrb[0].mxu0 %v281
        %v1353 = vpop.f32.mrb[0].mxu0
        %v1354 = vadd.f32 %v707, %v1353
        %v1355 = vpop.f32.mrb[0].mxu0
        %v1356 = vadd.f32 %v707, %v1355
        %1357 = vmatprep.mubr.f32.mxu0 0.0
        %1358 = vmatmul.mubr.f32.gmra.mrb[0].mxu0 %v282
        %v1359 = vpop.f32.mrb[0].mxu0
        %v1360 = vadd.f32 %v712, %v1359
        %v1361 = vpop.f32.mrb[0].mxu0
        %v1362 = vadd.f32 %v712, %v1361
        %1363 = vmatprep.mubr.f32.mxu0 0.0
        %1364 = vmatmul.mubr.f32.gmra.mrb[0].mxu0 %v283
        %v1365 = vpop.f32.mrb[0].mxu0
        %v1366 = vadd.f32 %v717, %v1365
        %v1367 = vpop.f32.mrb[0].mxu0
        %v1368 = vadd.f32 %v717, %v1367
        %1369 = vmatprep.mubr.f32.mxu0 0.0
        %1370 = vmatmul.mubr.f32.gmra.mrb[0].mxu0 %v284
        %v1371 = vpop.f32.mrb[0].mxu0
        %v1372 = vadd.f32 %v722, %v1371
        %v1373 = vpop.f32.mrb[0].mxu0
        %v1374 = vadd.f32 %v722, %v1373
        %1375 = vmatprep.mubr.f32.mxu0 0.0
        %1376 = vmatmul.mubr.f32.gmra.mrb[0].mxu0 %v285
        %v1377 = vpop.f32.mrb[0].mxu0
        %v1378 = vadd.f32 %v727, %v1377
        %v1379 = vpop.f32.mrb[0].mxu0
        %v1380 = vadd.f32 %v727, %v1379
        %1381 = vmatprep.mubr.f32.mxu0 0.0
        %1382 = vmatmul.mubr.f32.gmra.mrb[0].mxu0 %v286
        %v1383 = vpop.f32.mrb[0].mxu0
        %v1384 = vadd.f32 %v732, %v1383
        %v1385 = vpop.f32.mrb[0].mxu0
        %v1386 = vadd.f32 %v732, %v1385
        %1387 = vmatprep.mubr.f32.mxu0 0.0
        %1388 = vmatmul.mubr.f32.gmra.mrb[0].mxu0 %v287
        %v1389 = vpop.f32.mrb[0].mxu0
        %v1390 = vadd.f32 %v737, %v1389
        %v1391 = vpop.f32.mrb[0].mxu0
        %v1392 = vadd.f32 %v737, %v1391
        %1393 = vmatprep.mubr.f32.mxu0 0.0
        %1394 = vmatmul.mubr.f32.gmra.mrb[0].mxu0 %v288
        %v1395 = vpop.f32.mrb[0].mxu0
        %v1396 = vadd.f32 %v742, %v1395
        %v1397 = vpop.f32.mrb[0].mxu0
        %v1398 = vadd.f32 %v742, %v1397
        %1399 = vmatprep.mubr.f32.mxu0 0.0
        %1400 = vmatmul.mubr.f32.gmra.mrb[0].mxu0 %v289
        %v1401 = vpop.f32.mrb[0].mxu0
        %v1402 = vadd.f32 %v747, %v1401
        %v1403 = vpop.f32.mrb[0].mxu0
        %v1404 = vadd.f32 %v747, %v1403
        %1405 = vdwg.mxu0
        %s1406 = sld [smem:[#allocation3 + $0x1]]
        %v1407 = vstv %s1406
        %v1408 = vmul.f32 %v330, %v1407
        %v1410 = vlaneseq
        %v1411 = vshrl.u32 %v1410, 7
        %v1412 = vsub.s32 0, %v1411
        %v1413 = vrot.slane %v1408, %v1412
        %v1414 = vlaneseq
        %v1415 = vshrl.u32 %v1414, 7
        %v1416 = vsub.s32 1, %v1415
        %v1417 = vrot.slane %v1408, %v1416
        %v1420 = vadd.f32 %v1312, %v1413
        %v1421 = vadd.f32 %v1314, %v1417
        %v1422 = vadd.f32 %v1318, %v1413
        %v1423 = vadd.f32 %v1320, %v1417
        %v1424 = vadd.f32 %v1324, %v1413
        %v1425 = vadd.f32 %v1326, %v1417
        %v1426 = vadd.f32 %v1330, %v1413
        %v1427 = vadd.f32 %v1332, %v1417
        %v1428 = vadd.f32 %v1336, %v1413
        %v1429 = vadd.f32 %v1338, %v1417
        %v1430 = vadd.f32 %v1342, %v1413
        %v1431 = vadd.f32 %v1344, %v1417
        %v1432 = vadd.f32 %v1348, %v1413
        %v1433 = vadd.f32 %v1350, %v1417
        %v1434 = vadd.f32 %v1354, %v1413
        %v1435 = vadd.f32 %v1356, %v1417
        %v1436 = vadd.f32 %v1360, %v1413
        %v1437 = vadd.f32 %v1362, %v1417
        %v1438 = vadd.f32 %v1366, %v1413
        %v1439 = vadd.f32 %v1368, %v1417
        %v1440 = vadd.f32 %v1372, %v1413
        %v1441 = vadd.f32 %v1374, %v1417
        %v1442 = vadd.f32 %v1378, %v1413
        %v1443 = vadd.f32 %v1380, %v1417
        %v1444 = vadd.f32 %v1384, %v1413
        %v1445 = vadd.f32 %v1386, %v1417
        %v1446 = vadd.f32 %v1390, %v1413
        %v1447 = vadd.f32 %v1392, %v1417
        %v1448 = vadd.f32 %v1396, %v1413
        %v1449 = vadd.f32 %v1398, %v1417
        %v1450 = vadd.f32 %v1402, %v1413
        %v1451 = vadd.f32 %v1404, %v1417
        %1452 = vst [vmem:[%s264 + $0x100] sm:$0xff] %v1420
        %1453 = vst [vmem:[%s264 + $0x108] sm:$0xff] %v1421
        %1454 = vst [vmem:[%s264 + $0x110] sm:$0xff] %v1422
        %1455 = vst [vmem:[%s264 + $0x118] sm:$0xff] %v1423
        %1456 = vst [vmem:[%s264 + $0x120] sm:$0xff] %v1424
        %1457 = vst [vmem:[%s264 + $0x128] sm:$0xff] %v1425
        %1458 = vst [vmem:[%s264 + $0x130] sm:$0xff] %v1426
        %1459 = vst [vmem:[%s264 + $0x138] sm:$0xff] %v1427
        %1460 = vst [vmem:[%s264 + $0x140] sm:$0xff] %v1428
        %1461 = vst [vmem:[%s264 + $0x148] sm:$0xff] %v1429
        %1462 = vst [vmem:[%s264 + $0x150] sm:$0xff] %v1430
        %1463 = vst [vmem:[%s264 + $0x158] sm:$0xff] %v1431
        %1464 = vst [vmem:[%s264 + $0x160] sm:$0xff] %v1432
        %1465 = vst [vmem:[%s264 + $0x168] sm:$0xff] %v1433
        %1466 = vst [vmem:[%s264 + $0x170] sm:$0xff] %v1434
        %1467 = vst [vmem:[%s264 + $0x178] sm:$0xff] %v1435
        %1468 = vst [vmem:[%s264 + $0x180] sm:$0xff] %v1436
        %1469 = vst [vmem:[%s264 + $0x188] sm:$0xff] %v1437
        %1470 = vst [vmem:[%s264 + $0x190] sm:$0xff] %v1438
        %1471 = vst [vmem:[%s264 + $0x198] sm:$0xff] %v1439
        %1472 = vst [vmem:[%s264 + $0x1a0] sm:$0xff] %v1440
        %1473 = vst [vmem:[%s264 + $0x1a8] sm:$0xff] %v1441
        %1474 = vst [vmem:[%s264 + $0x1b0] sm:$0xff] %v1442
        %1475 = vst [vmem:[%s264 + $0x1b8] sm:$0xff] %v1443
        %1476 = vst [vmem:[%s264 + $0x1c0] sm:$0xff] %v1444
        %1477 = vst [vmem:[%s264 + $0x1c8] sm:$0xff] %v1445
        %1478 = vst [vmem:[%s264 + $0x1d0] sm:$0xff] %v1446
        %1479 = vst [vmem:[%s264 + $0x1d8] sm:$0xff] %v1447
        %1480 = vst [vmem:[%s264 + $0x1e0] sm:$0xff] %v1448
        %1481 = vst [vmem:[%s264 + $0x1e8] sm:$0xff] %v1449
        %1482 = vst [vmem:[%s264 + $0x1f0] sm:$0xff] %v1450
        %1483 = vst [vmem:[%s264 + $0x1f8] sm:$0xff] %v1451
        %v1484 = vld [vmem:[%s3 + $0x100] sm:$0xff]
        %v1485 = vld [vmem:[%s3 + $0x108] sm:$0xff]
        %v1486 = vld [vmem:[%s3 + $0x110] sm:$0xff]
        %v1487 = vld [vmem:[%s3 + $0x118] sm:$0xff]
        %v1488 = vld [vmem:[%s3 + $0x120] sm:$0xff]
        %v1489 = vld [vmem:[%s3 + $0x128] sm:$0xff]
        %v1490 = vld [vmem:[%s3 + $0x130] sm:$0xff]
        %v1491 = vld [vmem:[%s3 + $0x138] sm:$0xff]
        %v1492 = vld [vmem:[%s3 + $0x140] sm:$0xff]
        %v1493 = vld [vmem:[%s3 + $0x148] sm:$0xff]
        %v1494 = vld [vmem:[%s3 + $0x150] sm:$0xff]
        %v1495 = vld [vmem:[%s3 + $0x158] sm:$0xff]
        %v1496 = vld [vmem:[%s3 + $0x160] sm:$0xff]
        %v1497 = vld [vmem:[%s3 + $0x168] sm:$0xff]
        %v1498 = vld [vmem:[%s3 + $0x170] sm:$0xff]
        %v1499 = vld [vmem:[%s3 + $0x178] sm:$0xff]
        %v1501 = vsel %vm427, %v1484, 0
        %v1504 = vsel %vm427, %v1485, 0
        %v1507 = vsel %vm427, %v1486, 0
        %v1510 = vsel %vm427, %v1487, 0
        %v1513 = vsel %vm427, %v1488, 0
        %v1516 = vsel %vm427, %v1489, 0
        %v1519 = vsel %vm427, %v1490, 0
        %v1522 = vsel %vm427, %v1491, 0
        %v1525 = vsel %vm427, %v1492, 0
        %v1528 = vsel %vm427, %v1493, 0
        %v1531 = vsel %vm427, %v1494, 0
        %v1534 = vsel %vm427, %v1495, 0
        %v1537 = vsel %vm427, %v1496, 0
        %v1540 = vsel %vm427, %v1497, 0
        %v1543 = vsel %vm427, %v1498, 0
        %v1546 = vsel %vm427, %v1499, 0
        %1548 = vmatprep.subr.mxu0 %v323
        %1549 = vmatpush1.msra.mxu0 %v322
        %1550 = vmatprep.subr.mxu0 %v325
        %1551 = vmatpush1.msra.mxu0 %v324
        %1552 = vmatprep.subr.mxu0 %v327
        %1553 = vmatpush1.msra.mxu0 %v326
        %1554 = vmatprep.subr.mxu0 %v329
        %1555 = vmatpush1.msra.mxu0 %v328
        %1556 = vmatprep.subr.mxu0 0.0
        %1557 = vmatpush1.msra.mxu0 0.0
        %1558 = vmatprep.subr.mxu0 0.0
        %1559 = vmatpush1.msra.mxu0 0.0
        %1560 = vmatprep.subr.mxu0 0.0
        %1561 = vmatpush1.msra.mxu0 0.0
        %1562 = vmatprep.subr.mxu0 0.0
        %1563 = vmatpush1.msra.mxu0 0.0
        %1564 = vmatprep.subr.mxu0 0.0
        %1565 = vmatpush1.msra.mxu0 0.0
        %1566 = vmatprep.subr.mxu0 0.0
        %1567 = vmatpush1.msra.mxu0 0.0
        %1568 = vmatprep.subr.mxu0 0.0
        %1569 = vmatpush1.msra.mxu0 0.0
        %1570 = vmatprep.subr.mxu0 0.0
        %1571 = vmatpush1.msra.mxu0 0.0
        %1572 = vmatprep.subr.mxu0 0.0
        %1573 = vmatpush1.msra.mxu0 0.0
        %1574 = vmatprep.subr.mxu0 0.0
        %1575 = vmatpush1.msra.mxu0 0.0
        %1576 = vmatprep.subr.mxu0 0.0
        %1577 = vmatpush1.msra.mxu0 0.0
        %1578 = vmatprep.subr.mxu0 0.0
        %1579 = vmatpush1.msra.mxu0 0.0
        %1580 = vmatprep.subr.mxu0 0.0
        %1581 = vmatpush1.msra.mxu0 0.0
        %1582 = vmatprep.subr.mxu0 0.0
        %1583 = vmatpush1.msra.mxu0 0.0
        %1584 = vmatprep.subr.mxu0 0.0
        %1585 = vmatpush1.msra.mxu0 0.0
        %1586 = vmatprep.subr.mxu0 0.0
        %1587 = vmatpush1.msra.mxu0 0.0
        %1588 = vmatprep.subr.mxu0 0.0
        %1589 = vmatpush1.msra.mxu0 0.0
        %1590 = vmatprep.subr.mxu0 0.0
        %1591 = vmatpush1.msra.mxu0 0.0
        %1592 = vmatprep.subr.mxu0 0.0
        %1593 = vmatpush1.msra.mxu0 0.0
        %1594 = vmatprep.subr.mxu0 0.0
        %1595 = vmatpush1.msra.mxu0 0.0
        %1596 = vmatprep.subr.mxu0 0.0
        %1597 = vmatpush1.msra.mxu0 0.0
        %1598 = vmatprep.subr.mxu0 0.0
        %1599 = vmatpush1.msra.mxu0 0.0
        %1600 = vmatprep.subr.mxu0 0.0
        %1601 = vmatpush1.msra.mxu0 0.0
        %1602 = vmatprep.subr.mxu0 0.0
        %1603 = vmatpush1.msra.mxu0 0.0
        %1604 = vmatprep.subr.mxu0 0.0
        %1605 = vmatpush1.msra.mxu0 0.0
        %1606 = vmatprep.subr.mxu0 0.0
        %1607 = vmatpush1.msra.mxu0 0.0
        %1608 = vmatprep.subr.mxu0 0.0
        %1609 = vmatpush1.msra.mxu0 0.0
        %1610 = vmatprep.subr.mxu0 0.0
        %1611 = vmatpush1.msra.mxu0 0.0
        %1612 = vmatprep.mubr.f32.mxu0 0.0
        %1613 = vmatmul.mubr.f32.gmra.mrb[0].mxu0 %v1501
        %v1614 = vpop.f32.mrb[0].mxu0
        %v1615 = vadd.f32 %v350, %v1614
        %v1616 = vpop.f32.mrb[0].mxu0
        %v1617 = vadd.f32 %v350, %v1616
        %1618 = vmatprep.mubr.f32.mxu0 0.0
        %1619 = vmatmul.mubr.f32.gmra.mrb[0].mxu0 %v1504
        %v1620 = vpop.f32.mrb[0].mxu0
        %v1621 = vadd.f32 %v355, %v1620
        %v1622 = vpop.f32.mrb[0].mxu0
        %v1623 = vadd.f32 %v355, %v1622
        %1624 = vmatprep.mubr.f32.mxu0 0.0
        %1625 = vmatmul.mubr.f32.gmra.mrb[0].mxu0 %v1507
        %v1626 = vpop.f32.mrb[0].mxu0
        %v1627 = vadd.f32 %v360, %v1626
        %v1628 = vpop.f32.mrb[0].mxu0
        %v1629 = vadd.f32 %v360, %v1628
        %1630 = vmatprep.mubr.f32.mxu0 0.0
        %1631 = vmatmul.mubr.f32.gmra.mrb[0].mxu0 %v1510
        %v1632 = vpop.f32.mrb[0].mxu0
        %v1633 = vadd.f32 %v365, %v1632
        %v1634 = vpop.f32.mrb[0].mxu0
        %v1635 = vadd.f32 %v365, %v1634
        %1636 = vmatprep.mubr.f32.mxu0 0.0
        %1637 = vmatmul.mubr.f32.gmra.mrb[0].mxu0 %v1513
        %v1638 = vpop.f32.mrb[0].mxu0
        %v1639 = vadd.f32 %v370, %v1638
        %v1640 = vpop.f32.mrb[0].mxu0
        %v1641 = vadd.f32 %v370, %v1640
        %1642 = vmatprep.mubr.f32.mxu0 0.0
        %1643 = vmatmul.mubr.f32.gmra.mrb[0].mxu0 %v1516
        %v1644 = vpop.f32.mrb[0].mxu0
        %v1645 = vadd.f32 %v375, %v1644
        %v1646 = vpop.f32.mrb[0].mxu0
        %v1647 = vadd.f32 %v375, %v1646
        %1648 = vmatprep.mubr.f32.mxu0 0.0
        %1649 = vmatmul.mubr.f32.gmra.mrb[0].mxu0 %v1519
        %v1650 = vpop.f32.mrb[0].mxu0
        %v1651 = vadd.f32 %v380, %v1650
        %v1652 = vpop.f32.mrb[0].mxu0
        %v1653 = vadd.f32 %v380, %v1652
        %1654 = vmatprep.mubr.f32.mxu0 0.0
        %1655 = vmatmul.mubr.f32.gmra.mrb[0].mxu0 %v1522
        %v1656 = vpop.f32.mrb[0].mxu0
        %v1657 = vadd.f32 %v385, %v1656
        %v1658 = vpop.f32.mrb[0].mxu0
        %v1659 = vadd.f32 %v385, %v1658
        %1660 = vmatprep.mubr.f32.mxu0 0.0
        %1661 = vmatmul.mubr.f32.gmra.mrb[0].mxu0 %v1525
        %v1662 = vpop.f32.mrb[0].mxu0
        %v1663 = vadd.f32 %v390, %v1662
        %v1664 = vpop.f32.mrb[0].mxu0
        %v1665 = vadd.f32 %v390, %v1664
        %1666 = vmatprep.mubr.f32.mxu0 0.0
        %1667 = vmatmul.mubr.f32.gmra.mrb[0].mxu0 %v1528
        %v1668 = vpop.f32.mrb[0].mxu0
        %v1669 = vadd.f32 %v395, %v1668
        %v1670 = vpop.f32.mrb[0].mxu0
        %v1671 = vadd.f32 %v395, %v1670
        %1672 = vmatprep.mubr.f32.mxu0 0.0
        %1673 = vmatmul.mubr.f32.gmra.mrb[0].mxu0 %v1531
        %v1674 = vpop.f32.mrb[0].mxu0
        %v1675 = vadd.f32 %v400, %v1674
        %v1676 = vpop.f32.mrb[0].mxu0
        %v1677 = vadd.f32 %v400, %v1676
        %1678 = vmatprep.mubr.f32.mxu0 0.0
        %1679 = vmatmul.mubr.f32.gmra.mrb[0].mxu0 %v1534
        %v1680 = vpop.f32.mrb[0].mxu0
        %v1681 = vadd.f32 %v405, %v1680
        %v1682 = vpop.f32.mrb[0].mxu0
        %v1683 = vadd.f32 %v405, %v1682
        %1684 = vmatprep.mubr.f32.mxu0 0.0
        %1685 = vmatmul.mubr.f32.gmra.mrb[0].mxu0 %v1537
        %v1686 = vpop.f32.mrb[0].mxu0
        %v1687 = vadd.f32 %v410, %v1686
        %v1688 = vpop.f32.mrb[0].mxu0
        %v1689 = vadd.f32 %v410, %v1688
        %1690 = vmatprep.mubr.f32.mxu0 0.0
        %1691 = vmatmul.mubr.f32.gmra.mrb[0].mxu0 %v1540
        %v1692 = vpop.f32.mrb[0].mxu0
        %v1693 = vadd.f32 %v415, %v1692
        %v1694 = vpop.f32.mrb[0].mxu0
        %v1695 = vadd.f32 %v415, %v1694
        %1696 = vmatprep.mubr.f32.mxu0 0.0
        %1697 = vmatmul.mubr.f32.gmra.mrb[0].mxu0 %v1543
        %v1698 = vpop.f32.mrb[0].mxu0
        %v1699 = vadd.f32 %v420, %v1698
        %v1700 = vpop.f32.mrb[0].mxu0
        %v1701 = vadd.f32 %v420, %v1700
        %1702 = vmatprep.mubr.f32.mxu0 0.0
        %1703 = vmatmul.mubr.f32.gmra.mrb[0].mxu0 %v1546
        %v1704 = vpop.f32.mrb[0].mxu0
        %v1705 = vadd.f32 %v425, %v1704
        %v1706 = vpop.f32.mrb[0].mxu0
        %v1707 = vadd.f32 %v425, %v1706
        %1708 = vdwg.mxu0
        %v1709 = vmax.f32 %v1615, 0.0
        %v1710 = vmax.f32 %v1617, 0.0
        %v1711 = vmax.f32 %v1621, 0.0
        %v1712 = vmax.f32 %v1623, 0.0
        %v1713 = vmax.f32 %v1627, 0.0
        %v1714 = vmax.f32 %v1629, 0.0
        %v1715 = vmax.f32 %v1633, 0.0
        %v1716 = vmax.f32 %v1635, 0.0
        %v1717 = vmax.f32 %v1639, 0.0
        %v1718 = vmax.f32 %v1641, 0.0
        %v1719 = vmax.f32 %v1645, 0.0
        %v1720 = vmax.f32 %v1647, 0.0
        %v1721 = vmax.f32 %v1651, 0.0
        %v1722 = vmax.f32 %v1653, 0.0
        %v1723 = vmax.f32 %v1657, 0.0
        %v1724 = vmax.f32 %v1659, 0.0
        %v1725 = vmax.f32 %v1663, 0.0
        %v1726 = vmax.f32 %v1665, 0.0
        %v1727 = vmax.f32 %v1669, 0.0
        %v1728 = vmax.f32 %v1671, 0.0
        %v1729 = vmax.f32 %v1675, 0.0
        %v1730 = vmax.f32 %v1677, 0.0
        %v1731 = vmax.f32 %v1681, 0.0
        %v1732 = vmax.f32 %v1683, 0.0
        %v1733 = vmax.f32 %v1687, 0.0
        %v1734 = vmax.f32 %v1689, 0.0
        %v1735 = vmax.f32 %v1693, 0.0
        %v1736 = vmax.f32 %v1695, 0.0
        %v1737 = vmax.f32 %v1699, 0.0
        %v1738 = vmax.f32 %v1701, 0.0
        %v1739 = vmax.f32 %v1705, 0.0
        %v1740 = vmax.f32 %v1707, 0.0
        %1741 = vmatprep.subr.mxu0 %v1710
        %1742 = vmatpush1.msra.mxu0 %v1709
        %1743 = vmatprep.subr.mxu0 %v1712
        %1744 = vmatpush1.msra.mxu0 %v1711
        %1745 = vmatprep.subr.mxu0 %v1714
        %1746 = vmatpush1.msra.mxu0 %v1713
        %1747 = vmatprep.subr.mxu0 %v1716
        %1748 = vmatpush1.msra.mxu0 %v1715
        %1749 = vmatprep.subr.mxu0 %v1718
        %1750 = vmatpush1.msra.mxu0 %v1717
        %1751 = vmatprep.subr.mxu0 %v1720
        %1752 = vmatpush1.msra.mxu0 %v1719
        %1753 = vmatprep.subr.mxu0 %v1722
        %1754 = vmatpush1.msra.mxu0 %v1721
        %1755 = vmatprep.subr.mxu0 %v1724
        %1756 = vmatpush1.msra.mxu0 %v1723
        %1757 = vmatprep.subr.mxu0 %v1726
        %1758 = vmatpush1.msra.mxu0 %v1725
        %1759 = vmatprep.subr.mxu0 %v1728
        %1760 = vmatpush1.msra.mxu0 %v1727
        %1761 = vmatprep.subr.mxu0 %v1730
        %1762 = vmatpush1.msra.mxu0 %v1729
        %1763 = vmatprep.subr.mxu0 %v1732
        %1764 = vmatpush1.msra.mxu0 %v1731
        %1765 = vmatprep.subr.mxu0 %v1734
        %1766 = vmatpush1.msra.mxu0 %v1733
        %1767 = vmatprep.subr.mxu0 %v1736
        %1768 = vmatpush1.msra.mxu0 %v1735
        %1769 = vmatprep.subr.mxu0 %v1738
        %1770 = vmatpush1.msra.mxu0 %v1737
        %1771 = vmatprep.subr.mxu0 %v1740
        %1772 = vmatpush1.msra.mxu0 %v1739
        %1773 = vmatprep.subr.mxu0 0.0
        %1774 = vmatpush1.msra.mxu0 0.0
        %1775 = vmatprep.subr.mxu0 0.0
        %1776 = vmatpush1.msra.mxu0 0.0
        %1777 = vmatprep.subr.mxu0 0.0
        %1778 = vmatpush1.msra.mxu0 0.0
        %1779 = vmatprep.subr.mxu0 0.0
        %1780 = vmatpush1.msra.mxu0 0.0
        %1781 = vmatprep.subr.mxu0 0.0
        %1782 = vmatpush1.msra.mxu0 0.0
        %1783 = vmatprep.subr.mxu0 0.0
        %1784 = vmatpush1.msra.mxu0 0.0
        %1785 = vmatprep.subr.mxu0 0.0
        %1786 = vmatpush1.msra.mxu0 0.0
        %1787 = vmatprep.subr.mxu0 0.0
        %1788 = vmatpush1.msra.mxu0 0.0
        %1789 = vmatprep.subr.mxu0 0.0
        %1790 = vmatpush1.msra.mxu0 0.0
        %1791 = vmatprep.subr.mxu0 0.0
        %1792 = vmatpush1.msra.mxu0 0.0
        %1793 = vmatprep.subr.mxu0 0.0
        %1794 = vmatpush1.msra.mxu0 0.0
        %1795 = vmatprep.subr.mxu0 0.0
        %1796 = vmatpush1.msra.mxu0 0.0
        %1797 = vmatprep.subr.mxu0 0.0
        %1798 = vmatpush1.msra.mxu0 0.0
        %1799 = vmatprep.subr.mxu0 0.0
        %1800 = vmatpush1.msra.mxu0 0.0
        %1801 = vmatprep.subr.mxu0 0.0
        %1802 = vmatpush1.msra.mxu0 0.0
        %1803 = vmatprep.subr.mxu0 0.0
        %1804 = vmatpush1.msra.mxu0 0.0
        %1805 = vmatprep.mubr.f32.mxu0 0.0
        %1806 = vmatmul.mubr.f32.gmra.mrb[0].mxu0 %v274
        %v1807 = vpop.f32.mrb[0].mxu0
        %v1808 = vadd.f32 %v672, %v1807
        %v1809 = vpop.f32.mrb[0].mxu0
        %v1810 = vadd.f32 %v672, %v1809
        %1811 = vmatprep.mubr.f32.mxu0 0.0
        %1812 = vmatmul.mubr.f32.gmra.mrb[0].mxu0 %v275
        %v1813 = vpop.f32.mrb[0].mxu0
        %v1814 = vadd.f32 %v677, %v1813
        %v1815 = vpop.f32.mrb[0].mxu0
        %v1816 = vadd.f32 %v677, %v1815
        %1817 = vmatprep.mubr.f32.mxu0 0.0
        %1818 = vmatmul.mubr.f32.gmra.mrb[0].mxu0 %v276
        %v1819 = vpop.f32.mrb[0].mxu0
        %v1820 = vadd.f32 %v682, %v1819
        %v1821 = vpop.f32.mrb[0].mxu0
        %v1822 = vadd.f32 %v682, %v1821
        %1823 = vmatprep.mubr.f32.mxu0 0.0
        %1824 = vmatmul.mubr.f32.gmra.mrb[0].mxu0 %v277
        %v1825 = vpop.f32.mrb[0].mxu0
        %v1826 = vadd.f32 %v687, %v1825
        %v1827 = vpop.f32.mrb[0].mxu0
        %v1828 = vadd.f32 %v687, %v1827
        %1829 = vmatprep.mubr.f32.mxu0 0.0
        %1830 = vmatmul.mubr.f32.gmra.mrb[0].mxu0 %v278
        %v1831 = vpop.f32.mrb[0].mxu0
        %v1832 = vadd.f32 %v692, %v1831
        %v1833 = vpop.f32.mrb[0].mxu0
        %v1834 = vadd.f32 %v692, %v1833
        %1835 = vmatprep.mubr.f32.mxu0 0.0
        %1836 = vmatmul.mubr.f32.gmra.mrb[0].mxu0 %v279
        %v1837 = vpop.f32.mrb[0].mxu0
        %v1838 = vadd.f32 %v697, %v1837
        %v1839 = vpop.f32.mrb[0].mxu0
        %v1840 = vadd.f32 %v697, %v1839
        %1841 = vmatprep.mubr.f32.mxu0 0.0
        %1842 = vmatmul.mubr.f32.gmra.mrb[0].mxu0 %v280
        %v1843 = vpop.f32.mrb[0].mxu0
        %v1844 = vadd.f32 %v702, %v1843
        %v1845 = vpop.f32.mrb[0].mxu0
        %v1846 = vadd.f32 %v702, %v1845
        %1847 = vmatprep.mubr.f32.mxu0 0.0
        %1848 = vmatmul.mubr.f32.gmra.mrb[0].mxu0 %v281
        %v1849 = vpop.f32.mrb[0].mxu0
        %v1850 = vadd.f32 %v707, %v1849
        %v1851 = vpop.f32.mrb[0].mxu0
        %v1852 = vadd.f32 %v707, %v1851
        %1853 = vmatprep.mubr.f32.mxu0 0.0
        %1854 = vmatmul.mubr.f32.gmra.mrb[0].mxu0 %v282
        %v1855 = vpop.f32.mrb[0].mxu0
        %v1856 = vadd.f32 %v712, %v1855
        %v1857 = vpop.f32.mrb[0].mxu0
        %v1858 = vadd.f32 %v712, %v1857
        %1859 = vmatprep.mubr.f32.mxu0 0.0
        %1860 = vmatmul.mubr.f32.gmra.mrb[0].mxu0 %v283
        %v1861 = vpop.f32.mrb[0].mxu0
        %v1862 = vadd.f32 %v717, %v1861
        %v1863 = vpop.f32.mrb[0].mxu0
        %v1864 = vadd.f32 %v717, %v1863
        %1865 = vmatprep.mubr.f32.mxu0 0.0
        %1866 = vmatmul.mubr.f32.gmra.mrb[0].mxu0 %v284
        %v1867 = vpop.f32.mrb[0].mxu0
        %v1868 = vadd.f32 %v722, %v1867
        %v1869 = vpop.f32.mrb[0].mxu0
        %v1870 = vadd.f32 %v722, %v1869
        %1871 = vmatprep.mubr.f32.mxu0 0.0
        %1872 = vmatmul.mubr.f32.gmra.mrb[0].mxu0 %v285
        %v1873 = vpop.f32.mrb[0].mxu0
        %v1874 = vadd.f32 %v727, %v1873
        %v1875 = vpop.f32.mrb[0].mxu0
        %v1876 = vadd.f32 %v727, %v1875
        %1877 = vmatprep.mubr.f32.mxu0 0.0
        %1878 = vmatmul.mubr.f32.gmra.mrb[0].mxu0 %v286
        %v1879 = vpop.f32.mrb[0].mxu0
        %v1880 = vadd.f32 %v732, %v1879
        %v1881 = vpop.f32.mrb[0].mxu0
        %v1882 = vadd.f32 %v732, %v1881
        %1883 = vmatprep.mubr.f32.mxu0 0.0
        %1884 = vmatmul.mubr.f32.gmra.mrb[0].mxu0 %v287
        %v1885 = vpop.f32.mrb[0].mxu0
        %v1886 = vadd.f32 %v737, %v1885
        %v1887 = vpop.f32.mrb[0].mxu0
        %v1888 = vadd.f32 %v737, %v1887
        %1889 = vmatprep.mubr.f32.mxu0 0.0
        %1890 = vmatmul.mubr.f32.gmra.mrb[0].mxu0 %v288
        %v1891 = vpop.f32.mrb[0].mxu0
        %v1892 = vadd.f32 %v742, %v1891
        %v1893 = vpop.f32.mrb[0].mxu0
        %v1894 = vadd.f32 %v742, %v1893
        %1895 = vmatprep.mubr.f32.mxu0 0.0
        %1896 = vmatmul.mubr.f32.gmra.mrb[0].mxu0 %v289
        %v1897 = vpop.f32.mrb[0].mxu0
        %v1898 = vadd.f32 %v747, %v1897
        %v1899 = vpop.f32.mrb[0].mxu0
        %v1900 = vadd.f32 %v747, %v1899
        %1901 = vdwg.mxu0
        %s1902 = sld [smem:[#allocation3 + $0x2]]
        %v1903 = vstv %s1902
        %v1904 = vmul.f32 %v330, %v1903
        %v1906 = vlaneseq
        %v1907 = vshrl.u32 %v1906, 7
        %v1908 = vsub.s32 0, %v1907
        %v1909 = vrot.slane %v1904, %v1908
        %v1910 = vlaneseq
        %v1911 = vshrl.u32 %v1910, 7
        %v1912 = vsub.s32 1, %v1911
        %v1913 = vrot.slane %v1904, %v1912
        %v1916 = vadd.f32 %v1808, %v1909
        %v1917 = vadd.f32 %v1810, %v1913
        %v1918 = vadd.f32 %v1814, %v1909
        %v1919 = vadd.f32 %v1816, %v1913
        %v1920 = vadd.f32 %v1820, %v1909
        %v1921 = vadd.f32 %v1822, %v1913
        %v1922 = vadd.f32 %v1826, %v1909
        %v1923 = vadd.f32 %v1828, %v1913
        %v1924 = vadd.f32 %v1832, %v1909
        %v1925 = vadd.f32 %v1834, %v1913
        %v1926 = vadd.f32 %v1838, %v1909
        %v1927 = vadd.f32 %v1840, %v1913
        %v1928 = vadd.f32 %v1844, %v1909
        %v1929 = vadd.f32 %v1846, %v1913
        %v1930 = vadd.f32 %v1850, %v1909
        %v1931 = vadd.f32 %v1852, %v1913
        %v1932 = vadd.f32 %v1856, %v1909
        %v1933 = vadd.f32 %v1858, %v1913
        %v1934 = vadd.f32 %v1862, %v1909
        %v1935 = vadd.f32 %v1864, %v1913
        %v1936 = vadd.f32 %v1868, %v1909
        %v1937 = vadd.f32 %v1870, %v1913
        %v1938 = vadd.f32 %v1874, %v1909
        %v1939 = vadd.f32 %v1876, %v1913
        %v1940 = vadd.f32 %v1880, %v1909
        %v1941 = vadd.f32 %v1882, %v1913
        %v1942 = vadd.f32 %v1886, %v1909
        %v1943 = vadd.f32 %v1888, %v1913
        %v1944 = vadd.f32 %v1892, %v1909
        %v1945 = vadd.f32 %v1894, %v1913
        %v1946 = vadd.f32 %v1898, %v1909
        %v1947 = vadd.f32 %v1900, %v1913
        %1948 = vst [vmem:[%s264 + $0x200] sm:$0xff] %v1916
        %1949 = vst [vmem:[%s264 + $0x208] sm:$0xff] %v1917
        %1950 = vst [vmem:[%s264 + $0x210] sm:$0xff] %v1918
        %1951 = vst [vmem:[%s264 + $0x218] sm:$0xff] %v1919
        %1952 = vst [vmem:[%s264 + $0x220] sm:$0xff] %v1920
        %1953 = vst [vmem:[%s264 + $0x228] sm:$0xff] %v1921
        %1954 = vst [vmem:[%s264 + $0x230] sm:$0xff] %v1922
        %1955 = vst [vmem:[%s264 + $0x238] sm:$0xff] %v1923
        %1956 = vst [vmem:[%s264 + $0x240] sm:$0xff] %v1924
        %1957 = vst [vmem:[%s264 + $0x248] sm:$0xff] %v1925
        %1958 = vst [vmem:[%s264 + $0x250] sm:$0xff] %v1926
        %1959 = vst [vmem:[%s264 + $0x258] sm:$0xff] %v1927
        %1960 = vst [vmem:[%s264 + $0x260] sm:$0xff] %v1928
        %1961 = vst [vmem:[%s264 + $0x268] sm:$0xff] %v1929
        %1962 = vst [vmem:[%s264 + $0x270] sm:$0xff] %v1930
        %1963 = vst [vmem:[%s264 + $0x278] sm:$0xff] %v1931
        %1964 = vst [vmem:[%s264 + $0x280] sm:$0xff] %v1932
        %1965 = vst [vmem:[%s264 + $0x288] sm:$0xff] %v1933
        %1966 = vst [vmem:[%s264 + $0x290] sm:$0xff] %v1934
        %1967 = vst [vmem:[%s264 + $0x298] sm:$0xff] %v1935
        %1968 = vst [vmem:[%s264 + $0x2a0] sm:$0xff] %v1936
        %1969 = vst [vmem:[%s264 + $0x2a8] sm:$0xff] %v1937
        %1970 = vst [vmem:[%s264 + $0x2b0] sm:$0xff] %v1938
        %1971 = vst [vmem:[%s264 + $0x2b8] sm:$0xff] %v1939
        %1972 = vst [vmem:[%s264 + $0x2c0] sm:$0xff] %v1940
        %1973 = vst [vmem:[%s264 + $0x2c8] sm:$0xff] %v1941
        %1974 = vst [vmem:[%s264 + $0x2d0] sm:$0xff] %v1942
        %1975 = vst [vmem:[%s264 + $0x2d8] sm:$0xff] %v1943
        %1976 = vst [vmem:[%s264 + $0x2e0] sm:$0xff] %v1944
        %1977 = vst [vmem:[%s264 + $0x2e8] sm:$0xff] %v1945
        %1978 = vst [vmem:[%s264 + $0x2f0] sm:$0xff] %v1946
        %1979 = vst [vmem:[%s264 + $0x2f8] sm:$0xff] %v1947
        %v1980 = vld [vmem:[%s3 + $0x180] sm:$0xff]
        %v1981 = vld [vmem:[%s3 + $0x188] sm:$0xff]
        %v1982 = vld [vmem:[%s3 + $0x190] sm:$0xff]
        %v1983 = vld [vmem:[%s3 + $0x198] sm:$0xff]
        %v1984 = vld [vmem:[%s3 + $0x1a0] sm:$0xff]
        %v1985 = vld [vmem:[%s3 + $0x1a8] sm:$0xff]
        %v1986 = vld [vmem:[%s3 + $0x1b0] sm:$0xff]
        %v1987 = vld [vmem:[%s3 + $0x1b8] sm:$0xff]
        %v1988 = vld [vmem:[%s3 + $0x1c0] sm:$0xff]
        %v1989 = vld [vmem:[%s3 + $0x1c8] sm:$0xff]
        %v1990 = vld [vmem:[%s3 + $0x1d0] sm:$0xff]
        %v1991 = vld [vmem:[%s3 + $0x1d8] sm:$0xff]
        %v1992 = vld [vmem:[%s3 + $0x1e0] sm:$0xff]
        %v1993 = vld [vmem:[%s3 + $0x1e8] sm:$0xff]
        %v1994 = vld [vmem:[%s3 + $0x1f0] sm:$0xff]
        %v1995 = vld [vmem:[%s3 + $0x1f8] sm:$0xff]
        %v1997 = vsel %vm427, %v1980, 0
        %v2000 = vsel %vm427, %v1981, 0
        %v2003 = vsel %vm427, %v1982, 0
        %v2006 = vsel %vm427, %v1983, 0
        %v2009 = vsel %vm427, %v1984, 0
        %v2012 = vsel %vm427, %v1985, 0
        %v2015 = vsel %vm427, %v1986, 0
        %v2018 = vsel %vm427, %v1987, 0
        %v2021 = vsel %vm427, %v1988, 0
        %v2024 = vsel %vm427, %v1989, 0
        %v2027 = vsel %vm427, %v1990, 0
        %v2030 = vsel %vm427, %v1991, 0
        %v2033 = vsel %vm427, %v1992, 0
        %v2036 = vsel %vm427, %v1993, 0
        %v2039 = vsel %vm427, %v1994, 0
        %v2042 = vsel %vm427, %v1995, 0
        %2044 = vmatprep.subr.mxu0 %v323
        %2045 = vmatpush1.msra.mxu0 %v322
        %2046 = vmatprep.subr.mxu0 %v325
        %2047 = vmatpush1.msra.mxu0 %v324
        %2048 = vmatprep.subr.mxu0 %v327
        %2049 = vmatpush1.msra.mxu0 %v326
        %2050 = vmatprep.subr.mxu0 %v329
        %2051 = vmatpush1.msra.mxu0 %v328
        %2052 = vmatprep.subr.mxu0 0.0
        %2053 = vmatpush1.msra.mxu0 0.0
        %2054 = vmatprep.subr.mxu0 0.0
        %2055 = vmatpush1.msra.mxu0 0.0
        %2056 = vmatprep.subr.mxu0 0.0
        %2057 = vmatpush1.msra.mxu0 0.0
        %2058 = vmatprep.subr.mxu0 0.0
        %2059 = vmatpush1.msra.mxu0 0.0
        %2060 = vmatprep.subr.mxu0 0.0
        %2061 = vmatpush1.msra.mxu0 0.0
        %2062 = vmatprep.subr.mxu0 0.0
        %2063 = vmatpush1.msra.mxu0 0.0
        %2064 = vmatprep.subr.mxu0 0.0
        %2065 = vmatpush1.msra.mxu0 0.0
        %2066 = vmatprep.subr.mxu0 0.0
        %2067 = vmatpush1.msra.mxu0 0.0
        %2068 = vmatprep.subr.mxu0 0.0
        %2069 = vmatpush1.msra.mxu0 0.0
        %2070 = vmatprep.subr.mxu0 0.0
        %2071 = vmatpush1.msra.mxu0 0.0
        %2072 = vmatprep.subr.mxu0 0.0
        %2073 = vmatpush1.msra.mxu0 0.0
        %2074 = vmatprep.subr.mxu0 0.0
        %2075 = vmatpush1.msra.mxu0 0.0
        %2076 = vmatprep.subr.mxu0 0.0
        %2077 = vmatpush1.msra.mxu0 0.0
        %2078 = vmatprep.subr.mxu0 0.0
        %2079 = vmatpush1.msra.mxu0 0.0
        %2080 = vmatprep.subr.mxu0 0.0
        %2081 = vmatpush1.msra.mxu0 0.0
        %2082 = vmatprep.subr.mxu0 0.0
        %2083 = vmatpush1.msra.mxu0 0.0
        %2084 = vmatprep.subr.mxu0 0.0
        %2085 = vmatpush1.msra.mxu0 0.0
        %2086 = vmatprep.subr.mxu0 0.0
        %2087 = vmatpush1.msra.mxu0 0.0
        %2088 = vmatprep.subr.mxu0 0.0
        %2089 = vmatpush1.msra.mxu0 0.0
        %2090 = vmatprep.subr.mxu0 0.0
        %2091 = vmatpush1.msra.mxu0 0.0
        %2092 = vmatprep.subr.mxu0 0.0
        %2093 = vmatpush1.msra.mxu0 0.0
        %2094 = vmatprep.subr.mxu0 0.0
        %2095 = vmatpush1.msra.mxu0 0.0
        %2096 = vmatprep.subr.mxu0 0.0
        %2097 = vmatpush1.msra.mxu0 0.0
        %2098 = vmatprep.subr.mxu0 0.0
        %2099 = vmatpush1.msra.mxu0 0.0
        %2100 = vmatprep.subr.mxu0 0.0
        %2101 = vmatpush1.msra.mxu0 0.0
        %2102 = vmatprep.subr.mxu0 0.0
        %2103 = vmatpush1.msra.mxu0 0.0
        %2104 = vmatprep.subr.mxu0 0.0
        %2105 = vmatpush1.msra.mxu0 0.0
        %2106 = vmatprep.subr.mxu0 0.0
        %2107 = vmatpush1.msra.mxu0 0.0
        %2108 = vmatprep.mubr.f32.mxu0 0.0
        %2109 = vmatmul.mubr.f32.gmra.mrb[0].mxu0 %v1997
        %v2110 = vpop.f32.mrb[0].mxu0
        %v2111 = vadd.f32 %v350, %v2110
        %v2112 = vpop.f32.mrb[0].mxu0
        %v2113 = vadd.f32 %v350, %v2112
        %2114 = vmatprep.mubr.f32.mxu0 0.0
        %2115 = vmatmul.mubr.f32.gmra.mrb[0].mxu0 %v2000
        %v2116 = vpop.f32.mrb[0].mxu0
        %v2117 = vadd.f32 %v355, %v2116
        %v2118 = vpop.f32.mrb[0].mxu0
        %v2119 = vadd.f32 %v355, %v2118
        %2120 = vmatprep.mubr.f32.mxu0 0.0
        %2121 = vmatmul.mubr.f32.gmra.mrb[0].mxu0 %v2003
        %v2122 = vpop.f32.mrb[0].mxu0
        %v2123 = vadd.f32 %v360, %v2122
        %v2124 = vpop.f32.mrb[0].mxu0
        %v2125 = vadd.f32 %v360, %v2124
        %2126 = vmatprep.mubr.f32.mxu0 0.0
        %2127 = vmatmul.mubr.f32.gmra.mrb[0].mxu0 %v2006
        %v2128 = vpop.f32.mrb[0].mxu0
        %v2129 = vadd.f32 %v365, %v2128
        %v2130 = vpop.f32.mrb[0].mxu0
        %v2131 = vadd.f32 %v365, %v2130
        %2132 = vmatprep.mubr.f32.mxu0 0.0
        %2133 = vmatmul.mubr.f32.gmra.mrb[0].mxu0 %v2009
        %v2134 = vpop.f32.mrb[0].mxu0
        %v2135 = vadd.f32 %v370, %v2134
        %v2136 = vpop.f32.mrb[0].mxu0
        %v2137 = vadd.f32 %v370, %v2136
        %2138 = vmatprep.mubr.f32.mxu0 0.0
        %2139 = vmatmul.mubr.f32.gmra.mrb[0].mxu0 %v2012
        %v2140 = vpop.f32.mrb[0].mxu0
        %v2141 = vadd.f32 %v375, %v2140
        %v2142 = vpop.f32.mrb[0].mxu0
        %v2143 = vadd.f32 %v375, %v2142
        %2144 = vmatprep.mubr.f32.mxu0 0.0
        %2145 = vmatmul.mubr.f32.gmra.mrb[0].mxu0 %v2015
        %v2146 = vpop.f32.mrb[0].mxu0
        %v2147 = vadd.f32 %v380, %v2146
        %v2148 = vpop.f32.mrb[0].mxu0
        %v2149 = vadd.f32 %v380, %v2148
        %2150 = vmatprep.mubr.f32.mxu0 0.0
        %2151 = vmatmul.mubr.f32.gmra.mrb[0].mxu0 %v2018
        %v2152 = vpop.f32.mrb[0].mxu0
        %v2153 = vadd.f32 %v385, %v2152
        %v2154 = vpop.f32.mrb[0].mxu0
        %v2155 = vadd.f32 %v385, %v2154
        %2156 = vmatprep.mubr.f32.mxu0 0.0
        %2157 = vmatmul.mubr.f32.gmra.mrb[0].mxu0 %v2021
        %v2158 = vpop.f32.mrb[0].mxu0
        %v2159 = vadd.f32 %v390, %v2158
        %v2160 = vpop.f32.mrb[0].mxu0
        %v2161 = vadd.f32 %v390, %v2160
        %2162 = vmatprep.mubr.f32.mxu0 0.0
        %2163 = vmatmul.mubr.f32.gmra.mrb[0].mxu0 %v2024
        %v2164 = vpop.f32.mrb[0].mxu0
        %v2165 = vadd.f32 %v395, %v2164
        %v2166 = vpop.f32.mrb[0].mxu0
        %v2167 = vadd.f32 %v395, %v2166
        %2168 = vmatprep.mubr.f32.mxu0 0.0
        %2169 = vmatmul.mubr.f32.gmra.mrb[0].mxu0 %v2027
        %v2170 = vpop.f32.mrb[0].mxu0
        %v2171 = vadd.f32 %v400, %v2170
        %v2172 = vpop.f32.mrb[0].mxu0
        %v2173 = vadd.f32 %v400, %v2172
        %2174 = vmatprep.mubr.f32.mxu0 0.0
        %2175 = vmatmul.mubr.f32.gmra.mrb[0].mxu0 %v2030
        %v2176 = vpop.f32.mrb[0].mxu0
        %v2177 = vadd.f32 %v405, %v2176
        %v2178 = vpop.f32.mrb[0].mxu0
        %v2179 = vadd.f32 %v405, %v2178
        %2180 = vmatprep.mubr.f32.mxu0 0.0
        %2181 = vmatmul.mubr.f32.gmra.mrb[0].mxu0 %v2033
        %v2182 = vpop.f32.mrb[0].mxu0
        %v2183 = vadd.f32 %v410, %v2182
        %v2184 = vpop.f32.mrb[0].mxu0
        %v2185 = vadd.f32 %v410, %v2184
        %2186 = vmatprep.mubr.f32.mxu0 0.0
        %2187 = vmatmul.mubr.f32.gmra.mrb[0].mxu0 %v2036
        %v2188 = vpop.f32.mrb[0].mxu0
        %v2189 = vadd.f32 %v415, %v2188
        %v2190 = vpop.f32.mrb[0].mxu0
        %v2191 = vadd.f32 %v415, %v2190
        %2192 = vmatprep.mubr.f32.mxu0 0.0
        %2193 = vmatmul.mubr.f32.gmra.mrb[0].mxu0 %v2039
        %v2194 = vpop.f32.mrb[0].mxu0
        %v2195 = vadd.f32 %v420, %v2194
        %v2196 = vpop.f32.mrb[0].mxu0
        %v2197 = vadd.f32 %v420, %v2196
        %2198 = vmatprep.mubr.f32.mxu0 0.0
        %2199 = vmatmul.mubr.f32.gmra.mrb[0].mxu0 %v2042
        %v2200 = vpop.f32.mrb[0].mxu0
        %v2201 = vadd.f32 %v425, %v2200
        %v2202 = vpop.f32.mrb[0].mxu0
        %v2203 = vadd.f32 %v425, %v2202
        %2204 = vdwg.mxu0
        %v2205 = vmax.f32 %v2111, 0.0
        %v2206 = vmax.f32 %v2113, 0.0
        %v2207 = vmax.f32 %v2117, 0.0
        %v2208 = vmax.f32 %v2119, 0.0
        %v2209 = vmax.f32 %v2123, 0.0
        %v2210 = vmax.f32 %v2125, 0.0
        %v2211 = vmax.f32 %v2129, 0.0
        %v2212 = vmax.f32 %v2131, 0.0
        %v2213 = vmax.f32 %v2135, 0.0
        %v2214 = vmax.f32 %v2137, 0.0
        %v2215 = vmax.f32 %v2141, 0.0
        %v2216 = vmax.f32 %v2143, 0.0
        %v2217 = vmax.f32 %v2147, 0.0
        %v2218 = vmax.f32 %v2149, 0.0
        %v2219 = vmax.f32 %v2153, 0.0
        %v2220 = vmax.f32 %v2155, 0.0
        %v2221 = vmax.f32 %v2159, 0.0
        %v2222 = vmax.f32 %v2161, 0.0
        %v2223 = vmax.f32 %v2165, 0.0
        %v2224 = vmax.f32 %v2167, 0.0
        %v2225 = vmax.f32 %v2171, 0.0
        %v2226 = vmax.f32 %v2173, 0.0
        %v2227 = vmax.f32 %v2177, 0.0
        %v2228 = vmax.f32 %v2179, 0.0
        %v2229 = vmax.f32 %v2183, 0.0
        %v2230 = vmax.f32 %v2185, 0.0
        %v2231 = vmax.f32 %v2189, 0.0
        %v2232 = vmax.f32 %v2191, 0.0
        %v2233 = vmax.f32 %v2195, 0.0
        %v2234 = vmax.f32 %v2197, 0.0
        %v2235 = vmax.f32 %v2201, 0.0
        %v2236 = vmax.f32 %v2203, 0.0
        %2237 = vmatprep.subr.mxu0 %v2206
        %2238 = vmatpush1.msra.mxu0 %v2205
        %2239 = vmatprep.subr.mxu0 %v2208
        %2240 = vmatpush1.msra.mxu0 %v2207
        %2241 = vmatprep.subr.mxu0 %v2210
        %2242 = vmatpush1.msra.mxu0 %v2209
        %2243 = vmatprep.subr.mxu0 %v2212
        %2244 = vmatpush1.msra.mxu0 %v2211
        %2245 = vmatprep.subr.mxu0 %v2214
        %2246 = vmatpush1.msra.mxu0 %v2213
        %2247 = vmatprep.subr.mxu0 %v2216
        %2248 = vmatpush1.msra.mxu0 %v2215
        %2249 = vmatprep.subr.mxu0 %v2218
        %2250 = vmatpush1.msra.mxu0 %v2217
        %2251 = vmatprep.subr.mxu0 %v2220
        %2252 = vmatpush1.msra.mxu0 %v2219
        %2253 = vmatprep.subr.mxu0 %v2222
        %2254 = vmatpush1.msra.mxu0 %v2221
        %2255 = vmatprep.subr.mxu0 %v2224
        %2256 = vmatpush1.msra.mxu0 %v2223
        %2257 = vmatprep.subr.mxu0 %v2226
        %2258 = vmatpush1.msra.mxu0 %v2225
        %2259 = vmatprep.subr.mxu0 %v2228
        %2260 = vmatpush1.msra.mxu0 %v2227
        %2261 = vmatprep.subr.mxu0 %v2230
        %2262 = vmatpush1.msra.mxu0 %v2229
        %2263 = vmatprep.subr.mxu0 %v2232
        %2264 = vmatpush1.msra.mxu0 %v2231
        %2265 = vmatprep.subr.mxu0 %v2234
        %2266 = vmatpush1.msra.mxu0 %v2233
        %2267 = vmatprep.subr.mxu0 %v2236
        %2268 = vmatpush1.msra.mxu0 %v2235
        %2269 = vmatprep.subr.mxu0 0.0
        %2270 = vmatpush1.msra.mxu0 0.0
        %2271 = vmatprep.subr.mxu0 0.0
        %2272 = vmatpush1.msra.mxu0 0.0
        %2273 = vmatprep.subr.mxu0 0.0
        %2274 = vmatpush1.msra.mxu0 0.0
        %2275 = vmatprep.subr.mxu0 0.0
        %2276 = vmatpush1.msra.mxu0 0.0
        %2277 = vmatprep.subr.mxu0 0.0
        %2278 = vmatpush1.msra.mxu0 0.0
        %2279 = vmatprep.subr.mxu0 0.0
        %2280 = vmatpush1.msra.mxu0 0.0
        %2281 = vmatprep.subr.mxu0 0.0
        %2282 = vmatpush1.msra.mxu0 0.0
        %2283 = vmatprep.subr.mxu0 0.0
        %2284 = vmatpush1.msra.mxu0 0.0
        %2285 = vmatprep.subr.mxu0 0.0
        %2286 = vmatpush1.msra.mxu0 0.0
        %2287 = vmatprep.subr.mxu0 0.0
        %2288 = vmatpush1.msra.mxu0 0.0
        %2289 = vmatprep.subr.mxu0 0.0
        %2290 = vmatpush1.msra.mxu0 0.0
        %2291 = vmatprep.subr.mxu0 0.0
        %2292 = vmatpush1.msra.mxu0 0.0
        %2293 = vmatprep.subr.mxu0 0.0
        %2294 = vmatpush1.msra.mxu0 0.0
        %2295 = vmatprep.subr.mxu0 0.0
        %2296 = vmatpush1.msra.mxu0 0.0
        %2297 = vmatprep.subr.mxu0 0.0
        %2298 = vmatpush1.msra.mxu0 0.0
        %2299 = vmatprep.subr.mxu0 0.0
        %2300 = vmatpush1.msra.mxu0 0.0
        %2301 = vmatprep.mubr.f32.mxu0 0.0
        %2302 = vmatmul.mubr.f32.gmra.mrb[0].mxu0 %v274
        %v2303 = vpop.f32.mrb[0].mxu0
        %v2304 = vadd.f32 %v672, %v2303
        %v2305 = vpop.f32.mrb[0].mxu0
        %v2306 = vadd.f32 %v672, %v2305
        %2307 = vmatprep.mubr.f32.mxu0 0.0
        %2308 = vmatmul.mubr.f32.gmra.mrb[0].mxu0 %v275
        %v2309 = vpop.f32.mrb[0].mxu0
        %v2310 = vadd.f32 %v677, %v2309
        %v2311 = vpop.f32.mrb[0].mxu0
        %v2312 = vadd.f32 %v677, %v2311
        %2313 = vmatprep.mubr.f32.mxu0 0.0
        %2314 = vmatmul.mubr.f32.gmra.mrb[0].mxu0 %v276
        %v2315 = vpop.f32.mrb[0].mxu0
        %v2316 = vadd.f32 %v682, %v2315
        %v2317 = vpop.f32.mrb[0].mxu0
        %v2318 = vadd.f32 %v682, %v2317
        %2319 = vmatprep.mubr.f32.mxu0 0.0
        %2320 = vmatmul.mubr.f32.gmra.mrb[0].mxu0 %v277
        %v2321 = vpop.f32.mrb[0].mxu0
        %v2322 = vadd.f32 %v687, %v2321
        %v2323 = vpop.f32.mrb[0].mxu0
        %v2324 = vadd.f32 %v687, %v2323
        %2325 = vmatprep.mubr.f32.mxu0 0.0
        %2326 = vmatmul.mubr.f32.gmra.mrb[0].mxu0 %v278
        %v2327 = vpop.f32.mrb[0].mxu0
        %v2328 = vadd.f32 %v692, %v2327
        %v2329 = vpop.f32.mrb[0].mxu0
        %v2330 = vadd.f32 %v692, %v2329
        %2331 = vmatprep.mubr.f32.mxu0 0.0
        %2332 = vmatmul.mubr.f32.gmra.mrb[0].mxu0 %v279
        %v2333 = vpop.f32.mrb[0].mxu0
        %v2334 = vadd.f32 %v697, %v2333
        %v2335 = vpop.f32.mrb[0].mxu0
        %v2336 = vadd.f32 %v697, %v2335
        %2337 = vmatprep.mubr.f32.mxu0 0.0
        %2338 = vmatmul.mubr.f32.gmra.mrb[0].mxu0 %v280
        %v2339 = vpop.f32.mrb[0].mxu0
        %v2340 = vadd.f32 %v702, %v2339
        %v2341 = vpop.f32.mrb[0].mxu0
        %v2342 = vadd.f32 %v702, %v2341
        %2343 = vmatprep.mubr.f32.mxu0 0.0
        %2344 = vmatmul.mubr.f32.gmra.mrb[0].mxu0 %v281
        %v2345 = vpop.f32.mrb[0].mxu0
        %v2346 = vadd.f32 %v707, %v2345
        %v2347 = vpop.f32.mrb[0].mxu0
        %v2348 = vadd.f32 %v707, %v2347
        %2349 = vmatprep.mubr.f32.mxu0 0.0
        %2350 = vmatmul.mubr.f32.gmra.mrb[0].mxu0 %v282
        %v2351 = vpop.f32.mrb[0].mxu0
        %v2352 = vadd.f32 %v712, %v2351
        %v2353 = vpop.f32.mrb[0].mxu0
        %v2354 = vadd.f32 %v712, %v2353
        %2355 = vmatprep.mubr.f32.mxu0 0.0
        %2356 = vmatmul.mubr.f32.gmra.mrb[0].mxu0 %v283
        %v2357 = vpop.f32.mrb[0].mxu0
        %v2358 = vadd.f32 %v717, %v2357
        %v2359 = vpop.f32.mrb[0].mxu0
        %v2360 = vadd.f32 %v717, %v2359
        %2361 = vmatprep.mubr.f32.mxu0 0.0
        %2362 = vmatmul.mubr.f32.gmra.mrb[0].mxu0 %v284
        %v2363 = vpop.f32.mrb[0].mxu0
        %v2364 = vadd.f32 %v722, %v2363
        %v2365 = vpop.f32.mrb[0].mxu0
        %v2366 = vadd.f32 %v722, %v2365
        %2367 = vmatprep.mubr.f32.mxu0 0.0
        %2368 = vmatmul.mubr.f32.gmra.mrb[0].mxu0 %v285
        %v2369 = vpop.f32.mrb[0].mxu0
        %v2370 = vadd.f32 %v727, %v2369
        %v2371 = vpop.f32.mrb[0].mxu0
        %v2372 = vadd.f32 %v727, %v2371
        %2373 = vmatprep.mubr.f32.mxu0 0.0
        %2374 = vmatmul.mubr.f32.gmra.mrb[0].mxu0 %v286
        %v2375 = vpop.f32.mrb[0].mxu0
        %v2376 = vadd.f32 %v732, %v2375
        %v2377 = vpop.f32.mrb[0].mxu0
        %v2378 = vadd.f32 %v732, %v2377
        %2379 = vmatprep.mubr.f32.mxu0 0.0
        %2380 = vmatmul.mubr.f32.gmra.mrb[0].mxu0 %v287
        %v2381 = vpop.f32.mrb[0].mxu0
        %v2382 = vadd.f32 %v737, %v2381
        %v2383 = vpop.f32.mrb[0].mxu0
        %v2384 = vadd.f32 %v737, %v2383
        %2385 = vmatprep.mubr.f32.mxu0 0.0
        %2386 = vmatmul.mubr.f32.gmra.mrb[0].mxu0 %v288
        %v2387 = vpop.f32.mrb[0].mxu0
        %v2388 = vadd.f32 %v742, %v2387
        %v2389 = vpop.f32.mrb[0].mxu0
        %v2390 = vadd.f32 %v742, %v2389
        %2391 = vmatprep.mubr.f32.mxu0 0.0
        %2392 = vmatmul.mubr.f32.gmra.mrb[0].mxu0 %v289
        %v2393 = vpop.f32.mrb[0].mxu0
        %v2394 = vadd.f32 %v747, %v2393
        %v2395 = vpop.f32.mrb[0].mxu0
        %v2396 = vadd.f32 %v747, %v2395
        %2397 = vdwg.mxu0
        %s2398 = sld [smem:[#allocation3 + $0x3]]
        %v2399 = vstv %s2398
        %v2400 = vmul.f32 %v330, %v2399
        %v2402 = vlaneseq
        %v2403 = vshrl.u32 %v2402, 7
        %v2404 = vsub.s32 0, %v2403
        %v2405 = vrot.slane %v2400, %v2404
        %v2406 = vlaneseq
        %v2407 = vshrl.u32 %v2406, 7
        %v2408 = vsub.s32 1, %v2407
        %v2409 = vrot.slane %v2400, %v2408
        %v2412 = vadd.f32 %v2304, %v2405
        %v2413 = vadd.f32 %v2306, %v2409
        %v2414 = vadd.f32 %v2310, %v2405
        %v2415 = vadd.f32 %v2312, %v2409
        %v2416 = vadd.f32 %v2316, %v2405
        %v2417 = vadd.f32 %v2318, %v2409
        %v2418 = vadd.f32 %v2322, %v2405
        %v2419 = vadd.f32 %v2324, %v2409
        %v2420 = vadd.f32 %v2328, %v2405
        %v2421 = vadd.f32 %v2330, %v2409
        %v2422 = vadd.f32 %v2334, %v2405
        %v2423 = vadd.f32 %v2336, %v2409
        %v2424 = vadd.f32 %v2340, %v2405
        %v2425 = vadd.f32 %v2342, %v2409
        %v2426 = vadd.f32 %v2346, %v2405
        %v2427 = vadd.f32 %v2348, %v2409
        %v2428 = vadd.f32 %v2352, %v2405
        %v2429 = vadd.f32 %v2354, %v2409
        %v2430 = vadd.f32 %v2358, %v2405
        %v2431 = vadd.f32 %v2360, %v2409
        %v2432 = vadd.f32 %v2364, %v2405
        %v2433 = vadd.f32 %v2366, %v2409
        %v2434 = vadd.f32 %v2370, %v2405
        %v2435 = vadd.f32 %v2372, %v2409
        %v2436 = vadd.f32 %v2376, %v2405
        %v2437 = vadd.f32 %v2378, %v2409
        %v2438 = vadd.f32 %v2382, %v2405
        %v2439 = vadd.f32 %v2384, %v2409
        %v2440 = vadd.f32 %v2388, %v2405
        %v2441 = vadd.f32 %v2390, %v2409
        %v2442 = vadd.f32 %v2394, %v2405
        %v2443 = vadd.f32 %v2396, %v2409
        %2444 = vst [vmem:[%s264 + $0x300] sm:$0xff] %v2412
        %2445 = vst [vmem:[%s264 + $0x308] sm:$0xff] %v2413
        %2446 = vst [vmem:[%s264 + $0x310] sm:$0xff] %v2414
        %2447 = vst [vmem:[%s264 + $0x318] sm:$0xff] %v2415
        %2448 = vst [vmem:[%s264 + $0x320] sm:$0xff] %v2416
        %2449 = vst [vmem:[%s264 + $0x328] sm:$0xff] %v2417
        %2450 = vst [vmem:[%s264 + $0x330] sm:$0xff] %v2418
        %2451 = vst [vmem:[%s264 + $0x338] sm:$0xff] %v2419
        %2452 = vst [vmem:[%s264 + $0x340] sm:$0xff] %v2420
        %2453 = vst [vmem:[%s264 + $0x348] sm:$0xff] %v2421
        %2454 = vst [vmem:[%s264 + $0x350] sm:$0xff] %v2422
        %2455 = vst [vmem:[%s264 + $0x358] sm:$0xff] %v2423
        %2456 = vst [vmem:[%s264 + $0x360] sm:$0xff] %v2424
        %2457 = vst [vmem:[%s264 + $0x368] sm:$0xff] %v2425
        %2458 = vst [vmem:[%s264 + $0x370] sm:$0xff] %v2426
        %2459 = vst [vmem:[%s264 + $0x378] sm:$0xff] %v2427
        %2460 = vst [vmem:[%s264 + $0x380] sm:$0xff] %v2428
        %2461 = vst [vmem:[%s264 + $0x388] sm:$0xff] %v2429
        %2462 = vst [vmem:[%s264 + $0x390] sm:$0xff] %v2430
        %2463 = vst [vmem:[%s264 + $0x398] sm:$0xff] %v2431
        %2464 = vst [vmem:[%s264 + $0x3a0] sm:$0xff] %v2432
        %2465 = vst [vmem:[%s264 + $0x3a8] sm:$0xff] %v2433
        %2466 = vst [vmem:[%s264 + $0x3b0] sm:$0xff] %v2434
        %2467 = vst [vmem:[%s264 + $0x3b8] sm:$0xff] %v2435
        %2468 = vst [vmem:[%s264 + $0x3c0] sm:$0xff] %v2436
        %2469 = vst [vmem:[%s264 + $0x3c8] sm:$0xff] %v2437
        %2470 = vst [vmem:[%s264 + $0x3d0] sm:$0xff] %v2438
        %2471 = vst [vmem:[%s264 + $0x3d8] sm:$0xff] %v2439
        %2472 = vst [vmem:[%s264 + $0x3e0] sm:$0xff] %v2440
        %2473 = vst [vmem:[%s264 + $0x3e8] sm:$0xff] %v2441
        %2474 = vst [vmem:[%s264 + $0x3f0] sm:$0xff] %v2442
        %2475 = vst [vmem:[%s264 + $0x3f8] sm:$0xff] %v2443
        %s2476 = sand.u32 %s171, 1
        %s2477 = scalar_lea.sflag [#allocation5], %s2476
        %s2478 = sand.u32 %s171, 1
        %s2479 = smul.addr %s2478, 1024
        %s2480 = scalar_lea.vmem [#allocation4], %s2479
        // Predicated region
        $region45: #{tpu_custom_call.1} parent=43 // pred_check
          %p2481 = pneg %p181
        $region46: #{tpu_custom_call.1} parent=43 // pred_check_branch
          %2483 = sbr.rel (%p2481) target = $region48
        $region47: #{tpu_custom_call.1} parent=43 // pred_region
          %s2485 = ssub.s32 16384, 16384
          %2486 = vsyncadd %s2477, %s2485
          %s2487 = smul.addr %s27, 128
          %s2488 = smul.addr %s2487, 128
          %s2489 = scalar_lea.hbm %s7, %s2488
          %s2490 = sshll.u32 %s2480, 4
          %s2491 = int_to_ptr.vmem [resolvable:$true] %s2490
          %2496 = dma.vmem_to_hbm [thread:$0]  %s2491, 16384, %s2489, %s2477, 256, 256, 16
        $region48: #{tpu_custom_call.1} parent=43 // pred_fallthru
          _
      $region44: #{tpu_custom_call.1} parent=5 // pred_fallthru
        _
      %p2497 = scmp.le.s32.totalorder 2, %s22
      // Predicated region
      $region49: #{tpu_custom_call.1} parent=5 // pred_check
        %p2498 = pneg %p2497
      $region50: #{tpu_custom_call.1} parent=5 // pred_check_branch
        %2500 = sbr.rel (%p2498) target = $region52
      $region51: #{tpu_custom_call.1} parent=5 // pred_region
        %s2501 = ssub.s32 %s22, 2
        // Predicated region
        $region53: #{tpu_custom_call.1} parent=51 // pred_check
          %p2502 = pneg %p187
        $region54: #{tpu_custom_call.1} parent=51 // pred_check_branch
          %2504 = sbr.rel (%p2502) target = $region56
        $region55: #{tpu_custom_call.1} parent=51 // pred_region
          %s2505 = sand.u32 %s172, 1
          %s2506 = scalar_lea.sflag [#allocation5], %s2505
          %s2507 = sand.u32 %s172, 1
          %s2508 = smul.addr %s2507, 1024
          %s2509 = scalar_lea.vmem [#allocation4], %s2508
          %2510 = dma.done %s2506, 16384
        $region56: #{tpu_custom_call.1} parent=51 // pred_fallthru
          _
      $region52: #{tpu_custom_call.1} parent=5 // pred_fallthru
        _
    $region6: #{tpu_custom_call.1} parent=1 // loop_footer
      %s26 = sadd.s32 1, %s22
    $region7: #{tpu_custom_call.1} parent=1 // loop_footer_branch
      %21 = sbr.rel target = $region3
    $region8: #{tpu_custom_call.1} parent=1 // loop_exit
      _
    %2511 = vsyncpa [#allocation5], 1
    %s2512 = scalar_lea.sflag [#allocation5], 1
    %2513 = vsyncpa %s2512, 1

// kernel: tpu_custom_call.1
$region0: #{tpu_custom_call.1}
  #allocation0 [shape = 'u32[]', space=smem, size = 0x4, offset = 0x4, fixed_abs, tag = 'smem constant byte address 0x4 - core index']
  #allocation1 [shape = 'u32[144,128]{1,0:T(1,128)}', space=vmem, size = 0x12000, scoped, tag = 'internal scratch']
  #allocation2 [shape = 's32[1]{0}', space=sflag, size = 0x4, scoped, tag = 'scoped memory for tpu_custom_call.1']
  #allocation3 [shape = 'u8[512]{0}', space=smem, size = 0x200, scoped, tag = 'prefetched SMEM operand 0']
  %s0 = inlined_call_operand.vmem [shape: f32[4], index: 0, kind: input, shape index: {}]
  %s1 = inlined_call_operand.vmem [shape: f32[2,32,256], index: 1, kind: input, shape index: {}]
  %s2 = inlined_call_operand.vmem [shape: f32[2,1,256], index: 2, kind: input, shape index: {}]
  %s3 = inlined_call_operand.vmem [shape: f32[512,32], index: 3, kind: input, shape index: {}]
  %s4 = inlined_call_operand.vmem [shape: f32[128,1], index: 4, kind: input, shape index: {}]
  %s5 = inlined_call_operand.vmem [shape: f32[128,128], index: 5, kind: input, shape index: {}]
  %s6 = inlined_call_operand.vmem [shape: f32[128,1], index: 6, kind: input, shape index: {}]
  %s7 = inlined_call_operand.hbm [shape: f32[2,512,256], index: 7, kind: output, shape index: {}]
  %s8 = sld [smem:[#allocation0]]
  $region57: #{tpu_custom_call.1} parent=0
    _
  %s10 = ssub.s32 1, %s8
  %s11 = scalar_select 0, %s10, %s8
  %s12 = sshll.u32 %s0, 4
  %s13 = int_to_ptr.vmem [resolvable:$true] %s12
  %15 = dma.vmem_to_smem %s13, 16, [#allocation3], [#allocation2]
  %16 = dma.done [#allocation2], 16
  %17 = sfence
  $region1: #{tpu_custom_call.1} parent=0
    #allocation4 [shape = 'u8[1048576]{0}', space=vmem, size = 0x100000, scoped, tag = 'output window, operand 0']
    #allocation5 [shape = 's32[2]{0}', space=sflag, size = 0x8, scoped, tag = 'scoped memory for tpu_custom_call.1']
    %18 = vsyncpa [#allocation5], 0
    %s19 = scalar_lea.sflag [#allocation5], 1
    %20 = vsyncpa %s19, 0
    loop: start=0, step=1, limit=4
    $region2: #{tpu_custom_call.1} parent=1 // loop_pre_header
      _
    $region3: #{tpu_custom_call.1} parent=1 // loop_header
      %s22 = sphi 0, %s26
      %p23 = scmp.ge.s32.totalorder %s22, 4
      %s32 = sphi 0, %s34
      %s35 = sphi 0, %s32
      %s36 = sphi 0, %s35
      %s52 = sphi 0, %s36
      %s58 = sphi 0, %s60
      %s61 = sphi 0, %s58
      %s62 = sphi 0, %s61
      %s78 = sphi 0, %s62
      %s82 = sphi 0, %s82
      %s84 = sphi 0, %s82
      %s85 = sphi 0, %s84
      %s99 = sphi 0, %s85
      %s103 = sphi 0, %s103
      %s105 = sphi 0, %s103
      %s106 = sphi 0, %s105
      %s120 = sphi 0, %s106
      %s124 = sphi 0, %s124
      %s126 = sphi 0, %s124
      %s127 = sphi 0, %s126
      %s141 = sphi 0, %s127
      %s145 = sphi 0, %s145
      %s147 = sphi 0, %s145
      %s148 = sphi 0, %s147
      %s162 = sphi 0, %s148
      %s168 = sphi 0, %s170
      %s171 = sphi 0, %s168
      %s172 = sphi 0, %s171
      %s188 = sphi 0, %s172
    $region4: #{tpu_custom_call.1} parent=1 // loop_header_branch
      %25 = sbr.rel (%p23) target = $region8
    $region5: #{tpu_custom_call.1} parent=1 // loop_body
      %s27 = ssub.s32 %s22, 1
      %s28 = ssub.s32 %s22, 2
      %s29 = sadd.s32 %s22, 1
      %s30 = ssub.s32 %s22, %s29
      %p31 = scmp.eq.s32.totalorder %s30, 0
      %s33 = sadd.s32 %s32, 1
      %s34 = scalar_select %p31, %s32, %s33
      %p37 = pneg %p31
      %p38 = scmp.eq.s32.totalorder %s22, 1
      %p39 = por %p37, %p38
      %p40 = scmp.ne.s32.totalorder %s32, %s35
      %p41 = scmp.eq.s32.totalorder %s22, 0
      %p42 = por %p40, %p41
      %p43 = scmp.ne.s32.totalorder %s32, %s35
      %p44 = scmp.eq.s32.totalorder %s27, 1
      %p45 = por %p43, %p44
      %p46 = scmp.ne.s32.totalorder %s35, %s36
      %p47 = scmp.eq.s32.totalorder %s27, 0
      %p48 = por %p46, %p47
      %p49 = scmp.ne.s32.totalorder %s35, %s36
      %p50 = scmp.eq.s32.totalorder %s28, 1
      %p51 = por %p49, %p50
      %p53 = scmp.ne.s32.totalorder %s36, %s52
      %p54 = scmp.eq.s32.totalorder %s28, 0
      %p55 = por %p53, %p54
      %s56 = ssub.s32 %s22, %s29
      %p57 = scmp.eq.s32.totalorder %s56, 0
      %s59 = sadd.s32 %s58, 1
      %s60 = scalar_select %p57, %s58, %s59
      %p63 = pneg %p57
      %p64 = scmp.eq.s32.totalorder %s22, 1
      %p65 = por %p63, %p64
      %p66 = scmp.ne.s32.totalorder %s58, %s61
      %p67 = scmp.eq.s32.totalorder %s22, 0
      %p68 = por %p66, %p67
      %p69 = scmp.ne.s32.totalorder %s58, %s61
      %p70 = scmp.eq.s32.totalorder %s27, 1
      %p71 = por %p69, %p70
      %p72 = scmp.ne.s32.totalorder %s61, %s62
      %p73 = scmp.eq.s32.totalorder %s27, 0
      %p74 = por %p72, %p73
      %p75 = scmp.ne.s32.totalorder %s61, %s62
      %p76 = scmp.eq.s32.totalorder %s28, 1
      %p77 = por %p75, %p76
      %p79 = scmp.ne.s32.totalorder %s62, %s78
      %p80 = scmp.eq.s32.totalorder %s28, 0
      %p81 = por %p79, %p80
      %s83 = sadd.s32 %s82, 1
      %p86 = scmp.eq.s32.totalorder %s22, 1
      %p87 = scmp.ne.s32.totalorder %s82, %s84
      %p88 = scmp.eq.s32.totalorder %s22, 0
      %p89 = por %p87, %p88
      %p90 = scmp.ne.s32.totalorder %s82, %s84
      %p91 = scmp.eq.s32.totalorder %s27, 1
      %p92 = por %p90, %p91
      %p93 = scmp.ne.s32.totalorder %s84, %s85
      %p94 = scmp.eq.s32.totalorder %s27, 0
      %p95 = por %p93, %p94
      %p96 = scmp.ne.s32.totalorder %s84, %s85
      %p97 = scmp.eq.s32.totalorder %s28, 1
      %p98 = por %p96, %p97
      %p100 = scmp.ne.s32.totalorder %s85, %s99
      %p101 = scmp.eq.s32.totalorder %s28, 0
      %p102 = por %p100, %p101
      %s104 = sadd.s32 %s103, 1
      %p107 = scmp.eq.s32.totalorder %s22, 1
      %p108 = scmp.ne.s32.totalorder %s103, %s105
      %p109 = scmp.eq.s32.totalorder %s22, 0
      %p110 = por %p108, %p109
      %p111 = scmp.ne.s32.totalorder %s103, %s105
      %p112 = scmp.eq.s32.totalorder %s27, 1
      %p113 = por %p111, %p112
      %p114 = scmp.ne.s32.totalorder %s105, %s106
      %p115 = scmp.eq.s32.totalorder %s27, 0
      %p116 = por %p114, %p115
      %p117 = scmp.ne.s32.totalorder %s105, %s106
      %p118 = scmp.eq.s32.totalorder %s28, 1
      %p119 = por %p117, %p118
      %p121 = scmp.ne.s32.totalorder %s106, %s120
      %p122 = scmp.eq.s32.totalorder %s28, 0
      %p123 = por %p121, %p122
      %s125 = sadd.s32 %s124, 1
      %p128 = scmp.eq.s32.totalorder %s22, 1
      %p129 = scmp.ne.s32.totalorder %s124, %s126
      %p130 = scmp.eq.s32.totalorder %s22, 0
      %p131 = por %p129, %p130
      %p132 = scmp.ne.s32.totalorder %s124, %s126
      %p133 = scmp.eq.s32.totalorder %s27, 1
      %p134 = por %p132, %p133
      %p135 = scmp.ne.s32.totalorder %s126, %s127
      %p136 = scmp.eq.s32.totalorder %s27, 0
      %p137 = por %p135, %p136
      %p138 = scmp.ne.s32.totalorder %s126, %s127
      %p139 = scmp.eq.s32.totalorder %s28, 1
      %p140 = por %p138, %p139
      %p142 = scmp.ne.s32.totalorder %s127, %s141
      %p143 = scmp.eq.s32.totalorder %s28, 0
      %p144 = por %p142, %p143
      %s146 = sadd.s32 %s145, 1
      %p149 = scmp.eq.s32.totalorder %s22, 1
      %p150 = scmp.ne.s32.totalorder %s145, %s147
      %p151 = scmp.eq.s32.totalorder %s22, 0
      %p152 = por %p150, %p151
      %p153 = scmp.ne.s32.totalorder %s145, %s147
      %p154 = scmp.eq.s32.totalorder %s27, 1
      %p155 = por %p153, %p154
      %p156 = scmp.ne.s32.totalorder %s147, %s148
      %p157 = scmp.eq.s32.totalorder %s27, 0
      %p158 = por %p156, %p157
      %p159 = scmp.ne.s32.totalorder %s147, %s148
      %p160 = scmp.eq.s32.totalorder %s28, 1
      %p161 = por %p159, %p160
      %p163 = scmp.ne.s32.totalorder %s148, %s162
      %p164 = scmp.eq.s32.totalorder %s28, 0
      %p165 = por %p163, %p164
      %s166 = ssub.s32 %s22, %s29
      %p167 = scmp.eq.s32.totalorder %s166, 0
      %s169 = sadd.s32 %s168, 1
      %s170 = scalar_select %p167, %s168, %s169
      %p173 = pneg %p167
      %p174 = scmp.eq.s32.totalorder %s22, 1
      %p175 = por %p173, %p174
      %p176 = scmp.ne.s32.totalorder %s168, %s171
      %p177 = scmp.eq.s32.totalorder %s22, 0
      %p178 = por %p176, %p177
      %p179 = scmp.ne.s32.totalorder %s168, %s171
      %p180 = scmp.eq.s32.totalorder %s27, 1
      %p181 = por %p179, %p180
      %p182 = scmp.ne.s32.totalorder %s171, %s172
      %p183 = scmp.eq.s32.totalorder %s27, 0
      %p184 = por %p182, %p183
      %p185 = scmp.ne.s32.totalorder %s171, %s172
      %p186 = scmp.eq.s32.totalorder %s28, 1
      %p187 = por %p185, %p186
      %p189 = scmp.ne.s32.totalorder %s172, %s188
      %p190 = scmp.eq.s32.totalorder %s28, 0
      %p191 = por %p189, %p190
      %p192 = scmp.le.s32.totalorder 1, %s22
      %p193 = scmp.lt.s32.totalorder %s22, 3
      %p194 = pnand %p192, %p193
      %p195 = pneg %p194
      // Predicated region
      $region9: #{tpu_custom_call.1} parent=5 // pred_check
        _
      $region10: #{tpu_custom_call.1} parent=5 // pred_check_branch
        %197 = sbr.rel (%p194) target = $region12
      $region11: #{tpu_custom_call.1} parent=5 // pred_region
        %s198 = ssub.s32 %s22, 1
        // Predicated region
        $region13: #{tpu_custom_call.1} parent=11 // pred_check
          %p199 = pneg %p95
        $region14: #{tpu_custom_call.1} parent=11 // pred_check_branch
          %201 = sbr.rel (%p199) target = $region16
        $region15: #{tpu_custom_call.1} parent=11 // pred_region
          _
        $region16: #{tpu_custom_call.1} parent=11 // pred_fallthru
          _
        // Predicated region
        $region17: #{tpu_custom_call.1} parent=11 // pred_check
          %p202 = pneg %p116
        $region18: #{tpu_custom_call.1} parent=11 // pred_check_branch
          %204 = sbr.rel (%p202) target = $region20
        $region19: #{tpu_custom_call.1} parent=11 // pred_region
          _
        $region20: #{tpu_custom_call.1} parent=11 // pred_fallthru
          _
        // Predicated region
        $region21: #{tpu_custom_call.1} parent=11 // pred_check
          %p205 = pneg %p137
        $region22: #{tpu_custom_call.1} parent=11 // pred_check_branch
          %207 = sbr.rel (%p205) target = $region24
        $region23: #{tpu_custom_call.1} parent=11 // pred_region
          _
        $region24: #{tpu_custom_call.1} parent=11 // pred_fallthru
          _
        // Predicated region
        $region25: #{tpu_custom_call.1} parent=11 // pred_check
          %p208 = pneg %p158
        $region26: #{tpu_custom_call.1} parent=11 // pred_check_branch
          %210 = sbr.rel (%p208) target = $region28
        $region27: #{tpu_custom_call.1} parent=11 // pred_region
          _
        $region28: #{tpu_custom_call.1} parent=11 // pred_fallthru
          _
      $region12: #{tpu_custom_call.1} parent=5 // pred_fallthru
        _
      %p211 = scmp.lt.s32.totalorder %s22, 2
      // Predicated region
      $region29: #{tpu_custom_call.1} parent=5 // pred_check
        %p212 = pneg %p211
      $region30: #{tpu_custom_call.1} parent=5 // pred_check_branch
        %214 = sbr.rel (%p212) target = $region32
      $region31: #{tpu_custom_call.1} parent=5 // pred_region
        // Predicated region
        $region33: #{tpu_custom_call.1} parent=31 // pred_check
          %p215 = pneg %p42
        $region34: #{tpu_custom_call.1} parent=31 // pred_check_branch
          %217 = sbr.rel (%p215) target = $region36
        $region35: #{tpu_custom_call.1} parent=31 // pred_region
          %p218 = scmp.lt.s32.totalorder %s22, 1
          %s219 = scalar_select %p218, %s22, 1
          %s220 = smul.addr %s219, 8
          %s221 = smul.addr %s220, 8
          %s222 = scalar_lea.vmem %s1, %s221
        $region36: #{tpu_custom_call.1} parent=31 // pred_fallthru
          _
        // Predicated region
        $region37: #{tpu_custom_call.1} parent=31 // pred_check
          %p223 = pneg %p68
        $region38: #{tpu_custom_call.1} parent=31 // pred_check_branch
          %225 = sbr.rel (%p223) target = $region40
        $region39: #{tpu_custom_call.1} parent=31 // pred_region
          %p226 = scmp.lt.s32.totalorder %s22, 1
          %s227 = scalar_select %p226, %s22, 1
          %s228 = smul.addr %s227, 2
          %s229 = scalar_lea.vmem %s2, %s228
        $region40: #{tpu_custom_call.1} parent=31 // pred_fallthru
          _
      $region32: #{tpu_custom_call.1} parent=5 // pred_fallthru
        _
      %p230 = scmp.le.s32.totalorder 1, %s22
      %p231 = scmp.lt.s32.totalorder %s22, 3
      %p232 = pnand %p230, %p231
      %p233 = pneg %p232
      // Predicated region
      $region41: #{tpu_custom_call.1} parent=5 // pred_check
        _
      $region42: #{tpu_custom_call.1} parent=5 // pred_check_branch
        %235 = sbr.rel (%p232) target = $region44
      $region43: #{tpu_custom_call.1} parent=5 // pred_region
        %s236 = ssub.s32 %s22, 1
        %p237 = scmp.lt.s32.totalorder %s27, 1
        %s238 = scalar_select %p237, %s27, 1
        %s239 = smul.addr %s238, 8
        %s240 = smul.addr %s239, 8
        %s241 = scalar_lea.vmem %s1, %s240
        %p242 = pneg %p48
        %p243 = pneg %p45
        %p244 = scmp.lt.s32.totalorder %s27, 1
        %s245 = scalar_select %p244, %s27, 1
        %s246 = smul.addr %s245, 2
        %s247 = scalar_lea.vmem %s2, %s246
        %p248 = pneg %p74
        %p249 = pneg %p71
        %p250 = pneg %p95
        %p251 = pneg %p92
        %p252 = pneg %p116
        %p253 = pneg %p113
        %p254 = pneg %p137
        %p255 = pneg %p134
        %p256 = pneg %p158
        %p257 = pneg %p155
        %p258 = pneg %p184
        %p259 = pneg %p181
        %s260 = sand.u32 %s171, 1
        %s261 = scalar_lea.sflag [#allocation5], %s260
        %s262 = sand.u32 %s171, 1
        %s263 = smul.addr %s262, 1024
        %s264 = scalar_lea.vmem [#allocation4], %s263
        %p265 = scmp.lt.s32.totalorder %s27, 1
        %s266 = scalar_select %p265, %s27, 1
        %s267 = smul.addr %s266, 8
        %s268 = smul.addr %s267, 8
        %s269 = scalar_lea.vmem %s1, %s268
        %p270 = scmp.lt.s32.totalorder %s27, 1
        %s271 = scalar_select %p270, %s27, 1
        %s272 = smul.addr %s271, 2
        %s273 = scalar_lea.vmem %s2, %s272
        %v274 = vld [vmem:[%s5] sm:$0xff]
        %v275 = vld [vmem:[%s5 + $0x8] sm:$0xff]
        %v276 = vld [vmem:[%s5 + $0x10] sm:$0xff]
        %v277 = vld [vmem:[%s5 + $0x18] sm:$0xff]
        %v278 = vld [vmem:[%s5 + $0x20] sm:$0xff]
        %v279 = vld [vmem:[%s5 + $0x28] sm:$0xff]
        %v280 = vld [vmem:[%s5 + $0x30] sm:$0xff]
        %v281 = vld [vmem:[%s5 + $0x38] sm:$0xff]
        %v282 = vld [vmem:[%s5 + $0x40] sm:$0xff]
        %v283 = vld [vmem:[%s5 + $0x48] sm:$0xff]
        %v284 = vld [vmem:[%s5 + $0x50] sm:$0xff]
        %v285 = vld [vmem:[%s5 + $0x58] sm:$0xff]
        %v286 = vld [vmem:[%s5 + $0x60] sm:$0xff]
        %v287 = vld [vmem:[%s5 + $0x68] sm:$0xff]
        %v288 = vld [vmem:[%s5 + $0x70] sm:$0xff]
        %v289 = vld [vmem:[%s5 + $0x78] sm:$0xff]
        %v290 = vld [vmem:[%s4] sm:$0xff]
        %v291 = vld [vmem:[%s4 + $0x8] sm:$0xff]
        %v292 = vld [vmem:[%s4 + $0x10] sm:$0xff]
        %v293 = vld [vmem:[%s4 + $0x18] sm:$0xff]
        %v294 = vld [vmem:[%s4 + $0x20] sm:$0xff]
        %v295 = vld [vmem:[%s4 + $0x28] sm:$0xff]
        %v296 = vld [vmem:[%s4 + $0x30] sm:$0xff]
        %v297 = vld [vmem:[%s4 + $0x38] sm:$0xff]
        %v298 = vld [vmem:[%s4 + $0x40] sm:$0xff]
        %v299 = vld [vmem:[%s4 + $0x48] sm:$0xff]
        %v300 = vld [vmem:[%s4 + $0x50] sm:$0xff]
        %v301 = vld [vmem:[%s4 + $0x58] sm:$0xff]
        %v302 = vld [vmem:[%s4 + $0x60] sm:$0xff]
        %v303 = vld [vmem:[%s4 + $0x68] sm:$0xff]
        %v304 = vld [vmem:[%s4 + $0x70] sm:$0xff]
        %v305 = vld [vmem:[%s4 + $0x78] sm:$0xff]
        %v306 = vld [vmem:[%s6] sm:$0xff]
        %v307 = vld [vmem:[%s6 + $0x8] sm:$0xff]
        %v308 = vld [vmem:[%s6 + $0x10] sm:$0xff]
        %v309 = vld [vmem:[%s6 + $0x18] sm:$0xff]
        %v310 = vld [vmem:[%s6 + $0x20] sm:$0xff]
        %v311 = vld [vmem:[%s6 + $0x28] sm:$0xff]
        %v312 = vld [vmem:[%s6 + $0x30] sm:$0xff]
        %v313 = vld [vmem:[%s6 + $0x38] sm:$0xff]
        %v314 = vld [vmem:[%s6 + $0x40] sm:$0xff]
        %v315 = vld [vmem:[%s6 + $0x48] sm:$0xff]
        %v316 = vld [vmem:[%s6 + $0x50] sm:$0xff]
        %v317 = vld [vmem:[%s6 + $0x58] sm:$0xff]
        %v318 = vld [vmem:[%s6 + $0x60] sm:$0xff]
        %v319 = vld [vmem:[%s6 + $0x68] sm:$0xff]
        %v320 = vld [vmem:[%s6 + $0x70] sm:$0xff]
        %v321 = vld [vmem:[%s6 + $0x78] sm:$0xff]
        %v322 = vld [vmem:[%s269] sm:$0xff]
        %v323 = vld [vmem:[%s269 + $0x8] sm:$0xff]
        %v324 = vld [vmem:[%s269 + $0x10] sm:$0xff]
        %v325 = vld [vmem:[%s269 + $0x18] sm:$0xff]
        %v326 = vld [vmem:[%s269 + $0x20] sm:$0xff]
        %v327 = vld [vmem:[%s269 + $0x28] sm:$0xff]
        %v328 = vld [vmem:[%s269 + $0x30] sm:$0xff]
        %v329 = vld [vmem:[%s269 + $0x38] sm:$0xff]
        %v330 = vld [vmem:[%s273] sm:$0x3]
        %v331 = vld [vmem:[%s3] sm:$0xff]
        %v332 = vld [vmem:[%s3 + $0x8] sm:$0xff]
        %v333 = vld [vmem:[%s3 + $0x10] sm:$0xff]
        %v334 = vld [vmem:[%s3 + $0x18] sm:$0xff]
        %v335 = vld [vmem:[%s3 + $0x20] sm:$0xff]
        %v336 = vld [vmem:[%s3 + $0x28] sm:$0xff]
        %v337 = vld [vmem:[%s3 + $0x30] sm:$0xff]
        %v338 = vld [vmem:[%s3 + $0x38] sm:$0xff]
        %v339 = vld [vmem:[%s3 + $0x40] sm:$0xff]
        %v340 = vld [vmem:[%s3 + $0x48] sm:$0xff]
        %v341 = vld [vmem:[%s3 + $0x50] sm:$0xff]
        %v342 = vld [vmem:[%s3 + $0x58] sm:$0xff]
        %v343 = vld [vmem:[%s3 + $0x60] sm:$0xff]
        %v344 = vld [vmem:[%s3 + $0x68] sm:$0xff]
        %v345 = vld [vmem:[%s3 + $0x70] sm:$0xff]
        %v346 = vld [vmem:[%s3 + $0x78] sm:$0xff]
        %348 = vset.pattern.permute.xlu0 0
        %349 = vperm.xlu0 %348, %v290
        %v350 = vpop.permute.xlu0 %349
        %353 = vset.pattern.permute.xlu0 0
        %354 = vperm.xlu0 %353, %v291
        %v355 = vpop.permute.xlu0 %354
        %358 = vset.pattern.permute.xlu0 0
        %359 = vperm.xlu0 %358, %v292
        %v360 = vpop.permute.xlu0 %359
        %363 = vset.pattern.permute.xlu0 0
        %364 = vperm.xlu0 %363, %v293
        %v365 = vpop.permute.xlu0 %364
        %368 = vset.pattern.permute.xlu0 0
        %369 = vperm.xlu0 %368, %v294
        %v370 = vpop.permute.xlu0 %369
        %373 = vset.pattern.permute.xlu0 0
        %374 = vperm.xlu0 %373, %v295
        %v375 = vpop.permute.xlu0 %374
        %378 = vset.pattern.permute.xlu0 0
        %379 = vperm.xlu0 %378, %v296
        %v380 = vpop.permute.xlu0 %379
        %383 = vset.pattern.permute.xlu0 0
        %384 = vperm.xlu0 %383, %v297
        %v385 = vpop.permute.xlu0 %384
        %388 = vset.pattern.permute.xlu0 0
        %389 = vperm.xlu0 %388, %v298
        %v390 = vpop.permute.xlu0 %389
        %393 = vset.pattern.permute.xlu0 0
        %394 = vperm.xlu0 %393, %v299
        %v395 = vpop.permute.xlu0 %394
        %398 = vset.pattern.permute.xlu0 0
        %399 = vperm.xlu0 %398, %v300
        %v400 = vpop.permute.xlu0 %399
        %403 = vset.pattern.permute.xlu0 0
        %404 = vperm.xlu0 %403, %v301
        %v405 = vpop.permute.xlu0 %404
        %408 = vset.pattern.permute.xlu0 0
        %409 = vperm.xlu0 %408, %v302
        %v410 = vpop.permute.xlu0 %409
        %413 = vset.pattern.permute.xlu0 0
        %414 = vperm.xlu0 %413, %v303
        %v415 = vpop.permute.xlu0 %414
        %418 = vset.pattern.permute.xlu0 0
        %419 = vperm.xlu0 %418, %v304
        %v420 = vpop.permute.xlu0 %419
        %423 = vset.pattern.permute.xlu0 0
        %424 = vperm.xlu0 %423, %v305
        %v425 = vpop.permute.xlu0 %424
        %vm427 = vcmask 261120
        %v429 = vsel %vm427, %v331, 0
        %v432 = vsel %vm427, %v332, 0
        %v435 = vsel %vm427, %v333, 0
        %v438 = vsel %vm427, %v334, 0
        %v441 = vsel %vm427, %v335, 0
        %v444 = vsel %vm427, %v336, 0
        %v447 = vsel %vm427, %v337, 0
        %v450 = vsel %vm427, %v338, 0
        %v453 = vsel %vm427, %v339, 0
        %v456 = vsel %vm427, %v340, 0
        %v459 = vsel %vm427, %v341, 0
        %v462 = vsel %vm427, %v342, 0
        %v465 = vsel %vm427, %v343, 0
        %v468 = vsel %vm427, %v344, 0
        %v471 = vsel %vm427, %v345, 0
        %v474 = vsel %vm427, %v346, 0
        %476 = vmatprep.subr.mxu0 %v323
        %477 = vmatpush1.msra.mxu0 %v322
        %478 = vmatprep.subr.mxu0 %v325
        %479 = vmatpush1.msra.mxu0 %v324
        %480 = vmatprep.subr.mxu0 %v327
        %481 = vmatpush1.msra.mxu0 %v326
        %482 = vmatprep.subr.mxu0 %v329
        %483 = vmatpush1.msra.mxu0 %v328
        %484 = vmatprep.subr.mxu0 0.0
        %485 = vmatpush1.msra.mxu0 0.0
        %486 = vmatprep.subr.mxu0 0.0
        %487 = vmatpush1.msra.mxu0 0.0
        %488 = vmatprep.subr.mxu0 0.0
        %489 = vmatpush1.msra.mxu0 0.0
        %490 = vmatprep.subr.mxu0 0.0
        %491 = vmatpush1.msra.mxu0 0.0
        %492 = vmatprep.subr.mxu0 0.0
        %493 = vmatpush1.msra.mxu0 0.0
        %494 = vmatprep.subr.mxu0 0.0
        %495 = vmatpush1.msra.mxu0 0.0
        %496 = vmatprep.subr.mxu0 0.0
        %497 = vmatpush1.msra.mxu0 0.0
        %498 = vmatprep.subr.mxu0 0.0
        %499 = vmatpush1.msra.mxu0 0.0
        %500 = vmatprep.subr.mxu0 0.0
        %501 = vmatpush1.msra.mxu0 0.0
        %502 = vmatprep.subr.mxu0 0.0
        %503 = vmatpush1.msra.mxu0 0.0
        %504 = vmatprep.subr.mxu0 0.0
        %505 = vmatpush1.msra.mxu0 0.0
        %506 = vmatprep.subr.mxu0 0.0
        %507 = vmatpush1.msra.mxu0 0.0
        %508 = vmatprep.subr.mxu0 0.0
        %509 = vmatpush1.msra.mxu0 0.0
        %510 = vmatprep.subr.mxu0 0.0
        %511 = vmatpush1.msra.mxu0 0.0
        %512 = vmatprep.subr.mxu0 0.0
        %513 = vmatpush1.msra.mxu0 0.0
        %514 = vmatprep.subr.mxu0 0.0
        %515 = vmatpush1.msra.mxu0 0.0
        %516 = vmatprep.subr.mxu0 0.0
        %517 = vmatpush1.msra.mxu0 0.0
        %518 = vmatprep.subr.mxu0 0.0
        %519 = vmatpush1.msra.mxu0 0.0
        %520 = vmatprep.subr.mxu0 0.0
        %521 = vmatpush1.msra.mxu0 0.0
        %522 = vmatprep.subr.mxu0 0.0
        %523 = vmatpush1.msra.mxu0 0.0
        %524 = vmatprep.subr.mxu0 0.0
        %525 = vmatpush1.msra.mxu0 0.0
        %526 = vmatprep.subr.mxu0 0.0
        %527 = vmatpush1.msra.mxu0 0.0
        %528 = vmatprep.subr.mxu0 0.0
        %529 = vmatpush1.msra.mxu0 0.0
        %530 = vmatprep.subr.mxu0 0.0
        %531 = vmatpush1.msra.mxu0 0.0
        %532 = vmatprep.subr.mxu0 0.0
        %533 = vmatpush1.msra.mxu0 0.0
        %534 = vmatprep.subr.mxu0 0.0
        %535 = vmatpush1.msra.mxu0 0.0
        %536 = vmatprep.subr.mxu0 0.0
        %537 = vmatpush1.msra.mxu0 0.0
        %538 = vmatprep.subr.mxu0 0.0
        %539 = vmatpush1.msra.mxu0 0.0
        %540 = vmatprep.mubr.f32.mxu0 0.0
        %541 = vmatmul.mubr.f32.gmra.mrb[0].mxu0 %v429
        %v542 = vpop.f32.mrb[0].mxu0
        %v543 = vadd.f32 %v350, %v542
        %v544 = vpop.f32.mrb[0].mxu0
        %v545 = vadd.f32 %v350, %v544
        %546 = vmatprep.mubr.f32.mxu0 0.0
        %547 = vmatmul.mubr.f32.gmra.mrb[0].mxu0 %v432
        %v548 = vpop.f32.mrb[0].mxu0
        %v549 = vadd.f32 %v355, %v548
        %v550 = vpop.f32.mrb[0].mxu0
        %v551 = vadd.f32 %v355, %v550
        %552 = vmatprep.mubr.f32.mxu0 0.0
        %553 = vmatmul.mubr.f32.gmra.mrb[0].mxu0 %v435
        %v554 = vpop.f32.mrb[0].mxu0
        %v555 = vadd.f32 %v360, %v554
        %v556 = vpop.f32.mrb[0].mxu0
        %v557 = vadd.f32 %v360, %v556
        %558 = vmatprep.mubr.f32.mxu0 0.0
        %559 = vmatmul.mubr.f32.gmra.mrb[0].mxu0 %v438
        %v560 = vpop.f32.mrb[0].mxu0
        %v561 = vadd.f32 %v365, %v560
        %v562 = vpop.f32.mrb[0].mxu0
        %v563 = vadd.f32 %v365, %v562
        %564 = vmatprep.mubr.f32.mxu0 0.0
        %565 = vmatmul.mubr.f32.gmra.mrb[0].mxu0 %v441
        %v566 = vpop.f32.mrb[0].mxu0
        %v567 = vadd.f32 %v370, %v566
        %v568 = vpop.f32.mrb[0].mxu0
        %v569 = vadd.f32 %v370, %v568
        %570 = vmatprep.mubr.f32.mxu0 0.0
        %571 = vmatmul.mubr.f32.gmra.mrb[0].mxu0 %v444
        %v572 = vpop.f32.mrb[0].mxu0
        %v573 = vadd.f32 %v375, %v572
        %v574 = vpop.f32.mrb[0].mxu0
        %v575 = vadd.f32 %v375, %v574
        %576 = vmatprep.mubr.f32.mxu0 0.0
        %577 = vmatmul.mubr.f32.gmra.mrb[0].mxu0 %v447
        %v578 = vpop.f32.mrb[0].mxu0
        %v579 = vadd.f32 %v380, %v578
        %v580 = vpop.f32.mrb[0].mxu0
        %v581 = vadd.f32 %v380, %v580
        %582 = vmatprep.mubr.f32.mxu0 0.0
        %583 = vmatmul.mubr.f32.gmra.mrb[0].mxu0 %v450
        %v584 = vpop.f32.mrb[0].mxu0
        %v585 = vadd.f32 %v385, %v584
        %v586 = vpop.f32.mrb[0].mxu0
        %v587 = vadd.f32 %v385, %v586
        %588 = vmatprep.mubr.f32.mxu0 0.0
        %589 = vmatmul.mubr.f32.gmra.mrb[0].mxu0 %v453
        %v590 = vpop.f32.mrb[0].mxu0
        %v591 = vadd.f32 %v390, %v590
        %v592 = vpop.f32.mrb[0].mxu0
        %v593 = vadd.f32 %v390, %v592
        %594 = vmatprep.mubr.f32.mxu0 0.0
        %595 = vmatmul.mubr.f32.gmra.mrb[0].mxu0 %v456
        %v596 = vpop.f32.mrb[0].mxu0
        %v597 = vadd.f32 %v395, %v596
        %v598 = vpop.f32.mrb[0].mxu0
        %v599 = vadd.f32 %v395, %v598
        %600 = vmatprep.mubr.f32.mxu0 0.0
        %601 = vmatmul.mubr.f32.gmra.mrb[0].mxu0 %v459
        %v602 = vpop.f32.mrb[0].mxu0
        %v603 = vadd.f32 %v400, %v602
        %v604 = vpop.f32.mrb[0].mxu0
        %v605 = vadd.f32 %v400, %v604
        %606 = vmatprep.mubr.f32.mxu0 0.0
        %607 = vmatmul.mubr.f32.gmra.mrb[0].mxu0 %v462
        %v608 = vpop.f32.mrb[0].mxu0
        %v609 = vadd.f32 %v405, %v608
        %v610 = vpop.f32.mrb[0].mxu0
        %v611 = vadd.f32 %v405, %v610
        %612 = vmatprep.mubr.f32.mxu0 0.0
        %613 = vmatmul.mubr.f32.gmra.mrb[0].mxu0 %v465
        %v614 = vpop.f32.mrb[0].mxu0
        %v615 = vadd.f32 %v410, %v614
        %v616 = vpop.f32.mrb[0].mxu0
        %v617 = vadd.f32 %v410, %v616
        %618 = vmatprep.mubr.f32.mxu0 0.0
        %619 = vmatmul.mubr.f32.gmra.mrb[0].mxu0 %v468
        %v620 = vpop.f32.mrb[0].mxu0
        %v621 = vadd.f32 %v415, %v620
        %v622 = vpop.f32.mrb[0].mxu0
        %v623 = vadd.f32 %v415, %v622
        %624 = vmatprep.mubr.f32.mxu0 0.0
        %625 = vmatmul.mubr.f32.gmra.mrb[0].mxu0 %v471
        %v626 = vpop.f32.mrb[0].mxu0
        %v627 = vadd.f32 %v420, %v626
        %v628 = vpop.f32.mrb[0].mxu0
        %v629 = vadd.f32 %v420, %v628
        %630 = vmatprep.mubr.f32.mxu0 0.0
        %631 = vmatmul.mubr.f32.gmra.mrb[0].mxu0 %v474
        %v632 = vpop.f32.mrb[0].mxu0
        %v633 = vadd.f32 %v425, %v632
        %v634 = vpop.f32.mrb[0].mxu0
        %v635 = vadd.f32 %v425, %v634
        %636 = vdwg.mxu0
        %v637 = vmax.f32 %v543, 0.0
        %v638 = vmax.f32 %v545, 0.0
        %v639 = vmax.f32 %v549, 0.0
        %v640 = vmax.f32 %v551, 0.0
        %v641 = vmax.f32 %v555, 0.0
        %v642 = vmax.f32 %v557, 0.0
        %v643 = vmax.f32 %v561, 0.0
        %v644 = vmax.f32 %v563, 0.0
        %v645 = vmax.f32 %v567, 0.0
        %v646 = vmax.f32 %v569, 0.0
        %v647 = vmax.f32 %v573, 0.0
        %v648 = vmax.f32 %v575, 0.0
        %v649 = vmax.f32 %v579, 0.0
        %v650 = vmax.f32 %v581, 0.0
        %v651 = vmax.f32 %v585, 0.0
        %v652 = vmax.f32 %v587, 0.0
        %v653 = vmax.f32 %v591, 0.0
        %v654 = vmax.f32 %v593, 0.0
        %v655 = vmax.f32 %v597, 0.0
        %v656 = vmax.f32 %v599, 0.0
        %v657 = vmax.f32 %v603, 0.0
        %v658 = vmax.f32 %v605, 0.0
        %v659 = vmax.f32 %v609, 0.0
        %v660 = vmax.f32 %v611, 0.0
        %v661 = vmax.f32 %v615, 0.0
        %v662 = vmax.f32 %v617, 0.0
        %v663 = vmax.f32 %v621, 0.0
        %v664 = vmax.f32 %v623, 0.0
        %v665 = vmax.f32 %v627, 0.0
        %v666 = vmax.f32 %v629, 0.0
        %v667 = vmax.f32 %v633, 0.0
        %v668 = vmax.f32 %v635, 0.0
        %670 = vset.pattern.permute.xlu0 0
        %671 = vperm.xlu0 %670, %v306
        %v672 = vpop.permute.xlu0 %671
        %675 = vset.pattern.permute.xlu0 0
        %676 = vperm.xlu0 %675, %v307
        %v677 = vpop.permute.xlu0 %676
        %680 = vset.pattern.permute.xlu0 0
        %681 = vperm.xlu0 %680, %v308
        %v682 = vpop.permute.xlu0 %681
        %685 = vset.pattern.permute.xlu0 0
        %686 = vperm.xlu0 %685, %v309
        %v687 = vpop.permute.xlu0 %686
        %690 = vset.pattern.permute.xlu0 0
        %691 = vperm.xlu0 %690, %v310
        %v692 = vpop.permute.xlu0 %691
        %695 = vset.pattern.permute.xlu0 0
        %696 = vperm.xlu0 %695, %v311
        %v697 = vpop.permute.xlu0 %696
        %700 = vset.pattern.permute.xlu0 0
        %701 = vperm.xlu0 %700, %v312
        %v702 = vpop.permute.xlu0 %701
        %705 = vset.pattern.permute.xlu0 0
        %706 = vperm.xlu0 %705, %v313
        %v707 = vpop.permute.xlu0 %706
        %710 = vset.pattern.permute.xlu0 0
        %711 = vperm.xlu0 %710, %v314
        %v712 = vpop.permute.xlu0 %711
        %715 = vset.pattern.permute.xlu0 0
        %716 = vperm.xlu0 %715, %v315
        %v717 = vpop.permute.xlu0 %716
        %720 = vset.pattern.permute.xlu0 0
        %721 = vperm.xlu0 %720, %v316
        %v722 = vpop.permute.xlu0 %721
        %725 = vset.pattern.permute.xlu0 0
        %726 = vperm.xlu0 %725, %v317
        %v727 = vpop.permute.xlu0 %726
        %730 = vset.pattern.permute.xlu0 0
        %731 = vperm.xlu0 %730, %v318
        %v732 = vpop.permute.xlu0 %731
        %735 = vset.pattern.permute.xlu0 0
        %736 = vperm.xlu0 %735, %v319
        %v737 = vpop.permute.xlu0 %736
        %740 = vset.pattern.permute.xlu0 0
        %741 = vperm.xlu0 %740, %v320
        %v742 = vpop.permute.xlu0 %741
        %745 = vset.pattern.permute.xlu0 0
        %746 = vperm.xlu0 %745, %v321
        %v747 = vpop.permute.xlu0 %746
        %749 = vmatprep.subr.mxu0 %v638
        %750 = vmatpush1.msra.mxu0 %v637
        %751 = vmatprep.subr.mxu0 %v640
        %752 = vmatpush1.msra.mxu0 %v639
        %753 = vmatprep.subr.mxu0 %v642
        %754 = vmatpush1.msra.mxu0 %v641
        %755 = vmatprep.subr.mxu0 %v644
        %756 = vmatpush1.msra.mxu0 %v643
        %757 = vmatprep.subr.mxu0 %v646
        %758 = vmatpush1.msra.mxu0 %v645
        %759 = vmatprep.subr.mxu0 %v648
        %760 = vmatpush1.msra.mxu0 %v647
        %761 = vmatprep.subr.mxu0 %v650
        %762 = vmatpush1.msra.mxu0 %v649
        %763 = vmatprep.subr.mxu0 %v652
        %764 = vmatpush1.msra.mxu0 %v651
        %765 = vmatprep.subr.mxu0 %v654
        %766 = vmatpush1.msra.mxu0 %v653
        %767 = vmatprep.subr.mxu0 %v656
        %768 = vmatpush1.msra.mxu0 %v655
        %769 = vmatprep.subr.mxu0 %v658
        %770 = vmatpush1.msra.mxu0 %v657
        %771 = vmatprep.subr.mxu0 %v660
        %772 = vmatpush1.msra.mxu0 %v659
        %773 = vmatprep.subr.mxu0 %v662
        %774 = vmatpush1.msra.mxu0 %v661
        %775 = vmatprep.subr.mxu0 %v664
        %776 = vmatpush1.msra.mxu0 %v663
        %777 = vmatprep.subr.mxu0 %v666
        %778 = vmatpush1.msra.mxu0 %v665
        %779 = vmatprep.subr.mxu0 %v668
        %780 = vmatpush1.msra.mxu0 %v667
        %781 = vmatprep.subr.mxu0 0.0
        %782 = vmatpush1.msra.mxu0 0.0
        %783 = vmatprep.subr.mxu0 0.0
        %784 = vmatpush1.msra.mxu0 0.0
        %785 = vmatprep.subr.mxu0 0.0
        %786 = vmatpush1.msra.mxu0 0.0
        %787 = vmatprep.subr.mxu0 0.0
        %788 = vmatpush1.msra.mxu0 0.0
        %789 = vmatprep.subr.mxu0 0.0
        %790 = vmatpush1.msra.mxu0 0.0
        %791 = vmatprep.subr.mxu0 0.0
        %792 = vmatpush1.msra.mxu0 0.0
        %793 = vmatprep.subr.mxu0 0.0
        %794 = vmatpush1.msra.mxu0 0.0
        %795 = vmatprep.subr.mxu0 0.0
        %796 = vmatpush1.msra.mxu0 0.0
        %797 = vmatprep.subr.mxu0 0.0
        %798 = vmatpush1.msra.mxu0 0.0
        %799 = vmatprep.subr.mxu0 0.0
        %800 = vmatpush1.msra.mxu0 0.0
        %801 = vmatprep.subr.mxu0 0.0
        %802 = vmatpush1.msra.mxu0 0.0
        %803 = vmatprep.subr.mxu0 0.0
        %804 = vmatpush1.msra.mxu0 0.0
        %805 = vmatprep.subr.mxu0 0.0
        %806 = vmatpush1.msra.mxu0 0.0
        %807 = vmatprep.subr.mxu0 0.0
        %808 = vmatpush1.msra.mxu0 0.0
        %809 = vmatprep.subr.mxu0 0.0
        %810 = vmatpush1.msra.mxu0 0.0
        %811 = vmatprep.subr.mxu0 0.0
        %812 = vmatpush1.msra.mxu0 0.0
        %813 = vmatprep.mubr.f32.mxu0 0.0
        %814 = vmatmul.mubr.f32.gmra.mrb[0].mxu0 %v274
        %v815 = vpop.f32.mrb[0].mxu0
        %v816 = vadd.f32 %v672, %v815
        %v817 = vpop.f32.mrb[0].mxu0
        %v818 = vadd.f32 %v672, %v817
        %819 = vmatprep.mubr.f32.mxu0 0.0
        %820 = vmatmul.mubr.f32.gmra.mrb[0].mxu0 %v275
        %v821 = vpop.f32.mrb[0].mxu0
        %v822 = vadd.f32 %v677, %v821
        %v823 = vpop.f32.mrb[0].mxu0
        %v824 = vadd.f32 %v677, %v823
        %825 = vmatprep.mubr.f32.mxu0 0.0
        %826 = vmatmul.mubr.f32.gmra.mrb[0].mxu0 %v276
        %v827 = vpop.f32.mrb[0].mxu0
        %v828 = vadd.f32 %v682, %v827
        %v829 = vpop.f32.mrb[0].mxu0
        %v830 = vadd.f32 %v682, %v829
        %831 = vmatprep.mubr.f32.mxu0 0.0
        %832 = vmatmul.mubr.f32.gmra.mrb[0].mxu0 %v277
        %v833 = vpop.f32.mrb[0].mxu0
        %v834 = vadd.f32 %v687, %v833
        %v835 = vpop.f32.mrb[0].mxu0
        %v836 = vadd.f32 %v687, %v835
        %837 = vmatprep.mubr.f32.mxu0 0.0
        %838 = vmatmul.mubr.f32.gmra.mrb[0].mxu0 %v278
        %v839 = vpop.f32.mrb[0].mxu0
        %v840 = vadd.f32 %v692, %v839
        %v841 = vpop.f32.mrb[0].mxu0
        %v842 = vadd.f32 %v692, %v841
        %843 = vmatprep.mubr.f32.mxu0 0.0
        %844 = vmatmul.mubr.f32.gmra.mrb[0].mxu0 %v279
        %v845 = vpop.f32.mrb[0].mxu0
        %v846 = vadd.f32 %v697, %v845
        %v847 = vpop.f32.mrb[0].mxu0
        %v848 = vadd.f32 %v697, %v847
        %849 = vmatprep.mubr.f32.mxu0 0.0
        %850 = vmatmul.mubr.f32.gmra.mrb[0].mxu0 %v280
        %v851 = vpop.f32.mrb[0].mxu0
        %v852 = vadd.f32 %v702, %v851
        %v853 = vpop.f32.mrb[0].mxu0
        %v854 = vadd.f32 %v702, %v853
        %855 = vmatprep.mubr.f32.mxu0 0.0
        %856 = vmatmul.mubr.f32.gmra.mrb[0].mxu0 %v281
        %v857 = vpop.f32.mrb[0].mxu0
        %v858 = vadd.f32 %v707, %v857
        %v859 = vpop.f32.mrb[0].mxu0
        %v860 = vadd.f32 %v707, %v859
        %861 = vmatprep.mubr.f32.mxu0 0.0
        %862 = vmatmul.mubr.f32.gmra.mrb[0].mxu0 %v282
        %v863 = vpop.f32.mrb[0].mxu0
        %v864 = vadd.f32 %v712, %v863
        %v865 = vpop.f32.mrb[0].mxu0
        %v866 = vadd.f32 %v712, %v865
        %867 = vmatprep.mubr.f32.mxu0 0.0
        %868 = vmatmul.mubr.f32.gmra.mrb[0].mxu0 %v283
        %v869 = vpop.f32.mrb[0].mxu0
        %v870 = vadd.f32 %v717, %v869
        %v871 = vpop.f32.mrb[0].mxu0
        %v872 = vadd.f32 %v717, %v871
        %873 = vmatprep.mubr.f32.mxu0 0.0
        %874 = vmatmul.mubr.f32.gmra.mrb[0].mxu0 %v284
        %v875 = vpop.f32.mrb[0].mxu0
        %v876 = vadd.f32 %v722, %v875
        %v877 = vpop.f32.mrb[0].mxu0
        %v878 = vadd.f32 %v722, %v877
        %879 = vmatprep.mubr.f32.mxu0 0.0
        %880 = vmatmul.mubr.f32.gmra.mrb[0].mxu0 %v285
        %v881 = vpop.f32.mrb[0].mxu0
        %v882 = vadd.f32 %v727, %v881
        %v883 = vpop.f32.mrb[0].mxu0
        %v884 = vadd.f32 %v727, %v883
        %885 = vmatprep.mubr.f32.mxu0 0.0
        %886 = vmatmul.mubr.f32.gmra.mrb[0].mxu0 %v286
        %v887 = vpop.f32.mrb[0].mxu0
        %v888 = vadd.f32 %v732, %v887
        %v889 = vpop.f32.mrb[0].mxu0
        %v890 = vadd.f32 %v732, %v889
        %891 = vmatprep.mubr.f32.mxu0 0.0
        %892 = vmatmul.mubr.f32.gmra.mrb[0].mxu0 %v287
        %v893 = vpop.f32.mrb[0].mxu0
        %v894 = vadd.f32 %v737, %v893
        %v895 = vpop.f32.mrb[0].mxu0
        %v896 = vadd.f32 %v737, %v895
        %897 = vmatprep.mubr.f32.mxu0 0.0
        %898 = vmatmul.mubr.f32.gmra.mrb[0].mxu0 %v288
        %v899 = vpop.f32.mrb[0].mxu0
        %v900 = vadd.f32 %v742, %v899
        %v901 = vpop.f32.mrb[0].mxu0
        %v902 = vadd.f32 %v742, %v901
        %903 = vmatprep.mubr.f32.mxu0 0.0
        %904 = vmatmul.mubr.f32.gmra.mrb[0].mxu0 %v289
        %v905 = vpop.f32.mrb[0].mxu0
        %v906 = vadd.f32 %v747, %v905
        %v907 = vpop.f32.mrb[0].mxu0
        %v908 = vadd.f32 %v747, %v907
        %909 = vdwg.mxu0
        %s910 = sld [smem:[#allocation3]]
        %v911 = vstv %s910
        %v912 = vmul.f32 %v330, %v911
        %v914 = vlaneseq
        %v915 = vshrl.u32 %v914, 7
        %v916 = vsub.s32 0, %v915
        %v917 = vrot.slane %v912, %v916
        %v918 = vlaneseq
        %v919 = vshrl.u32 %v918, 7
        %v920 = vsub.s32 1, %v919
        %v921 = vrot.slane %v912, %v920
        %v924 = vadd.f32 %v816, %v917
        %v925 = vadd.f32 %v818, %v921
        %v926 = vadd.f32 %v822, %v917
        %v927 = vadd.f32 %v824, %v921
        %v928 = vadd.f32 %v828, %v917
        %v929 = vadd.f32 %v830, %v921
        %v930 = vadd.f32 %v834, %v917
        %v931 = vadd.f32 %v836, %v921
        %v932 = vadd.f32 %v840, %v917
        %v933 = vadd.f32 %v842, %v921
        %v934 = vadd.f32 %v846, %v917
        %v935 = vadd.f32 %v848, %v921
        %v936 = vadd.f32 %v852, %v917
        %v937 = vadd.f32 %v854, %v921
        %v938 = vadd.f32 %v858, %v917
        %v939 = vadd.f32 %v860, %v921
        %v940 = vadd.f32 %v864, %v917
        %v941 = vadd.f32 %v866, %v921
        %v942 = vadd.f32 %v870, %v917
        %v943 = vadd.f32 %v872, %v921
        %v944 = vadd.f32 %v876, %v917
        %v945 = vadd.f32 %v878, %v921
        %v946 = vadd.f32 %v882, %v917
        %v947 = vadd.f32 %v884, %v921
        %v948 = vadd.f32 %v888, %v917
        %v949 = vadd.f32 %v890, %v921
        %v950 = vadd.f32 %v894, %v917
        %v951 = vadd.f32 %v896, %v921
        %v952 = vadd.f32 %v900, %v917
        %v953 = vadd.f32 %v902, %v921
        %v954 = vadd.f32 %v906, %v917
        %v955 = vadd.f32 %v908, %v921
        %956 = vst [vmem:[%s264] sm:$0xff] %v924
        %957 = vst [vmem:[%s264 + $0x8] sm:$0xff] %v925
        %958 = vst [vmem:[%s264 + $0x10] sm:$0xff] %v926
        %959 = vst [vmem:[%s264 + $0x18] sm:$0xff] %v927
        %960 = vst [vmem:[%s264 + $0x20] sm:$0xff] %v928
        %961 = vst [vmem:[%s264 + $0x28] sm:$0xff] %v929
        %962 = vst [vmem:[%s264 + $0x30] sm:$0xff] %v930
        %963 = vst [vmem:[%s264 + $0x38] sm:$0xff] %v931
        %964 = vst [vmem:[%s264 + $0x40] sm:$0xff] %v932
        %965 = vst [vmem:[%s264 + $0x48] sm:$0xff] %v933
        %966 = vst [vmem:[%s264 + $0x50] sm:$0xff] %v934
        %967 = vst [vmem:[%s264 + $0x58] sm:$0xff] %v935
        %968 = vst [vmem:[%s264 + $0x60] sm:$0xff] %v936
        %969 = vst [vmem:[%s264 + $0x68] sm:$0xff] %v937
        %970 = vst [vmem:[%s264 + $0x70] sm:$0xff] %v938
        %971 = vst [vmem:[%s264 + $0x78] sm:$0xff] %v939
        %972 = vst [vmem:[%s264 + $0x80] sm:$0xff] %v940
        %973 = vst [vmem:[%s264 + $0x88] sm:$0xff] %v941
        %974 = vst [vmem:[%s264 + $0x90] sm:$0xff] %v942
        %975 = vst [vmem:[%s264 + $0x98] sm:$0xff] %v943
        %976 = vst [vmem:[%s264 + $0xa0] sm:$0xff] %v944
        %977 = vst [vmem:[%s264 + $0xa8] sm:$0xff] %v945
        %978 = vst [vmem:[%s264 + $0xb0] sm:$0xff] %v946
        %979 = vst [vmem:[%s264 + $0xb8] sm:$0xff] %v947
        %980 = vst [vmem:[%s264 + $0xc0] sm:$0xff] %v948
        %981 = vst [vmem:[%s264 + $0xc8] sm:$0xff] %v949
        %982 = vst [vmem:[%s264 + $0xd0] sm:$0xff] %v950
        %983 = vst [vmem:[%s264 + $0xd8] sm:$0xff] %v951
        %984 = vst [vmem:[%s264 + $0xe0] sm:$0xff] %v952
        %985 = vst [vmem:[%s264 + $0xe8] sm:$0xff] %v953
        %986 = vst [vmem:[%s264 + $0xf0] sm:$0xff] %v954
        %987 = vst [vmem:[%s264 + $0xf8] sm:$0xff] %v955
        %v988 = vld [vmem:[%s3 + $0x80] sm:$0xff]
        %v989 = vld [vmem:[%s3 + $0x88] sm:$0xff]
        %v990 = vld [vmem:[%s3 + $0x90] sm:$0xff]
        %v991 = vld [vmem:[%s3 + $0x98] sm:$0xff]
        %v992 = vld [vmem:[%s3 + $0xa0] sm:$0xff]
        %v993 = vld [vmem:[%s3 + $0xa8] sm:$0xff]
        %v994 = vld [vmem:[%s3 + $0xb0] sm:$0xff]
        %v995 = vld [vmem:[%s3 + $0xb8] sm:$0xff]
        %v996 = vld [vmem:[%s3 + $0xc0] sm:$0xff]
        %v997 = vld [vmem:[%s3 + $0xc8] sm:$0xff]
        %v998 = vld [vmem:[%s3 + $0xd0] sm:$0xff]
        %v999 = vld [vmem:[%s3 + $0xd8] sm:$0xff]
        %v1000 = vld [vmem:[%s3 + $0xe0] sm:$0xff]
        %v1001 = vld [vmem:[%s3 + $0xe8] sm:$0xff]
        %v1002 = vld [vmem:[%s3 + $0xf0] sm:$0xff]
        %v1003 = vld [vmem:[%s3 + $0xf8] sm:$0xff]
        %v1005 = vsel %vm427, %v988, 0
        %v1008 = vsel %vm427, %v989, 0
        %v1011 = vsel %vm427, %v990, 0
        %v1014 = vsel %vm427, %v991, 0
        %v1017 = vsel %vm427, %v992, 0
        %v1020 = vsel %vm427, %v993, 0
        %v1023 = vsel %vm427, %v994, 0
        %v1026 = vsel %vm427, %v995, 0
        %v1029 = vsel %vm427, %v996, 0
        %v1032 = vsel %vm427, %v997, 0
        %v1035 = vsel %vm427, %v998, 0
        %v1038 = vsel %vm427, %v999, 0
        %v1041 = vsel %vm427, %v1000, 0
        %v1044 = vsel %vm427, %v1001, 0
        %v1047 = vsel %vm427, %v1002, 0
        %v1050 = vsel %vm427, %v1003, 0
        %1052 = vmatprep.subr.mxu0 %v323
        %1053 = vmatpush1.msra.mxu0 %v322
        %1054 = vmatprep.subr.mxu0 %v325
        %1055 = vmatpush1.msra.mxu0 %v324
        %1056 = vmatprep.subr.mxu0 %v327
        %1057 = vmatpush1.msra.mxu0 %v326
        %1058 = vmatprep.subr.mxu0 %v329
        %1059 = vmatpush1.msra.mxu0 %v328
        %1060 = vmatprep.subr.mxu0 0.0
        %1061 = vmatpush1.msra.mxu0 0.0
        %1062 = vmatprep.subr.mxu0 0.0
        %1063 = vmatpush1.msra.mxu0 0.0
        %1064 = vmatprep.subr.mxu0 0.0
        %1065 = vmatpush1.msra.mxu0 0.0
        %1066 = vmatprep.subr.mxu0 0.0
        %1067 = vmatpush1.msra.mxu0 0.0
        %1068 = vmatprep.subr.mxu0 0.0
        %1069 = vmatpush1.msra.mxu0 0.0
        %1070 = vmatprep.subr.mxu0 0.0
        %1071 = vmatpush1.msra.mxu0 0.0
        %1072 = vmatprep.subr.mxu0 0.0
        %1073 = vmatpush1.msra.mxu0 0.0
        %1074 = vmatprep.subr.mxu0 0.0
        %1075 = vmatpush1.msra.mxu0 0.0
        %1076 = vmatprep.subr.mxu0 0.0
        %1077 = vmatpush1.msra.mxu0 0.0
        %1078 = vmatprep.subr.mxu0 0.0
        %1079 = vmatpush1.msra.mxu0 0.0
        %1080 = vmatprep.subr.mxu0 0.0
        %1081 = vmatpush1.msra.mxu0 0.0
        %1082 = vmatprep.subr.mxu0 0.0
        %1083 = vmatpush1.msra.mxu0 0.0
        %1084 = vmatprep.subr.mxu0 0.0
        %1085 = vmatpush1.msra.mxu0 0.0
        %1086 = vmatprep.subr.mxu0 0.0
        %1087 = vmatpush1.msra.mxu0 0.0
        %1088 = vmatprep.subr.mxu0 0.0
        %1089 = vmatpush1.msra.mxu0 0.0
        %1090 = vmatprep.subr.mxu0 0.0
        %1091 = vmatpush1.msra.mxu0 0.0
        %1092 = vmatprep.subr.mxu0 0.0
        %1093 = vmatpush1.msra.mxu0 0.0
        %1094 = vmatprep.subr.mxu0 0.0
        %1095 = vmatpush1.msra.mxu0 0.0
        %1096 = vmatprep.subr.mxu0 0.0
        %1097 = vmatpush1.msra.mxu0 0.0
        %1098 = vmatprep.subr.mxu0 0.0
        %1099 = vmatpush1.msra.mxu0 0.0
        %1100 = vmatprep.subr.mxu0 0.0
        %1101 = vmatpush1.msra.mxu0 0.0
        %1102 = vmatprep.subr.mxu0 0.0
        %1103 = vmatpush1.msra.mxu0 0.0
        %1104 = vmatprep.subr.mxu0 0.0
        %1105 = vmatpush1.msra.mxu0 0.0
        %1106 = vmatprep.subr.mxu0 0.0
        %1107 = vmatpush1.msra.mxu0 0.0
        %1108 = vmatprep.subr.mxu0 0.0
        %1109 = vmatpush1.msra.mxu0 0.0
        %1110 = vmatprep.subr.mxu0 0.0
        %1111 = vmatpush1.msra.mxu0 0.0
        %1112 = vmatprep.subr.mxu0 0.0
        %1113 = vmatpush1.msra.mxu0 0.0
        %1114 = vmatprep.subr.mxu0 0.0
        %1115 = vmatpush1.msra.mxu0 0.0
        %1116 = vmatprep.mubr.f32.mxu0 0.0
        %1117 = vmatmul.mubr.f32.gmra.mrb[0].mxu0 %v1005
        %v1118 = vpop.f32.mrb[0].mxu0
        %v1119 = vadd.f32 %v350, %v1118
        %v1120 = vpop.f32.mrb[0].mxu0
        %v1121 = vadd.f32 %v350, %v1120
        %1122 = vmatprep.mubr.f32.mxu0 0.0
        %1123 = vmatmul.mubr.f32.gmra.mrb[0].mxu0 %v1008
        %v1124 = vpop.f32.mrb[0].mxu0
        %v1125 = vadd.f32 %v355, %v1124
        %v1126 = vpop.f32.mrb[0].mxu0
        %v1127 = vadd.f32 %v355, %v1126
        %1128 = vmatprep.mubr.f32.mxu0 0.0
        %1129 = vmatmul.mubr.f32.gmra.mrb[0].mxu0 %v1011
        %v1130 = vpop.f32.mrb[0].mxu0
        %v1131 = vadd.f32 %v360, %v1130
        %v1132 = vpop.f32.mrb[0].mxu0
        %v1133 = vadd.f32 %v360, %v1132
        %1134 = vmatprep.mubr.f32.mxu0 0.0
        %1135 = vmatmul.mubr.f32.gmra.mrb[0].mxu0 %v1014
        %v1136 = vpop.f32.mrb[0].mxu0
        %v1137 = vadd.f32 %v365, %v1136
        %v1138 = vpop.f32.mrb[0].mxu0
        %v1139 = vadd.f32 %v365, %v1138
        %1140 = vmatprep.mubr.f32.mxu0 0.0
        %1141 = vmatmul.mubr.f32.gmra.mrb[0].mxu0 %v1017
        %v1142 = vpop.f32.mrb[0].mxu0
        %v1143 = vadd.f32 %v370, %v1142
        %v1144 = vpop.f32.mrb[0].mxu0
        %v1145 = vadd.f32 %v370, %v1144
        %1146 = vmatprep.mubr.f32.mxu0 0.0
        %1147 = vmatmul.mubr.f32.gmra.mrb[0].mxu0 %v1020
        %v1148 = vpop.f32.mrb[0].mxu0
        %v1149 = vadd.f32 %v375, %v1148
        %v1150 = vpop.f32.mrb[0].mxu0
        %v1151 = vadd.f32 %v375, %v1150
        %1152 = vmatprep.mubr.f32.mxu0 0.0
        %1153 = vmatmul.mubr.f32.gmra.mrb[0].mxu0 %v1023
        %v1154 = vpop.f32.mrb[0].mxu0
        %v1155 = vadd.f32 %v380, %v1154
        %v1156 = vpop.f32.mrb[0].mxu0
        %v1157 = vadd.f32 %v380, %v1156
        %1158 = vmatprep.mubr.f32.mxu0 0.0
        %1159 = vmatmul.mubr.f32.gmra.mrb[0].mxu0 %v1026
        %v1160 = vpop.f32.mrb[0].mxu0
        %v1161 = vadd.f32 %v385, %v1160
        %v1162 = vpop.f32.mrb[0].mxu0
        %v1163 = vadd.f32 %v385, %v1162
        %1164 = vmatprep.mubr.f32.mxu0 0.0
        %1165 = vmatmul.mubr.f32.gmra.mrb[0].mxu0 %v1029
        %v1166 = vpop.f32.mrb[0].mxu0
        %v1167 = vadd.f32 %v390, %v1166
        %v1168 = vpop.f32.mrb[0].mxu0
        %v1169 = vadd.f32 %v390, %v1168
        %1170 = vmatprep.mubr.f32.mxu0 0.0
        %1171 = vmatmul.mubr.f32.gmra.mrb[0].mxu0 %v1032
        %v1172 = vpop.f32.mrb[0].mxu0
        %v1173 = vadd.f32 %v395, %v1172
        %v1174 = vpop.f32.mrb[0].mxu0
        %v1175 = vadd.f32 %v395, %v1174
        %1176 = vmatprep.mubr.f32.mxu0 0.0
        %1177 = vmatmul.mubr.f32.gmra.mrb[0].mxu0 %v1035
        %v1178 = vpop.f32.mrb[0].mxu0
        %v1179 = vadd.f32 %v400, %v1178
        %v1180 = vpop.f32.mrb[0].mxu0
        %v1181 = vadd.f32 %v400, %v1180
        %1182 = vmatprep.mubr.f32.mxu0 0.0
        %1183 = vmatmul.mubr.f32.gmra.mrb[0].mxu0 %v1038
        %v1184 = vpop.f32.mrb[0].mxu0
        %v1185 = vadd.f32 %v405, %v1184
        %v1186 = vpop.f32.mrb[0].mxu0
        %v1187 = vadd.f32 %v405, %v1186
        %1188 = vmatprep.mubr.f32.mxu0 0.0
        %1189 = vmatmul.mubr.f32.gmra.mrb[0].mxu0 %v1041
        %v1190 = vpop.f32.mrb[0].mxu0
        %v1191 = vadd.f32 %v410, %v1190
        %v1192 = vpop.f32.mrb[0].mxu0
        %v1193 = vadd.f32 %v410, %v1192
        %1194 = vmatprep.mubr.f32.mxu0 0.0
        %1195 = vmatmul.mubr.f32.gmra.mrb[0].mxu0 %v1044
        %v1196 = vpop.f32.mrb[0].mxu0
        %v1197 = vadd.f32 %v415, %v1196
        %v1198 = vpop.f32.mrb[0].mxu0
        %v1199 = vadd.f32 %v415, %v1198
        %1200 = vmatprep.mubr.f32.mxu0 0.0
        %1201 = vmatmul.mubr.f32.gmra.mrb[0].mxu0 %v1047
        %v1202 = vpop.f32.mrb[0].mxu0
        %v1203 = vadd.f32 %v420, %v1202
        %v1204 = vpop.f32.mrb[0].mxu0
        %v1205 = vadd.f32 %v420, %v1204
        %1206 = vmatprep.mubr.f32.mxu0 0.0
        %1207 = vmatmul.mubr.f32.gmra.mrb[0].mxu0 %v1050
        %v1208 = vpop.f32.mrb[0].mxu0
        %v1209 = vadd.f32 %v425, %v1208
        %v1210 = vpop.f32.mrb[0].mxu0
        %v1211 = vadd.f32 %v425, %v1210
        %1212 = vdwg.mxu0
        %v1213 = vmax.f32 %v1119, 0.0
        %v1214 = vmax.f32 %v1121, 0.0
        %v1215 = vmax.f32 %v1125, 0.0
        %v1216 = vmax.f32 %v1127, 0.0
        %v1217 = vmax.f32 %v1131, 0.0
        %v1218 = vmax.f32 %v1133, 0.0
        %v1219 = vmax.f32 %v1137, 0.0
        %v1220 = vmax.f32 %v1139, 0.0
        %v1221 = vmax.f32 %v1143, 0.0
        %v1222 = vmax.f32 %v1145, 0.0
        %v1223 = vmax.f32 %v1149, 0.0
        %v1224 = vmax.f32 %v1151, 0.0
        %v1225 = vmax.f32 %v1155, 0.0
        %v1226 = vmax.f32 %v1157, 0.0
        %v1227 = vmax.f32 %v1161, 0.0
        %v1228 = vmax.f32 %v1163, 0.0
        %v1229 = vmax.f32 %v1167, 0.0
        %v1230 = vmax.f32 %v1169, 0.0
        %v1231 = vmax.f32 %v1173, 0.0
        %v1232 = vmax.f32 %v1175, 0.0
        %v1233 = vmax.f32 %v1179, 0.0
        %v1234 = vmax.f32 %v1181, 0.0
        %v1235 = vmax.f32 %v1185, 0.0
        %v1236 = vmax.f32 %v1187, 0.0
        %v1237 = vmax.f32 %v1191, 0.0
        %v1238 = vmax.f32 %v1193, 0.0
        %v1239 = vmax.f32 %v1197, 0.0
        %v1240 = vmax.f32 %v1199, 0.0
        %v1241 = vmax.f32 %v1203, 0.0
        %v1242 = vmax.f32 %v1205, 0.0
        %v1243 = vmax.f32 %v1209, 0.0
        %v1244 = vmax.f32 %v1211, 0.0
        %1245 = vmatprep.subr.mxu0 %v1214
        %1246 = vmatpush1.msra.mxu0 %v1213
        %1247 = vmatprep.subr.mxu0 %v1216
        %1248 = vmatpush1.msra.mxu0 %v1215
        %1249 = vmatprep.subr.mxu0 %v1218
        %1250 = vmatpush1.msra.mxu0 %v1217
        %1251 = vmatprep.subr.mxu0 %v1220
        %1252 = vmatpush1.msra.mxu0 %v1219
        %1253 = vmatprep.subr.mxu0 %v1222
        %1254 = vmatpush1.msra.mxu0 %v1221
        %1255 = vmatprep.subr.mxu0 %v1224
        %1256 = vmatpush1.msra.mxu0 %v1223
        %1257 = vmatprep.subr.mxu0 %v1226
        %1258 = vmatpush1.msra.mxu0 %v1225
        %1259 = vmatprep.subr.mxu0 %v1228
        %1260 = vmatpush1.msra.mxu0 %v1227
        %1261 = vmatprep.subr.mxu0 %v1230
        %1262 = vmatpush1.msra.mxu0 %v1229
        %1263 = vmatprep.subr.mxu0 %v1232
        %1264 = vmatpush1.msra.mxu0 %v1231
        %1265 = vmatprep.subr.mxu0 %v1234
        %1266 = vmatpush1.msra.mxu0 %v1233
        %1267 = vmatprep.subr.mxu0 %v1236
        %1268 = vmatpush1.msra.mxu0 %v1235
        %1269 = vmatprep.subr.mxu0 %v1238
        %1270 = vmatpush1.msra.mxu0 %v1237
        %1271 = vmatprep.subr.mxu0 %v1240
        %1272 = vmatpush1.msra.mxu0 %v1239
        %1273 = vmatprep.subr.mxu0 %v1242
        %1274 = vmatpush1.msra.mxu0 %v1241
        %1275 = vmatprep.subr.mxu0 %v1244
        %1276 = vmatpush1.msra.mxu0 %v1243
        %1277 = vmatprep.subr.mxu0 0.0
        %1278 = vmatpush1.msra.mxu0 0.0
        %1279 = vmatprep.subr.mxu0 0.0
        %1280 = vmatpush1.msra.mxu0 0.0
        %1281 = vmatprep.subr.mxu0 0.0
        %1282 = vmatpush1.msra.mxu0 0.0
        %1283 = vmatprep.subr.mxu0 0.0
        %1284 = vmatpush1.msra.mxu0 0.0
        %1285 = vmatprep.subr.mxu0 0.0
        %1286 = vmatpush1.msra.mxu0 0.0
        %1287 = vmatprep.subr.mxu0 0.0
        %1288 = vmatpush1.msra.mxu0 0.0
        %1289 = vmatprep.subr.mxu0 0.0
        %1290 = vmatpush1.msra.mxu0 0.0
        %1291 = vmatprep.subr.mxu0 0.0
        %1292 = vmatpush1.msra.mxu0 0.0
        %1293 = vmatprep.subr.mxu0 0.0
        %1294 = vmatpush1.msra.mxu0 0.0
        %1295 = vmatprep.subr.mxu0 0.0
        %1296 = vmatpush1.msra.mxu0 0.0
        %1297 = vmatprep.subr.mxu0 0.0
        %1298 = vmatpush1.msra.mxu0 0.0
        %1299 = vmatprep.subr.mxu0 0.0
        %1300 = vmatpush1.msra.mxu0 0.0
        %1301 = vmatprep.subr.mxu0 0.0
        %1302 = vmatpush1.msra.mxu0 0.0
        %1303 = vmatprep.subr.mxu0 0.0
        %1304 = vmatpush1.msra.mxu0 0.0
        %1305 = vmatprep.subr.mxu0 0.0
        %1306 = vmatpush1.msra.mxu0 0.0
        %1307 = vmatprep.subr.mxu0 0.0
        %1308 = vmatpush1.msra.mxu0 0.0
        %1309 = vmatprep.mubr.f32.mxu0 0.0
        %1310 = vmatmul.mubr.f32.gmra.mrb[0].mxu0 %v274
        %v1311 = vpop.f32.mrb[0].mxu0
        %v1312 = vadd.f32 %v672, %v1311
        %v1313 = vpop.f32.mrb[0].mxu0
        %v1314 = vadd.f32 %v672, %v1313
        %1315 = vmatprep.mubr.f32.mxu0 0.0
        %1316 = vmatmul.mubr.f32.gmra.mrb[0].mxu0 %v275
        %v1317 = vpop.f32.mrb[0].mxu0
        %v1318 = vadd.f32 %v677, %v1317
        %v1319 = vpop.f32.mrb[0].mxu0
        %v1320 = vadd.f32 %v677, %v1319
        %1321 = vmatprep.mubr.f32.mxu0 0.0
        %1322 = vmatmul.mubr.f32.gmra.mrb[0].mxu0 %v276
        %v1323 = vpop.f32.mrb[0].mxu0
        %v1324 = vadd.f32 %v682, %v1323
        %v1325 = vpop.f32.mrb[0].mxu0
        %v1326 = vadd.f32 %v682, %v1325
        %1327 = vmatprep.mubr.f32.mxu0 0.0
        %1328 = vmatmul.mubr.f32.gmra.mrb[0].mxu0 %v277
        %v1329 = vpop.f32.mrb[0].mxu0
        %v1330 = vadd.f32 %v687, %v1329
        %v1331 = vpop.f32.mrb[0].mxu0
        %v1332 = vadd.f32 %v687, %v1331
        %1333 = vmatprep.mubr.f32.mxu0 0.0
        %1334 = vmatmul.mubr.f32.gmra.mrb[0].mxu0 %v278
        %v1335 = vpop.f32.mrb[0].mxu0
        %v1336 = vadd.f32 %v692, %v1335
        %v1337 = vpop.f32.mrb[0].mxu0
        %v1338 = vadd.f32 %v692, %v1337
        %1339 = vmatprep.mubr.f32.mxu0 0.0
        %1340 = vmatmul.mubr.f32.gmra.mrb[0].mxu0 %v279
        %v1341 = vpop.f32.mrb[0].mxu0
        %v1342 = vadd.f32 %v697, %v1341
        %v1343 = vpop.f32.mrb[0].mxu0
        %v1344 = vadd.f32 %v697, %v1343
        %1345 = vmatprep.mubr.f32.mxu0 0.0
        %1346 = vmatmul.mubr.f32.gmra.mrb[0].mxu0 %v280
        %v1347 = vpop.f32.mrb[0].mxu0
        %v1348 = vadd.f32 %v702, %v1347
        %v1349 = vpop.f32.mrb[0].mxu0
        %v1350 = vadd.f32 %v702, %v1349
        %1351 = vmatprep.mubr.f32.mxu0 0.0
        %1352 = vmatmul.mubr.f32.gmra.mrb[0].mxu0 %v281
        %v1353 = vpop.f32.mrb[0].mxu0
        %v1354 = vadd.f32 %v707, %v1353
        %v1355 = vpop.f32.mrb[0].mxu0
        %v1356 = vadd.f32 %v707, %v1355
        %1357 = vmatprep.mubr.f32.mxu0 0.0
        %1358 = vmatmul.mubr.f32.gmra.mrb[0].mxu0 %v282
        %v1359 = vpop.f32.mrb[0].mxu0
        %v1360 = vadd.f32 %v712, %v1359
        %v1361 = vpop.f32.mrb[0].mxu0
        %v1362 = vadd.f32 %v712, %v1361
        %1363 = vmatprep.mubr.f32.mxu0 0.0
        %1364 = vmatmul.mubr.f32.gmra.mrb[0].mxu0 %v283
        %v1365 = vpop.f32.mrb[0].mxu0
        %v1366 = vadd.f32 %v717, %v1365
        %v1367 = vpop.f32.mrb[0].mxu0
        %v1368 = vadd.f32 %v717, %v1367
        %1369 = vmatprep.mubr.f32.mxu0 0.0
        %1370 = vmatmul.mubr.f32.gmra.mrb[0].mxu0 %v284
        %v1371 = vpop.f32.mrb[0].mxu0
        %v1372 = vadd.f32 %v722, %v1371
        %v1373 = vpop.f32.mrb[0].mxu0
        %v1374 = vadd.f32 %v722, %v1373
        %1375 = vmatprep.mubr.f32.mxu0 0.0
        %1376 = vmatmul.mubr.f32.gmra.mrb[0].mxu0 %v285
        %v1377 = vpop.f32.mrb[0].mxu0
        %v1378 = vadd.f32 %v727, %v1377
        %v1379 = vpop.f32.mrb[0].mxu0
        %v1380 = vadd.f32 %v727, %v1379
        %1381 = vmatprep.mubr.f32.mxu0 0.0
        %1382 = vmatmul.mubr.f32.gmra.mrb[0].mxu0 %v286
        %v1383 = vpop.f32.mrb[0].mxu0
        %v1384 = vadd.f32 %v732, %v1383
        %v1385 = vpop.f32.mrb[0].mxu0
        %v1386 = vadd.f32 %v732, %v1385
        %1387 = vmatprep.mubr.f32.mxu0 0.0
        %1388 = vmatmul.mubr.f32.gmra.mrb[0].mxu0 %v287
        %v1389 = vpop.f32.mrb[0].mxu0
        %v1390 = vadd.f32 %v737, %v1389
        %v1391 = vpop.f32.mrb[0].mxu0
        %v1392 = vadd.f32 %v737, %v1391
        %1393 = vmatprep.mubr.f32.mxu0 0.0
        %1394 = vmatmul.mubr.f32.gmra.mrb[0].mxu0 %v288
        %v1395 = vpop.f32.mrb[0].mxu0
        %v1396 = vadd.f32 %v742, %v1395
        %v1397 = vpop.f32.mrb[0].mxu0
        %v1398 = vadd.f32 %v742, %v1397
        %1399 = vmatprep.mubr.f32.mxu0 0.0
        %1400 = vmatmul.mubr.f32.gmra.mrb[0].mxu0 %v289
        %v1401 = vpop.f32.mrb[0].mxu0
        %v1402 = vadd.f32 %v747, %v1401
        %v1403 = vpop.f32.mrb[0].mxu0
        %v1404 = vadd.f32 %v747, %v1403
        %1405 = vdwg.mxu0
        %s1406 = sld [smem:[#allocation3 + $0x1]]
        %v1407 = vstv %s1406
        %v1408 = vmul.f32 %v330, %v1407
        %v1410 = vlaneseq
        %v1411 = vshrl.u32 %v1410, 7
        %v1412 = vsub.s32 0, %v1411
        %v1413 = vrot.slane %v1408, %v1412
        %v1414 = vlaneseq
        %v1415 = vshrl.u32 %v1414, 7
        %v1416 = vsub.s32 1, %v1415
        %v1417 = vrot.slane %v1408, %v1416
        %v1420 = vadd.f32 %v1312, %v1413
        %v1421 = vadd.f32 %v1314, %v1417
        %v1422 = vadd.f32 %v1318, %v1413
        %v1423 = vadd.f32 %v1320, %v1417
        %v1424 = vadd.f32 %v1324, %v1413
        %v1425 = vadd.f32 %v1326, %v1417
        %v1426 = vadd.f32 %v1330, %v1413
        %v1427 = vadd.f32 %v1332, %v1417
        %v1428 = vadd.f32 %v1336, %v1413
        %v1429 = vadd.f32 %v1338, %v1417
        %v1430 = vadd.f32 %v1342, %v1413
        %v1431 = vadd.f32 %v1344, %v1417
        %v1432 = vadd.f32 %v1348, %v1413
        %v1433 = vadd.f32 %v1350, %v1417
        %v1434 = vadd.f32 %v1354, %v1413
        %v1435 = vadd.f32 %v1356, %v1417
        %v1436 = vadd.f32 %v1360, %v1413
        %v1437 = vadd.f32 %v1362, %v1417
        %v1438 = vadd.f32 %v1366, %v1413
        %v1439 = vadd.f32 %v1368, %v1417
        %v1440 = vadd.f32 %v1372, %v1413
        %v1441 = vadd.f32 %v1374, %v1417
        %v1442 = vadd.f32 %v1378, %v1413
        %v1443 = vadd.f32 %v1380, %v1417
        %v1444 = vadd.f32 %v1384, %v1413
        %v1445 = vadd.f32 %v1386, %v1417
        %v1446 = vadd.f32 %v1390, %v1413
        %v1447 = vadd.f32 %v1392, %v1417
        %v1448 = vadd.f32 %v1396, %v1413
        %v1449 = vadd.f32 %v1398, %v1417
        %v1450 = vadd.f32 %v1402, %v1413
        %v1451 = vadd.f32 %v1404, %v1417
        %1452 = vst [vmem:[%s264 + $0x100] sm:$0xff] %v1420
        %1453 = vst [vmem:[%s264 + $0x108] sm:$0xff] %v1421
        %1454 = vst [vmem:[%s264 + $0x110] sm:$0xff] %v1422
        %1455 = vst [vmem:[%s264 + $0x118] sm:$0xff] %v1423
        %1456 = vst [vmem:[%s264 + $0x120] sm:$0xff] %v1424
        %1457 = vst [vmem:[%s264 + $0x128] sm:$0xff] %v1425
        %1458 = vst [vmem:[%s264 + $0x130] sm:$0xff] %v1426
        %1459 = vst [vmem:[%s264 + $0x138] sm:$0xff] %v1427
        %1460 = vst [vmem:[%s264 + $0x140] sm:$0xff] %v1428
        %1461 = vst [vmem:[%s264 + $0x148] sm:$0xff] %v1429
        %1462 = vst [vmem:[%s264 + $0x150] sm:$0xff] %v1430
        %1463 = vst [vmem:[%s264 + $0x158] sm:$0xff] %v1431
        %1464 = vst [vmem:[%s264 + $0x160] sm:$0xff] %v1432
        %1465 = vst [vmem:[%s264 + $0x168] sm:$0xff] %v1433
        %1466 = vst [vmem:[%s264 + $0x170] sm:$0xff] %v1434
        %1467 = vst [vmem:[%s264 + $0x178] sm:$0xff] %v1435
        %1468 = vst [vmem:[%s264 + $0x180] sm:$0xff] %v1436
        %1469 = vst [vmem:[%s264 + $0x188] sm:$0xff] %v1437
        %1470 = vst [vmem:[%s264 + $0x190] sm:$0xff] %v1438
        %1471 = vst [vmem:[%s264 + $0x198] sm:$0xff] %v1439
        %1472 = vst [vmem:[%s264 + $0x1a0] sm:$0xff] %v1440
        %1473 = vst [vmem:[%s264 + $0x1a8] sm:$0xff] %v1441
        %1474 = vst [vmem:[%s264 + $0x1b0] sm:$0xff] %v1442
        %1475 = vst [vmem:[%s264 + $0x1b8] sm:$0xff] %v1443
        %1476 = vst [vmem:[%s264 + $0x1c0] sm:$0xff] %v1444
        %1477 = vst [vmem:[%s264 + $0x1c8] sm:$0xff] %v1445
        %1478 = vst [vmem:[%s264 + $0x1d0] sm:$0xff] %v1446
        %1479 = vst [vmem:[%s264 + $0x1d8] sm:$0xff] %v1447
        %1480 = vst [vmem:[%s264 + $0x1e0] sm:$0xff] %v1448
        %1481 = vst [vmem:[%s264 + $0x1e8] sm:$0xff] %v1449
        %1482 = vst [vmem:[%s264 + $0x1f0] sm:$0xff] %v1450
        %1483 = vst [vmem:[%s264 + $0x1f8] sm:$0xff] %v1451
        %v1484 = vld [vmem:[%s3 + $0x100] sm:$0xff]
        %v1485 = vld [vmem:[%s3 + $0x108] sm:$0xff]
        %v1486 = vld [vmem:[%s3 + $0x110] sm:$0xff]
        %v1487 = vld [vmem:[%s3 + $0x118] sm:$0xff]
        %v1488 = vld [vmem:[%s3 + $0x120] sm:$0xff]
        %v1489 = vld [vmem:[%s3 + $0x128] sm:$0xff]
        %v1490 = vld [vmem:[%s3 + $0x130] sm:$0xff]
        %v1491 = vld [vmem:[%s3 + $0x138] sm:$0xff]
        %v1492 = vld [vmem:[%s3 + $0x140] sm:$0xff]
        %v1493 = vld [vmem:[%s3 + $0x148] sm:$0xff]
        %v1494 = vld [vmem:[%s3 + $0x150] sm:$0xff]
        %v1495 = vld [vmem:[%s3 + $0x158] sm:$0xff]
        %v1496 = vld [vmem:[%s3 + $0x160] sm:$0xff]
        %v1497 = vld [vmem:[%s3 + $0x168] sm:$0xff]
        %v1498 = vld [vmem:[%s3 + $0x170] sm:$0xff]
        %v1499 = vld [vmem:[%s3 + $0x178] sm:$0xff]
        %v1501 = vsel %vm427, %v1484, 0
        %v1504 = vsel %vm427, %v1485, 0
        %v1507 = vsel %vm427, %v1486, 0
        %v1510 = vsel %vm427, %v1487, 0
        %v1513 = vsel %vm427, %v1488, 0
        %v1516 = vsel %vm427, %v1489, 0
        %v1519 = vsel %vm427, %v1490, 0
        %v1522 = vsel %vm427, %v1491, 0
        %v1525 = vsel %vm427, %v1492, 0
        %v1528 = vsel %vm427, %v1493, 0
        %v1531 = vsel %vm427, %v1494, 0
        %v1534 = vsel %vm427, %v1495, 0
        %v1537 = vsel %vm427, %v1496, 0
        %v1540 = vsel %vm427, %v1497, 0
        %v1543 = vsel %vm427, %v1498, 0
        %v1546 = vsel %vm427, %v1499, 0
        %1548 = vmatprep.subr.mxu0 %v323
        %1549 = vmatpush1.msra.mxu0 %v322
        %1550 = vmatprep.subr.mxu0 %v325
        %1551 = vmatpush1.msra.mxu0 %v324
        %1552 = vmatprep.subr.mxu0 %v327
        %1553 = vmatpush1.msra.mxu0 %v326
        %1554 = vmatprep.subr.mxu0 %v329
        %1555 = vmatpush1.msra.mxu0 %v328
        %1556 = vmatprep.subr.mxu0 0.0
        %1557 = vmatpush1.msra.mxu0 0.0
        %1558 = vmatprep.subr.mxu0 0.0
        %1559 = vmatpush1.msra.mxu0 0.0
        %1560 = vmatprep.subr.mxu0 0.0
        %1561 = vmatpush1.msra.mxu0 0.0
        %1562 = vmatprep.subr.mxu0 0.0
        %1563 = vmatpush1.msra.mxu0 0.0
        %1564 = vmatprep.subr.mxu0 0.0
        %1565 = vmatpush1.msra.mxu0 0.0
        %1566 = vmatprep.subr.mxu0 0.0
        %1567 = vmatpush1.msra.mxu0 0.0
        %1568 = vmatprep.subr.mxu0 0.0
        %1569 = vmatpush1.msra.mxu0 0.0
        %1570 = vmatprep.subr.mxu0 0.0
        %1571 = vmatpush1.msra.mxu0 0.0
        %1572 = vmatprep.subr.mxu0 0.0
        %1573 = vmatpush1.msra.mxu0 0.0
        %1574 = vmatprep.subr.mxu0 0.0
        %1575 = vmatpush1.msra.mxu0 0.0
        %1576 = vmatprep.subr.mxu0 0.0
        %1577 = vmatpush1.msra.mxu0 0.0
        %1578 = vmatprep.subr.mxu0 0.0
        %1579 = vmatpush1.msra.mxu0 0.0
        %1580 = vmatprep.subr.mxu0 0.0
        %1581 = vmatpush1.msra.mxu0 0.0
        %1582 = vmatprep.subr.mxu0 0.0
        %1583 = vmatpush1.msra.mxu0 0.0
        %1584 = vmatprep.subr.mxu0 0.0
        %1585 = vmatpush1.msra.mxu0 0.0
        %1586 = vmatprep.subr.mxu0 0.0
        %1587 = vmatpush1.msra.mxu0 0.0
        %1588 = vmatprep.subr.mxu0 0.0
        %1589 = vmatpush1.msra.mxu0 0.0
        %1590 = vmatprep.subr.mxu0 0.0
        %1591 = vmatpush1.msra.mxu0 0.0
        %1592 = vmatprep.subr.mxu0 0.0
        %1593 = vmatpush1.msra.mxu0 0.0
        %1594 = vmatprep.subr.mxu0 0.0
        %1595 = vmatpush1.msra.mxu0 0.0
        %1596 = vmatprep.subr.mxu0 0.0
        %1597 = vmatpush1.msra.mxu0 0.0
        %1598 = vmatprep.subr.mxu0 0.0
        %1599 = vmatpush1.msra.mxu0 0.0
        %1600 = vmatprep.subr.mxu0 0.0
        %1601 = vmatpush1.msra.mxu0 0.0
        %1602 = vmatprep.subr.mxu0 0.0
        %1603 = vmatpush1.msra.mxu0 0.0
        %1604 = vmatprep.subr.mxu0 0.0
        %1605 = vmatpush1.msra.mxu0 0.0
        %1606 = vmatprep.subr.mxu0 0.0
        %1607 = vmatpush1.msra.mxu0 0.0
        %1608 = vmatprep.subr.mxu0 0.0
        %1609 = vmatpush1.msra.mxu0 0.0
        %1610 = vmatprep.subr.mxu0 0.0
        %1611 = vmatpush1.msra.mxu0 0.0
        %1612 = vmatprep.mubr.f32.mxu0 0.0
        %1613 = vmatmul.mubr.f32.gmra.mrb[0].mxu0 %v1501
        %v1614 = vpop.f32.mrb[0].mxu0
        %v1615 = vadd.f32 %v350, %v1614
        %v1616 = vpop.f32.mrb[0].mxu0
        %v1617 = vadd.f32 %v350, %v1616
        %1618 = vmatprep.mubr.f32.mxu0 0.0
        %1619 = vmatmul.mubr.f32.gmra.mrb[0].mxu0 %v1504
        %v1620 = vpop.f32.mrb[0].mxu0
        %v1621 = vadd.f32 %v355, %v1620
        %v1622 = vpop.f32.mrb[0].mxu0
        %v1623 = vadd.f32 %v355, %v1622
        %1624 = vmatprep.mubr.f32.mxu0 0.0
        %1625 = vmatmul.mubr.f32.gmra.mrb[0].mxu0 %v1507
        %v1626 = vpop.f32.mrb[0].mxu0
        %v1627 = vadd.f32 %v360, %v1626
        %v1628 = vpop.f32.mrb[0].mxu0
        %v1629 = vadd.f32 %v360, %v1628
        %1630 = vmatprep.mubr.f32.mxu0 0.0
        %1631 = vmatmul.mubr.f32.gmra.mrb[0].mxu0 %v1510
        %v1632 = vpop.f32.mrb[0].mxu0
        %v1633 = vadd.f32 %v365, %v1632
        %v1634 = vpop.f32.mrb[0].mxu0
        %v1635 = vadd.f32 %v365, %v1634
        %1636 = vmatprep.mubr.f32.mxu0 0.0
        %1637 = vmatmul.mubr.f32.gmra.mrb[0].mxu0 %v1513
        %v1638 = vpop.f32.mrb[0].mxu0
        %v1639 = vadd.f32 %v370, %v1638
        %v1640 = vpop.f32.mrb[0].mxu0
        %v1641 = vadd.f32 %v370, %v1640
        %1642 = vmatprep.mubr.f32.mxu0 0.0
        %1643 = vmatmul.mubr.f32.gmra.mrb[0].mxu0 %v1516
        %v1644 = vpop.f32.mrb[0].mxu0
        %v1645 = vadd.f32 %v375, %v1644
        %v1646 = vpop.f32.mrb[0].mxu0
        %v1647 = vadd.f32 %v375, %v1646
        %1648 = vmatprep.mubr.f32.mxu0 0.0
        %1649 = vmatmul.mubr.f32.gmra.mrb[0].mxu0 %v1519
        %v1650 = vpop.f32.mrb[0].mxu0
        %v1651 = vadd.f32 %v380, %v1650
        %v1652 = vpop.f32.mrb[0].mxu0
        %v1653 = vadd.f32 %v380, %v1652
        %1654 = vmatprep.mubr.f32.mxu0 0.0
        %1655 = vmatmul.mubr.f32.gmra.mrb[0].mxu0 %v1522
        %v1656 = vpop.f32.mrb[0].mxu0
        %v1657 = vadd.f32 %v385, %v1656
        %v1658 = vpop.f32.mrb[0].mxu0
        %v1659 = vadd.f32 %v385, %v1658
        %1660 = vmatprep.mubr.f32.mxu0 0.0
        %1661 = vmatmul.mubr.f32.gmra.mrb[0].mxu0 %v1525
        %v1662 = vpop.f32.mrb[0].mxu0
        %v1663 = vadd.f32 %v390, %v1662
        %v1664 = vpop.f32.mrb[0].mxu0
        %v1665 = vadd.f32 %v390, %v1664
        %1666 = vmatprep.mubr.f32.mxu0 0.0
        %1667 = vmatmul.mubr.f32.gmra.mrb[0].mxu0 %v1528
        %v1668 = vpop.f32.mrb[0].mxu0
        %v1669 = vadd.f32 %v395, %v1668
        %v1670 = vpop.f32.mrb[0].mxu0
        %v1671 = vadd.f32 %v395, %v1670
        %1672 = vmatprep.mubr.f32.mxu0 0.0
        %1673 = vmatmul.mubr.f32.gmra.mrb[0].mxu0 %v1531
        %v1674 = vpop.f32.mrb[0].mxu0
        %v1675 = vadd.f32 %v400, %v1674
        %v1676 = vpop.f32.mrb[0].mxu0
        %v1677 = vadd.f32 %v400, %v1676
        %1678 = vmatprep.mubr.f32.mxu0 0.0
        %1679 = vmatmul.mubr.f32.gmra.mrb[0].mxu0 %v1534
        %v1680 = vpop.f32.mrb[0].mxu0
        %v1681 = vadd.f32 %v405, %v1680
        %v1682 = vpop.f32.mrb[0].mxu0
        %v1683 = vadd.f32 %v405, %v1682
        %1684 = vmatprep.mubr.f32.mxu0 0.0
        %1685 = vmatmul.mubr.f32.gmra.mrb[0].mxu0 %v1537
        %v1686 = vpop.f32.mrb[0].mxu0
        %v1687 = vadd.f32 %v410, %v1686
        %v1688 = vpop.f32.mrb[0].mxu0
        %v1689 = vadd.f32 %v410, %v1688
        %1690 = vmatprep.mubr.f32.mxu0 0.0
        %1691 = vmatmul.mubr.f32.gmra.mrb[0].mxu0 %v1540
        %v1692 = vpop.f32.mrb[0].mxu0
        %v1693 = vadd.f32 %v415, %v1692
        %v1694 = vpop.f32.mrb[0].mxu0
        %v1695 = vadd.f32 %v415, %v1694
        %1696 = vmatprep.mubr.f32.mxu0 0.0
        %1697 = vmatmul.mubr.f32.gmra.mrb[0].mxu0 %v1543
        %v1698 = vpop.f32.mrb[0].mxu0
        %v1699 = vadd.f32 %v420, %v1698
        %v1700 = vpop.f32.mrb[0].mxu0
        %v1701 = vadd.f32 %v420, %v1700
        %1702 = vmatprep.mubr.f32.mxu0 0.0
        %1703 = vmatmul.mubr.f32.gmra.mrb[0].mxu0 %v1546
        %v1704 = vpop.f32.mrb[0].mxu0
        %v1705 = vadd.f32 %v425, %v1704
        %v1706 = vpop.f32.mrb[0].mxu0
        %v1707 = vadd.f32 %v425, %v1706
        %1708 = vdwg.mxu0
        %v1709 = vmax.f32 %v1615, 0.0
        %v1710 = vmax.f32 %v1617, 0.0
        %v1711 = vmax.f32 %v1621, 0.0
        %v1712 = vmax.f32 %v1623, 0.0
        %v1713 = vmax.f32 %v1627, 0.0
        %v1714 = vmax.f32 %v1629, 0.0
        %v1715 = vmax.f32 %v1633, 0.0
        %v1716 = vmax.f32 %v1635, 0.0
        %v1717 = vmax.f32 %v1639, 0.0
        %v1718 = vmax.f32 %v1641, 0.0
        %v1719 = vmax.f32 %v1645, 0.0
        %v1720 = vmax.f32 %v1647, 0.0
        %v1721 = vmax.f32 %v1651, 0.0
        %v1722 = vmax.f32 %v1653, 0.0
        %v1723 = vmax.f32 %v1657, 0.0
        %v1724 = vmax.f32 %v1659, 0.0
        %v1725 = vmax.f32 %v1663, 0.0
        %v1726 = vmax.f32 %v1665, 0.0
        %v1727 = vmax.f32 %v1669, 0.0
        %v1728 = vmax.f32 %v1671, 0.0
        %v1729 = vmax.f32 %v1675, 0.0
        %v1730 = vmax.f32 %v1677, 0.0
        %v1731 = vmax.f32 %v1681, 0.0
        %v1732 = vmax.f32 %v1683, 0.0
        %v1733 = vmax.f32 %v1687, 0.0
        %v1734 = vmax.f32 %v1689, 0.0
        %v1735 = vmax.f32 %v1693, 0.0
        %v1736 = vmax.f32 %v1695, 0.0
        %v1737 = vmax.f32 %v1699, 0.0
        %v1738 = vmax.f32 %v1701, 0.0
        %v1739 = vmax.f32 %v1705, 0.0
        %v1740 = vmax.f32 %v1707, 0.0
        %1741 = vmatprep.subr.mxu0 %v1710
        %1742 = vmatpush1.msra.mxu0 %v1709
        %1743 = vmatprep.subr.mxu0 %v1712
        %1744 = vmatpush1.msra.mxu0 %v1711
        %1745 = vmatprep.subr.mxu0 %v1714
        %1746 = vmatpush1.msra.mxu0 %v1713
        %1747 = vmatprep.subr.mxu0 %v1716
        %1748 = vmatpush1.msra.mxu0 %v1715
        %1749 = vmatprep.subr.mxu0 %v1718
        %1750 = vmatpush1.msra.mxu0 %v1717
        %1751 = vmatprep.subr.mxu0 %v1720
        %1752 = vmatpush1.msra.mxu0 %v1719
        %1753 = vmatprep.subr.mxu0 %v1722
        %1754 = vmatpush1.msra.mxu0 %v1721
        %1755 = vmatprep.subr.mxu0 %v1724
        %1756 = vmatpush1.msra.mxu0 %v1723
        %1757 = vmatprep.subr.mxu0 %v1726
        %1758 = vmatpush1.msra.mxu0 %v1725
        %1759 = vmatprep.subr.mxu0 %v1728
        %1760 = vmatpush1.msra.mxu0 %v1727
        %1761 = vmatprep.subr.mxu0 %v1730
        %1762 = vmatpush1.msra.mxu0 %v1729
        %1763 = vmatprep.subr.mxu0 %v1732
        %1764 = vmatpush1.msra.mxu0 %v1731
        %1765 = vmatprep.subr.mxu0 %v1734
        %1766 = vmatpush1.msra.mxu0 %v1733
        %1767 = vmatprep.subr.mxu0 %v1736
        %1768 = vmatpush1.msra.mxu0 %v1735
        %1769 = vmatprep.subr.mxu0 %v1738
        %1770 = vmatpush1.msra.mxu0 %v1737
        %1771 = vmatprep.subr.mxu0 %v1740
        %1772 = vmatpush1.msra.mxu0 %v1739
        %1773 = vmatprep.subr.mxu0 0.0
        %1774 = vmatpush1.msra.mxu0 0.0
        %1775 = vmatprep.subr.mxu0 0.0
        %1776 = vmatpush1.msra.mxu0 0.0
        %1777 = vmatprep.subr.mxu0 0.0
        %1778 = vmatpush1.msra.mxu0 0.0
        %1779 = vmatprep.subr.mxu0 0.0
        %1780 = vmatpush1.msra.mxu0 0.0
        %1781 = vmatprep.subr.mxu0 0.0
        %1782 = vmatpush1.msra.mxu0 0.0
        %1783 = vmatprep.subr.mxu0 0.0
        %1784 = vmatpush1.msra.mxu0 0.0
        %1785 = vmatprep.subr.mxu0 0.0
        %1786 = vmatpush1.msra.mxu0 0.0
        %1787 = vmatprep.subr.mxu0 0.0
        %1788 = vmatpush1.msra.mxu0 0.0
        %1789 = vmatprep.subr.mxu0 0.0
        %1790 = vmatpush1.msra.mxu0 0.0
        %1791 = vmatprep.subr.mxu0 0.0
        %1792 = vmatpush1.msra.mxu0 0.0
        %1793 = vmatprep.subr.mxu0 0.0
        %1794 = vmatpush1.msra.mxu0 0.0
        %1795 = vmatprep.subr.mxu0 0.0
        %1796 = vmatpush1.msra.mxu0 0.0
        %1797 = vmatprep.subr.mxu0 0.0
        %1798 = vmatpush1.msra.mxu0 0.0
        %1799 = vmatprep.subr.mxu0 0.0
        %1800 = vmatpush1.msra.mxu0 0.0
        %1801 = vmatprep.subr.mxu0 0.0
        %1802 = vmatpush1.msra.mxu0 0.0
        %1803 = vmatprep.subr.mxu0 0.0
        %1804 = vmatpush1.msra.mxu0 0.0
        %1805 = vmatprep.mubr.f32.mxu0 0.0
        %1806 = vmatmul.mubr.f32.gmra.mrb[0].mxu0 %v274
        %v1807 = vpop.f32.mrb[0].mxu0
        %v1808 = vadd.f32 %v672, %v1807
        %v1809 = vpop.f32.mrb[0].mxu0
        %v1810 = vadd.f32 %v672, %v1809
        %1811 = vmatprep.mubr.f32.mxu0 0.0
        %1812 = vmatmul.mubr.f32.gmra.mrb[0].mxu0 %v275
        %v1813 = vpop.f32.mrb[0].mxu0
        %v1814 = vadd.f32 %v677, %v1813
        %v1815 = vpop.f32.mrb[0].mxu0
        %v1816 = vadd.f32 %v677, %v1815
        %1817 = vmatprep.mubr.f32.mxu0 0.0
        %1818 = vmatmul.mubr.f32.gmra.mrb[0].mxu0 %v276
        %v1819 = vpop.f32.mrb[0].mxu0
        %v1820 = vadd.f32 %v682, %v1819
        %v1821 = vpop.f32.mrb[0].mxu0
        %v1822 = vadd.f32 %v682, %v1821
        %1823 = vmatprep.mubr.f32.mxu0 0.0
        %1824 = vmatmul.mubr.f32.gmra.mrb[0].mxu0 %v277
        %v1825 = vpop.f32.mrb[0].mxu0
        %v1826 = vadd.f32 %v687, %v1825
        %v1827 = vpop.f32.mrb[0].mxu0
        %v1828 = vadd.f32 %v687, %v1827
        %1829 = vmatprep.mubr.f32.mxu0 0.0
        %1830 = vmatmul.mubr.f32.gmra.mrb[0].mxu0 %v278
        %v1831 = vpop.f32.mrb[0].mxu0
        %v1832 = vadd.f32 %v692, %v1831
        %v1833 = vpop.f32.mrb[0].mxu0
        %v1834 = vadd.f32 %v692, %v1833
        %1835 = vmatprep.mubr.f32.mxu0 0.0
        %1836 = vmatmul.mubr.f32.gmra.mrb[0].mxu0 %v279
        %v1837 = vpop.f32.mrb[0].mxu0
        %v1838 = vadd.f32 %v697, %v1837
        %v1839 = vpop.f32.mrb[0].mxu0
        %v1840 = vadd.f32 %v697, %v1839
        %1841 = vmatprep.mubr.f32.mxu0 0.0
        %1842 = vmatmul.mubr.f32.gmra.mrb[0].mxu0 %v280
        %v1843 = vpop.f32.mrb[0].mxu0
        %v1844 = vadd.f32 %v702, %v1843
        %v1845 = vpop.f32.mrb[0].mxu0
        %v1846 = vadd.f32 %v702, %v1845
        %1847 = vmatprep.mubr.f32.mxu0 0.0
        %1848 = vmatmul.mubr.f32.gmra.mrb[0].mxu0 %v281
        %v1849 = vpop.f32.mrb[0].mxu0
        %v1850 = vadd.f32 %v707, %v1849
        %v1851 = vpop.f32.mrb[0].mxu0
        %v1852 = vadd.f32 %v707, %v1851
        %1853 = vmatprep.mubr.f32.mxu0 0.0
        %1854 = vmatmul.mubr.f32.gmra.mrb[0].mxu0 %v282
        %v1855 = vpop.f32.mrb[0].mxu0
        %v1856 = vadd.f32 %v712, %v1855
        %v1857 = vpop.f32.mrb[0].mxu0
        %v1858 = vadd.f32 %v712, %v1857
        %1859 = vmatprep.mubr.f32.mxu0 0.0
        %1860 = vmatmul.mubr.f32.gmra.mrb[0].mxu0 %v283
        %v1861 = vpop.f32.mrb[0].mxu0
        %v1862 = vadd.f32 %v717, %v1861
        %v1863 = vpop.f32.mrb[0].mxu0
        %v1864 = vadd.f32 %v717, %v1863
        %1865 = vmatprep.mubr.f32.mxu0 0.0
        %1866 = vmatmul.mubr.f32.gmra.mrb[0].mxu0 %v284
        %v1867 = vpop.f32.mrb[0].mxu0
        %v1868 = vadd.f32 %v722, %v1867
        %v1869 = vpop.f32.mrb[0].mxu0
        %v1870 = vadd.f32 %v722, %v1869
        %1871 = vmatprep.mubr.f32.mxu0 0.0
        %1872 = vmatmul.mubr.f32.gmra.mrb[0].mxu0 %v285
        %v1873 = vpop.f32.mrb[0].mxu0
        %v1874 = vadd.f32 %v727, %v1873
        %v1875 = vpop.f32.mrb[0].mxu0
        %v1876 = vadd.f32 %v727, %v1875
        %1877 = vmatprep.mubr.f32.mxu0 0.0
        %1878 = vmatmul.mubr.f32.gmra.mrb[0].mxu0 %v286
        %v1879 = vpop.f32.mrb[0].mxu0
        %v1880 = vadd.f32 %v732, %v1879
        %v1881 = vpop.f32.mrb[0].mxu0
        %v1882 = vadd.f32 %v732, %v1881
        %1883 = vmatprep.mubr.f32.mxu0 0.0
        %1884 = vmatmul.mubr.f32.gmra.mrb[0].mxu0 %v287
        %v1885 = vpop.f32.mrb[0].mxu0
        %v1886 = vadd.f32 %v737, %v1885
        %v1887 = vpop.f32.mrb[0].mxu0
        %v1888 = vadd.f32 %v737, %v1887
        %1889 = vmatprep.mubr.f32.mxu0 0.0
        %1890 = vmatmul.mubr.f32.gmra.mrb[0].mxu0 %v288
        %v1891 = vpop.f32.mrb[0].mxu0
        %v1892 = vadd.f32 %v742, %v1891
        %v1893 = vpop.f32.mrb[0].mxu0
        %v1894 = vadd.f32 %v742, %v1893
        %1895 = vmatprep.mubr.f32.mxu0 0.0
        %1896 = vmatmul.mubr.f32.gmra.mrb[0].mxu0 %v289
        %v1897 = vpop.f32.mrb[0].mxu0
        %v1898 = vadd.f32 %v747, %v1897
        %v1899 = vpop.f32.mrb[0].mxu0
        %v1900 = vadd.f32 %v747, %v1899
        %1901 = vdwg.mxu0
        %s1902 = sld [smem:[#allocation3 + $0x2]]
        %v1903 = vstv %s1902
        %v1904 = vmul.f32 %v330, %v1903
        %v1906 = vlaneseq
        %v1907 = vshrl.u32 %v1906, 7
        %v1908 = vsub.s32 0, %v1907
        %v1909 = vrot.slane %v1904, %v1908
        %v1910 = vlaneseq
        %v1911 = vshrl.u32 %v1910, 7
        %v1912 = vsub.s32 1, %v1911
        %v1913 = vrot.slane %v1904, %v1912
        %v1916 = vadd.f32 %v1808, %v1909
        %v1917 = vadd.f32 %v1810, %v1913
        %v1918 = vadd.f32 %v1814, %v1909
        %v1919 = vadd.f32 %v1816, %v1913
        %v1920 = vadd.f32 %v1820, %v1909
        %v1921 = vadd.f32 %v1822, %v1913
        %v1922 = vadd.f32 %v1826, %v1909
        %v1923 = vadd.f32 %v1828, %v1913
        %v1924 = vadd.f32 %v1832, %v1909
        %v1925 = vadd.f32 %v1834, %v1913
        %v1926 = vadd.f32 %v1838, %v1909
        %v1927 = vadd.f32 %v1840, %v1913
        %v1928 = vadd.f32 %v1844, %v1909
        %v1929 = vadd.f32 %v1846, %v1913
        %v1930 = vadd.f32 %v1850, %v1909
        %v1931 = vadd.f32 %v1852, %v1913
        %v1932 = vadd.f32 %v1856, %v1909
        %v1933 = vadd.f32 %v1858, %v1913
        %v1934 = vadd.f32 %v1862, %v1909
        %v1935 = vadd.f32 %v1864, %v1913
        %v1936 = vadd.f32 %v1868, %v1909
        %v1937 = vadd.f32 %v1870, %v1913
        %v1938 = vadd.f32 %v1874, %v1909
        %v1939 = vadd.f32 %v1876, %v1913
        %v1940 = vadd.f32 %v1880, %v1909
        %v1941 = vadd.f32 %v1882, %v1913
        %v1942 = vadd.f32 %v1886, %v1909
        %v1943 = vadd.f32 %v1888, %v1913
        %v1944 = vadd.f32 %v1892, %v1909
        %v1945 = vadd.f32 %v1894, %v1913
        %v1946 = vadd.f32 %v1898, %v1909
        %v1947 = vadd.f32 %v1900, %v1913
        %1948 = vst [vmem:[%s264 + $0x200] sm:$0xff] %v1916
        %1949 = vst [vmem:[%s264 + $0x208] sm:$0xff] %v1917
        %1950 = vst [vmem:[%s264 + $0x210] sm:$0xff] %v1918
        %1951 = vst [vmem:[%s264 + $0x218] sm:$0xff] %v1919
        %1952 = vst [vmem:[%s264 + $0x220] sm:$0xff] %v1920
        %1953 = vst [vmem:[%s264 + $0x228] sm:$0xff] %v1921
        %1954 = vst [vmem:[%s264 + $0x230] sm:$0xff] %v1922
        %1955 = vst [vmem:[%s264 + $0x238] sm:$0xff] %v1923
        %1956 = vst [vmem:[%s264 + $0x240] sm:$0xff] %v1924
        %1957 = vst [vmem:[%s264 + $0x248] sm:$0xff] %v1925
        %1958 = vst [vmem:[%s264 + $0x250] sm:$0xff] %v1926
        %1959 = vst [vmem:[%s264 + $0x258] sm:$0xff] %v1927
        %1960 = vst [vmem:[%s264 + $0x260] sm:$0xff] %v1928
        %1961 = vst [vmem:[%s264 + $0x268] sm:$0xff] %v1929
        %1962 = vst [vmem:[%s264 + $0x270] sm:$0xff] %v1930
        %1963 = vst [vmem:[%s264 + $0x278] sm:$0xff] %v1931
        %1964 = vst [vmem:[%s264 + $0x280] sm:$0xff] %v1932
        %1965 = vst [vmem:[%s264 + $0x288] sm:$0xff] %v1933
        %1966 = vst [vmem:[%s264 + $0x290] sm:$0xff] %v1934
        %1967 = vst [vmem:[%s264 + $0x298] sm:$0xff] %v1935
        %1968 = vst [vmem:[%s264 + $0x2a0] sm:$0xff] %v1936
        %1969 = vst [vmem:[%s264 + $0x2a8] sm:$0xff] %v1937
        %1970 = vst [vmem:[%s264 + $0x2b0] sm:$0xff] %v1938
        %1971 = vst [vmem:[%s264 + $0x2b8] sm:$0xff] %v1939
        %1972 = vst [vmem:[%s264 + $0x2c0] sm:$0xff] %v1940
        %1973 = vst [vmem:[%s264 + $0x2c8] sm:$0xff] %v1941
        %1974 = vst [vmem:[%s264 + $0x2d0] sm:$0xff] %v1942
        %1975 = vst [vmem:[%s264 + $0x2d8] sm:$0xff] %v1943
        %1976 = vst [vmem:[%s264 + $0x2e0] sm:$0xff] %v1944
        %1977 = vst [vmem:[%s264 + $0x2e8] sm:$0xff] %v1945
        %1978 = vst [vmem:[%s264 + $0x2f0] sm:$0xff] %v1946
        %1979 = vst [vmem:[%s264 + $0x2f8] sm:$0xff] %v1947
        %v1980 = vld [vmem:[%s3 + $0x180] sm:$0xff]
        %v1981 = vld [vmem:[%s3 + $0x188] sm:$0xff]
        %v1982 = vld [vmem:[%s3 + $0x190] sm:$0xff]
        %v1983 = vld [vmem:[%s3 + $0x198] sm:$0xff]
        %v1984 = vld [vmem:[%s3 + $0x1a0] sm:$0xff]
        %v1985 = vld [vmem:[%s3 + $0x1a8] sm:$0xff]
        %v1986 = vld [vmem:[%s3 + $0x1b0] sm:$0xff]
        %v1987 = vld [vmem:[%s3 + $0x1b8] sm:$0xff]
        %v1988 = vld [vmem:[%s3 + $0x1c0] sm:$0xff]
        %v1989 = vld [vmem:[%s3 + $0x1c8] sm:$0xff]
        %v1990 = vld [vmem:[%s3 + $0x1d0] sm:$0xff]
        %v1991 = vld [vmem:[%s3 + $0x1d8] sm:$0xff]
        %v1992 = vld [vmem:[%s3 + $0x1e0] sm:$0xff]
        %v1993 = vld [vmem:[%s3 + $0x1e8] sm:$0xff]
        %v1994 = vld [vmem:[%s3 + $0x1f0] sm:$0xff]
        %v1995 = vld [vmem:[%s3 + $0x1f8] sm:$0xff]
        %v1997 = vsel %vm427, %v1980, 0
        %v2000 = vsel %vm427, %v1981, 0
        %v2003 = vsel %vm427, %v1982, 0
        %v2006 = vsel %vm427, %v1983, 0
        %v2009 = vsel %vm427, %v1984, 0
        %v2012 = vsel %vm427, %v1985, 0
        %v2015 = vsel %vm427, %v1986, 0
        %v2018 = vsel %vm427, %v1987, 0
        %v2021 = vsel %vm427, %v1988, 0
        %v2024 = vsel %vm427, %v1989, 0
        %v2027 = vsel %vm427, %v1990, 0
        %v2030 = vsel %vm427, %v1991, 0
        %v2033 = vsel %vm427, %v1992, 0
        %v2036 = vsel %vm427, %v1993, 0
        %v2039 = vsel %vm427, %v1994, 0
        %v2042 = vsel %vm427, %v1995, 0
        %2044 = vmatprep.subr.mxu0 %v323
        %2045 = vmatpush1.msra.mxu0 %v322
        %2046 = vmatprep.subr.mxu0 %v325
        %2047 = vmatpush1.msra.mxu0 %v324
        %2048 = vmatprep.subr.mxu0 %v327
        %2049 = vmatpush1.msra.mxu0 %v326
        %2050 = vmatprep.subr.mxu0 %v329
        %2051 = vmatpush1.msra.mxu0 %v328
        %2052 = vmatprep.subr.mxu0 0.0
        %2053 = vmatpush1.msra.mxu0 0.0
        %2054 = vmatprep.subr.mxu0 0.0
        %2055 = vmatpush1.msra.mxu0 0.0
        %2056 = vmatprep.subr.mxu0 0.0
        %2057 = vmatpush1.msra.mxu0 0.0
        %2058 = vmatprep.subr.mxu0 0.0
        %2059 = vmatpush1.msra.mxu0 0.0
        %2060 = vmatprep.subr.mxu0 0.0
        %2061 = vmatpush1.msra.mxu0 0.0
        %2062 = vmatprep.subr.mxu0 0.0
        %2063 = vmatpush1.msra.mxu0 0.0
        %2064 = vmatprep.subr.mxu0 0.0
        %2065 = vmatpush1.msra.mxu0 0.0
        %2066 = vmatprep.subr.mxu0 0.0
        %2067 = vmatpush1.msra.mxu0 0.0
        %2068 = vmatprep.subr.mxu0 0.0
        %2069 = vmatpush1.msra.mxu0 0.0
        %2070 = vmatprep.subr.mxu0 0.0
        %2071 = vmatpush1.msra.mxu0 0.0
        %2072 = vmatprep.subr.mxu0 0.0
        %2073 = vmatpush1.msra.mxu0 0.0
        %2074 = vmatprep.subr.mxu0 0.0
        %2075 = vmatpush1.msra.mxu0 0.0
        %2076 = vmatprep.subr.mxu0 0.0
        %2077 = vmatpush1.msra.mxu0 0.0
        %2078 = vmatprep.subr.mxu0 0.0
        %2079 = vmatpush1.msra.mxu0 0.0
        %2080 = vmatprep.subr.mxu0 0.0
        %2081 = vmatpush1.msra.mxu0 0.0
        %2082 = vmatprep.subr.mxu0 0.0
        %2083 = vmatpush1.msra.mxu0 0.0
        %2084 = vmatprep.subr.mxu0 0.0
        %2085 = vmatpush1.msra.mxu0 0.0
        %2086 = vmatprep.subr.mxu0 0.0
        %2087 = vmatpush1.msra.mxu0 0.0
        %2088 = vmatprep.subr.mxu0 0.0
        %2089 = vmatpush1.msra.mxu0 0.0
        %2090 = vmatprep.subr.mxu0 0.0
        %2091 = vmatpush1.msra.mxu0 0.0
        %2092 = vmatprep.subr.mxu0 0.0
        %2093 = vmatpush1.msra.mxu0 0.0
        %2094 = vmatprep.subr.mxu0 0.0
        %2095 = vmatpush1.msra.mxu0 0.0
        %2096 = vmatprep.subr.mxu0 0.0
        %2097 = vmatpush1.msra.mxu0 0.0
        %2098 = vmatprep.subr.mxu0 0.0
        %2099 = vmatpush1.msra.mxu0 0.0
        %2100 = vmatprep.subr.mxu0 0.0
        %2101 = vmatpush1.msra.mxu0 0.0
        %2102 = vmatprep.subr.mxu0 0.0
        %2103 = vmatpush1.msra.mxu0 0.0
        %2104 = vmatprep.subr.mxu0 0.0
        %2105 = vmatpush1.msra.mxu0 0.0
        %2106 = vmatprep.subr.mxu0 0.0
        %2107 = vmatpush1.msra.mxu0 0.0
        %2108 = vmatprep.mubr.f32.mxu0 0.0
        %2109 = vmatmul.mubr.f32.gmra.mrb[0].mxu0 %v1997
        %v2110 = vpop.f32.mrb[0].mxu0
        %v2111 = vadd.f32 %v350, %v2110
        %v2112 = vpop.f32.mrb[0].mxu0
        %v2113 = vadd.f32 %v350, %v2112
        %2114 = vmatprep.mubr.f32.mxu0 0.0
        %2115 = vmatmul.mubr.f32.gmra.mrb[0].mxu0 %v2000
        %v2116 = vpop.f32.mrb[0].mxu0
        %v2117 = vadd.f32 %v355, %v2116
        %v2118 = vpop.f32.mrb[0].mxu0
        %v2119 = vadd.f32 %v355, %v2118
        %2120 = vmatprep.mubr.f32.mxu0 0.0
        %2121 = vmatmul.mubr.f32.gmra.mrb[0].mxu0 %v2003
        %v2122 = vpop.f32.mrb[0].mxu0
        %v2123 = vadd.f32 %v360, %v2122
        %v2124 = vpop.f32.mrb[0].mxu0
        %v2125 = vadd.f32 %v360, %v2124
        %2126 = vmatprep.mubr.f32.mxu0 0.0
        %2127 = vmatmul.mubr.f32.gmra.mrb[0].mxu0 %v2006
        %v2128 = vpop.f32.mrb[0].mxu0
        %v2129 = vadd.f32 %v365, %v2128
        %v2130 = vpop.f32.mrb[0].mxu0
        %v2131 = vadd.f32 %v365, %v2130
        %2132 = vmatprep.mubr.f32.mxu0 0.0
        %2133 = vmatmul.mubr.f32.gmra.mrb[0].mxu0 %v2009
        %v2134 = vpop.f32.mrb[0].mxu0
        %v2135 = vadd.f32 %v370, %v2134
        %v2136 = vpop.f32.mrb[0].mxu0
        %v2137 = vadd.f32 %v370, %v2136
        %2138 = vmatprep.mubr.f32.mxu0 0.0
        %2139 = vmatmul.mubr.f32.gmra.mrb[0].mxu0 %v2012
        %v2140 = vpop.f32.mrb[0].mxu0
        %v2141 = vadd.f32 %v375, %v2140
        %v2142 = vpop.f32.mrb[0].mxu0
        %v2143 = vadd.f32 %v375, %v2142
        %2144 = vmatprep.mubr.f32.mxu0 0.0
        %2145 = vmatmul.mubr.f32.gmra.mrb[0].mxu0 %v2015
        %v2146 = vpop.f32.mrb[0].mxu0
        %v2147 = vadd.f32 %v380, %v2146
        %v2148 = vpop.f32.mrb[0].mxu0
        %v2149 = vadd.f32 %v380, %v2148
        %2150 = vmatprep.mubr.f32.mxu0 0.0
        %2151 = vmatmul.mubr.f32.gmra.mrb[0].mxu0 %v2018
        %v2152 = vpop.f32.mrb[0].mxu0
        %v2153 = vadd.f32 %v385, %v2152
        %v2154 = vpop.f32.mrb[0].mxu0
        %v2155 = vadd.f32 %v385, %v2154
        %2156 = vmatprep.mubr.f32.mxu0 0.0
        %2157 = vmatmul.mubr.f32.gmra.mrb[0].mxu0 %v2021
        %v2158 = vpop.f32.mrb[0].mxu0
        %v2159 = vadd.f32 %v390, %v2158
        %v2160 = vpop.f32.mrb[0].mxu0
        %v2161 = vadd.f32 %v390, %v2160
        %2162 = vmatprep.mubr.f32.mxu0 0.0
        %2163 = vmatmul.mubr.f32.gmra.mrb[0].mxu0 %v2024
        %v2164 = vpop.f32.mrb[0].mxu0
        %v2165 = vadd.f32 %v395, %v2164
        %v2166 = vpop.f32.mrb[0].mxu0
        %v2167 = vadd.f32 %v395, %v2166
        %2168 = vmatprep.mubr.f32.mxu0 0.0
        %2169 = vmatmul.mubr.f32.gmra.mrb[0].mxu0 %v2027
        %v2170 = vpop.f32.mrb[0].mxu0
        %v2171 = vadd.f32 %v400, %v2170
        %v2172 = vpop.f32.mrb[0].mxu0
        %v2173 = vadd.f32 %v400, %v2172
        %2174 = vmatprep.mubr.f32.mxu0 0.0
        %2175 = vmatmul.mubr.f32.gmra.mrb[0].mxu0 %v2030
        %v2176 = vpop.f32.mrb[0].mxu0
        %v2177 = vadd.f32 %v405, %v2176
        %v2178 = vpop.f32.mrb[0].mxu0
        %v2179 = vadd.f32 %v405, %v2178
        %2180 = vmatprep.mubr.f32.mxu0 0.0
        %2181 = vmatmul.mubr.f32.gmra.mrb[0].mxu0 %v2033
        %v2182 = vpop.f32.mrb[0].mxu0
        %v2183 = vadd.f32 %v410, %v2182
        %v2184 = vpop.f32.mrb[0].mxu0
        %v2185 = vadd.f32 %v410, %v2184
        %2186 = vmatprep.mubr.f32.mxu0 0.0
        %2187 = vmatmul.mubr.f32.gmra.mrb[0].mxu0 %v2036
        %v2188 = vpop.f32.mrb[0].mxu0
        %v2189 = vadd.f32 %v415, %v2188
        %v2190 = vpop.f32.mrb[0].mxu0
        %v2191 = vadd.f32 %v415, %v2190
        %2192 = vmatprep.mubr.f32.mxu0 0.0
        %2193 = vmatmul.mubr.f32.gmra.mrb[0].mxu0 %v2039
        %v2194 = vpop.f32.mrb[0].mxu0
        %v2195 = vadd.f32 %v420, %v2194
        %v2196 = vpop.f32.mrb[0].mxu0
        %v2197 = vadd.f32 %v420, %v2196
        %2198 = vmatprep.mubr.f32.mxu0 0.0
        %2199 = vmatmul.mubr.f32.gmra.mrb[0].mxu0 %v2042
        %v2200 = vpop.f32.mrb[0].mxu0
        %v2201 = vadd.f32 %v425, %v2200
        %v2202 = vpop.f32.mrb[0].mxu0
        %v2203 = vadd.f32 %v425, %v2202
        %2204 = vdwg.mxu0
        %v2205 = vmax.f32 %v2111, 0.0
        %v2206 = vmax.f32 %v2113, 0.0
        %v2207 = vmax.f32 %v2117, 0.0
        %v2208 = vmax.f32 %v2119, 0.0
        %v2209 = vmax.f32 %v2123, 0.0
        %v2210 = vmax.f32 %v2125, 0.0
        %v2211 = vmax.f32 %v2129, 0.0
        %v2212 = vmax.f32 %v2131, 0.0
        %v2213 = vmax.f32 %v2135, 0.0
        %v2214 = vmax.f32 %v2137, 0.0
        %v2215 = vmax.f32 %v2141, 0.0
        %v2216 = vmax.f32 %v2143, 0.0
        %v2217 = vmax.f32 %v2147, 0.0
        %v2218 = vmax.f32 %v2149, 0.0
        %v2219 = vmax.f32 %v2153, 0.0
        %v2220 = vmax.f32 %v2155, 0.0
        %v2221 = vmax.f32 %v2159, 0.0
        %v2222 = vmax.f32 %v2161, 0.0
        %v2223 = vmax.f32 %v2165, 0.0
        %v2224 = vmax.f32 %v2167, 0.0
        %v2225 = vmax.f32 %v2171, 0.0
        %v2226 = vmax.f32 %v2173, 0.0
        %v2227 = vmax.f32 %v2177, 0.0
        %v2228 = vmax.f32 %v2179, 0.0
        %v2229 = vmax.f32 %v2183, 0.0
        %v2230 = vmax.f32 %v2185, 0.0
        %v2231 = vmax.f32 %v2189, 0.0
        %v2232 = vmax.f32 %v2191, 0.0
        %v2233 = vmax.f32 %v2195, 0.0
        %v2234 = vmax.f32 %v2197, 0.0
        %v2235 = vmax.f32 %v2201, 0.0
        %v2236 = vmax.f32 %v2203, 0.0
        %2237 = vmatprep.subr.mxu0 %v2206
        %2238 = vmatpush1.msra.mxu0 %v2205
        %2239 = vmatprep.subr.mxu0 %v2208
        %2240 = vmatpush1.msra.mxu0 %v2207
        %2241 = vmatprep.subr.mxu0 %v2210
        %2242 = vmatpush1.msra.mxu0 %v2209
        %2243 = vmatprep.subr.mxu0 %v2212
        %2244 = vmatpush1.msra.mxu0 %v2211
        %2245 = vmatprep.subr.mxu0 %v2214
        %2246 = vmatpush1.msra.mxu0 %v2213
        %2247 = vmatprep.subr.mxu0 %v2216
        %2248 = vmatpush1.msra.mxu0 %v2215
        %2249 = vmatprep.subr.mxu0 %v2218
        %2250 = vmatpush1.msra.mxu0 %v2217
        %2251 = vmatprep.subr.mxu0 %v2220
        %2252 = vmatpush1.msra.mxu0 %v2219
        %2253 = vmatprep.subr.mxu0 %v2222
        %2254 = vmatpush1.msra.mxu0 %v2221
        %2255 = vmatprep.subr.mxu0 %v2224
        %2256 = vmatpush1.msra.mxu0 %v2223
        %2257 = vmatprep.subr.mxu0 %v2226
        %2258 = vmatpush1.msra.mxu0 %v2225
        %2259 = vmatprep.subr.mxu0 %v2228
        %2260 = vmatpush1.msra.mxu0 %v2227
        %2261 = vmatprep.subr.mxu0 %v2230
        %2262 = vmatpush1.msra.mxu0 %v2229
        %2263 = vmatprep.subr.mxu0 %v2232
        %2264 = vmatpush1.msra.mxu0 %v2231
        %2265 = vmatprep.subr.mxu0 %v2234
        %2266 = vmatpush1.msra.mxu0 %v2233
        %2267 = vmatprep.subr.mxu0 %v2236
        %2268 = vmatpush1.msra.mxu0 %v2235
        %2269 = vmatprep.subr.mxu0 0.0
        %2270 = vmatpush1.msra.mxu0 0.0
        %2271 = vmatprep.subr.mxu0 0.0
        %2272 = vmatpush1.msra.mxu0 0.0
        %2273 = vmatprep.subr.mxu0 0.0
        %2274 = vmatpush1.msra.mxu0 0.0
        %2275 = vmatprep.subr.mxu0 0.0
        %2276 = vmatpush1.msra.mxu0 0.0
        %2277 = vmatprep.subr.mxu0 0.0
        %2278 = vmatpush1.msra.mxu0 0.0
        %2279 = vmatprep.subr.mxu0 0.0
        %2280 = vmatpush1.msra.mxu0 0.0
        %2281 = vmatprep.subr.mxu0 0.0
        %2282 = vmatpush1.msra.mxu0 0.0
        %2283 = vmatprep.subr.mxu0 0.0
        %2284 = vmatpush1.msra.mxu0 0.0
        %2285 = vmatprep.subr.mxu0 0.0
        %2286 = vmatpush1.msra.mxu0 0.0
        %2287 = vmatprep.subr.mxu0 0.0
        %2288 = vmatpush1.msra.mxu0 0.0
        %2289 = vmatprep.subr.mxu0 0.0
        %2290 = vmatpush1.msra.mxu0 0.0
        %2291 = vmatprep.subr.mxu0 0.0
        %2292 = vmatpush1.msra.mxu0 0.0
        %2293 = vmatprep.subr.mxu0 0.0
        %2294 = vmatpush1.msra.mxu0 0.0
        %2295 = vmatprep.subr.mxu0 0.0
        %2296 = vmatpush1.msra.mxu0 0.0
        %2297 = vmatprep.subr.mxu0 0.0
        %2298 = vmatpush1.msra.mxu0 0.0
        %2299 = vmatprep.subr.mxu0 0.0
        %2300 = vmatpush1.msra.mxu0 0.0
        %2301 = vmatprep.mubr.f32.mxu0 0.0
        %2302 = vmatmul.mubr.f32.gmra.mrb[0].mxu0 %v274
        %v2303 = vpop.f32.mrb[0].mxu0
        %v2304 = vadd.f32 %v672, %v2303
        %v2305 = vpop.f32.mrb[0].mxu0
        %v2306 = vadd.f32 %v672, %v2305
        %2307 = vmatprep.mubr.f32.mxu0 0.0
        %2308 = vmatmul.mubr.f32.gmra.mrb[0].mxu0 %v275
        %v2309 = vpop.f32.mrb[0].mxu0
        %v2310 = vadd.f32 %v677, %v2309
        %v2311 = vpop.f32.mrb[0].mxu0
        %v2312 = vadd.f32 %v677, %v2311
        %2313 = vmatprep.mubr.f32.mxu0 0.0
        %2314 = vmatmul.mubr.f32.gmra.mrb[0].mxu0 %v276
        %v2315 = vpop.f32.mrb[0].mxu0
        %v2316 = vadd.f32 %v682, %v2315
        %v2317 = vpop.f32.mrb[0].mxu0
        %v2318 = vadd.f32 %v682, %v2317
        %2319 = vmatprep.mubr.f32.mxu0 0.0
        %2320 = vmatmul.mubr.f32.gmra.mrb[0].mxu0 %v277
        %v2321 = vpop.f32.mrb[0].mxu0
        %v2322 = vadd.f32 %v687, %v2321
        %v2323 = vpop.f32.mrb[0].mxu0
        %v2324 = vadd.f32 %v687, %v2323
        %2325 = vmatprep.mubr.f32.mxu0 0.0
        %2326 = vmatmul.mubr.f32.gmra.mrb[0].mxu0 %v278
        %v2327 = vpop.f32.mrb[0].mxu0
        %v2328 = vadd.f32 %v692, %v2327
        %v2329 = vpop.f32.mrb[0].mxu0
        %v2330 = vadd.f32 %v692, %v2329
        %2331 = vmatprep.mubr.f32.mxu0 0.0
        %2332 = vmatmul.mubr.f32.gmra.mrb[0].mxu0 %v279
        %v2333 = vpop.f32.mrb[0].mxu0
        %v2334 = vadd.f32 %v697, %v2333
        %v2335 = vpop.f32.mrb[0].mxu0
        %v2336 = vadd.f32 %v697, %v2335
        %2337 = vmatprep.mubr.f32.mxu0 0.0
        %2338 = vmatmul.mubr.f32.gmra.mrb[0].mxu0 %v280
        %v2339 = vpop.f32.mrb[0].mxu0
        %v2340 = vadd.f32 %v702, %v2339
        %v2341 = vpop.f32.mrb[0].mxu0
        %v2342 = vadd.f32 %v702, %v2341
        %2343 = vmatprep.mubr.f32.mxu0 0.0
        %2344 = vmatmul.mubr.f32.gmra.mrb[0].mxu0 %v281
        %v2345 = vpop.f32.mrb[0].mxu0
        %v2346 = vadd.f32 %v707, %v2345
        %v2347 = vpop.f32.mrb[0].mxu0
        %v2348 = vadd.f32 %v707, %v2347
        %2349 = vmatprep.mubr.f32.mxu0 0.0
        %2350 = vmatmul.mubr.f32.gmra.mrb[0].mxu0 %v282
        %v2351 = vpop.f32.mrb[0].mxu0
        %v2352 = vadd.f32 %v712, %v2351
        %v2353 = vpop.f32.mrb[0].mxu0
        %v2354 = vadd.f32 %v712, %v2353
        %2355 = vmatprep.mubr.f32.mxu0 0.0
        %2356 = vmatmul.mubr.f32.gmra.mrb[0].mxu0 %v283
        %v2357 = vpop.f32.mrb[0].mxu0
        %v2358 = vadd.f32 %v717, %v2357
        %v2359 = vpop.f32.mrb[0].mxu0
        %v2360 = vadd.f32 %v717, %v2359
        %2361 = vmatprep.mubr.f32.mxu0 0.0
        %2362 = vmatmul.mubr.f32.gmra.mrb[0].mxu0 %v284
        %v2363 = vpop.f32.mrb[0].mxu0
        %v2364 = vadd.f32 %v722, %v2363
        %v2365 = vpop.f32.mrb[0].mxu0
        %v2366 = vadd.f32 %v722, %v2365
        %2367 = vmatprep.mubr.f32.mxu0 0.0
        %2368 = vmatmul.mubr.f32.gmra.mrb[0].mxu0 %v285
        %v2369 = vpop.f32.mrb[0].mxu0
        %v2370 = vadd.f32 %v727, %v2369
        %v2371 = vpop.f32.mrb[0].mxu0
        %v2372 = vadd.f32 %v727, %v2371
        %2373 = vmatprep.mubr.f32.mxu0 0.0
        %2374 = vmatmul.mubr.f32.gmra.mrb[0].mxu0 %v286
        %v2375 = vpop.f32.mrb[0].mxu0
        %v2376 = vadd.f32 %v732, %v2375
        %v2377 = vpop.f32.mrb[0].mxu0
        %v2378 = vadd.f32 %v732, %v2377
        %2379 = vmatprep.mubr.f32.mxu0 0.0
        %2380 = vmatmul.mubr.f32.gmra.mrb[0].mxu0 %v287
        %v2381 = vpop.f32.mrb[0].mxu0
        %v2382 = vadd.f32 %v737, %v2381
        %v2383 = vpop.f32.mrb[0].mxu0
        %v2384 = vadd.f32 %v737, %v2383
        %2385 = vmatprep.mubr.f32.mxu0 0.0
        %2386 = vmatmul.mubr.f32.gmra.mrb[0].mxu0 %v288
        %v2387 = vpop.f32.mrb[0].mxu0
        %v2388 = vadd.f32 %v742, %v2387
        %v2389 = vpop.f32.mrb[0].mxu0
        %v2390 = vadd.f32 %v742, %v2389
        %2391 = vmatprep.mubr.f32.mxu0 0.0
        %2392 = vmatmul.mubr.f32.gmra.mrb[0].mxu0 %v289
        %v2393 = vpop.f32.mrb[0].mxu0
        %v2394 = vadd.f32 %v747, %v2393
        %v2395 = vpop.f32.mrb[0].mxu0
        %v2396 = vadd.f32 %v747, %v2395
        %2397 = vdwg.mxu0
        %s2398 = sld [smem:[#allocation3 + $0x3]]
        %v2399 = vstv %s2398
        %v2400 = vmul.f32 %v330, %v2399
        %v2402 = vlaneseq
        %v2403 = vshrl.u32 %v2402, 7
        %v2404 = vsub.s32 0, %v2403
        %v2405 = vrot.slane %v2400, %v2404
        %v2406 = vlaneseq
        %v2407 = vshrl.u32 %v2406, 7
        %v2408 = vsub.s32 1, %v2407
        %v2409 = vrot.slane %v2400, %v2408
        %v2412 = vadd.f32 %v2304, %v2405
        %v2413 = vadd.f32 %v2306, %v2409
        %v2414 = vadd.f32 %v2310, %v2405
        %v2415 = vadd.f32 %v2312, %v2409
        %v2416 = vadd.f32 %v2316, %v2405
        %v2417 = vadd.f32 %v2318, %v2409
        %v2418 = vadd.f32 %v2322, %v2405
        %v2419 = vadd.f32 %v2324, %v2409
        %v2420 = vadd.f32 %v2328, %v2405
        %v2421 = vadd.f32 %v2330, %v2409
        %v2422 = vadd.f32 %v2334, %v2405
        %v2423 = vadd.f32 %v2336, %v2409
        %v2424 = vadd.f32 %v2340, %v2405
        %v2425 = vadd.f32 %v2342, %v2409
        %v2426 = vadd.f32 %v2346, %v2405
        %v2427 = vadd.f32 %v2348, %v2409
        %v2428 = vadd.f32 %v2352, %v2405
        %v2429 = vadd.f32 %v2354, %v2409
        %v2430 = vadd.f32 %v2358, %v2405
        %v2431 = vadd.f32 %v2360, %v2409
        %v2432 = vadd.f32 %v2364, %v2405
        %v2433 = vadd.f32 %v2366, %v2409
        %v2434 = vadd.f32 %v2370, %v2405
        %v2435 = vadd.f32 %v2372, %v2409
        %v2436 = vadd.f32 %v2376, %v2405
        %v2437 = vadd.f32 %v2378, %v2409
        %v2438 = vadd.f32 %v2382, %v2405
        %v2439 = vadd.f32 %v2384, %v2409
        %v2440 = vadd.f32 %v2388, %v2405
        %v2441 = vadd.f32 %v2390, %v2409
        %v2442 = vadd.f32 %v2394, %v2405
        %v2443 = vadd.f32 %v2396, %v2409
        %2444 = vst [vmem:[%s264 + $0x300] sm:$0xff] %v2412
        %2445 = vst [vmem:[%s264 + $0x308] sm:$0xff] %v2413
        %2446 = vst [vmem:[%s264 + $0x310] sm:$0xff] %v2414
        %2447 = vst [vmem:[%s264 + $0x318] sm:$0xff] %v2415
        %2448 = vst [vmem:[%s264 + $0x320] sm:$0xff] %v2416
        %2449 = vst [vmem:[%s264 + $0x328] sm:$0xff] %v2417
        %2450 = vst [vmem:[%s264 + $0x330] sm:$0xff] %v2418
        %2451 = vst [vmem:[%s264 + $0x338] sm:$0xff] %v2419
        %2452 = vst [vmem:[%s264 + $0x340] sm:$0xff] %v2420
        %2453 = vst [vmem:[%s264 + $0x348] sm:$0xff] %v2421
        %2454 = vst [vmem:[%s264 + $0x350] sm:$0xff] %v2422
        %2455 = vst [vmem:[%s264 + $0x358] sm:$0xff] %v2423
        %2456 = vst [vmem:[%s264 + $0x360] sm:$0xff] %v2424
        %2457 = vst [vmem:[%s264 + $0x368] sm:$0xff] %v2425
        %2458 = vst [vmem:[%s264 + $0x370] sm:$0xff] %v2426
        %2459 = vst [vmem:[%s264 + $0x378] sm:$0xff] %v2427
        %2460 = vst [vmem:[%s264 + $0x380] sm:$0xff] %v2428
        %2461 = vst [vmem:[%s264 + $0x388] sm:$0xff] %v2429
        %2462 = vst [vmem:[%s264 + $0x390] sm:$0xff] %v2430
        %2463 = vst [vmem:[%s264 + $0x398] sm:$0xff] %v2431
        %2464 = vst [vmem:[%s264 + $0x3a0] sm:$0xff] %v2432
        %2465 = vst [vmem:[%s264 + $0x3a8] sm:$0xff] %v2433
        %2466 = vst [vmem:[%s264 + $0x3b0] sm:$0xff] %v2434
        %2467 = vst [vmem:[%s264 + $0x3b8] sm:$0xff] %v2435
        %2468 = vst [vmem:[%s264 + $0x3c0] sm:$0xff] %v2436
        %2469 = vst [vmem:[%s264 + $0x3c8] sm:$0xff] %v2437
        %2470 = vst [vmem:[%s264 + $0x3d0] sm:$0xff] %v2438
        %2471 = vst [vmem:[%s264 + $0x3d8] sm:$0xff] %v2439
        %2472 = vst [vmem:[%s264 + $0x3e0] sm:$0xff] %v2440
        %2473 = vst [vmem:[%s264 + $0x3e8] sm:$0xff] %v2441
        %2474 = vst [vmem:[%s264 + $0x3f0] sm:$0xff] %v2442
        %2475 = vst [vmem:[%s264 + $0x3f8] sm:$0xff] %v2443
        %s2476 = sand.u32 %s171, 1
        %s2477 = scalar_lea.sflag [#allocation5], %s2476
        %s2478 = sand.u32 %s171, 1
        %s2479 = smul.addr %s2478, 1024
        %s2480 = scalar_lea.vmem [#allocation4], %s2479
        // Predicated region
        $region45: #{tpu_custom_call.1} parent=43 // pred_check
          %p2481 = pneg %p181
        $region46: #{tpu_custom_call.1} parent=43 // pred_check_branch
          %2483 = sbr.rel (%p2481) target = $region48
        $region47: #{tpu_custom_call.1} parent=43 // pred_region
          %s2485 = ssub.s32 16384, 16384
          %2486 = vsyncadd %s2477, %s2485
          %s2487 = smul.addr %s27, 128
          %s2488 = smul.addr %s2487, 128
          %s2489 = scalar_lea.hbm %s7, %s2488
          %s2490 = sshll.u32 %s2480, 4
          %s2491 = int_to_ptr.vmem [resolvable:$true] %s2490
          %2496 = dma.vmem_to_hbm [thread:$0]  %s2491, 16384, %s2489, %s2477, 256, 256, 16
        $region48: #{tpu_custom_call.1} parent=43 // pred_fallthru
          _
      $region44: #{tpu_custom_call.1} parent=5 // pred_fallthru
        _
      %p2497 = scmp.le.s32.totalorder 2, %s22
      // Predicated region
      $region49: #{tpu_custom_call.1} parent=5 // pred_check
        %p2498 = pneg %p2497
      $region50: #{tpu_custom_call.1} parent=5 // pred_check_branch
        %2500 = sbr.rel (%p2498) target = $region52
      $region51: #{tpu_custom_call.1} parent=5 // pred_region
        %s2501 = ssub.s32 %s22, 2
        // Predicated region
        $region53: #{tpu_custom_call.1} parent=51 // pred_check
          %p2502 = pneg %p187
        $region54: #{tpu_custom_call.1} parent=51 // pred_check_branch
          %2504 = sbr.rel (%p2502) target = $region56
        $region55: #{tpu_custom_call.1} parent=51 // pred_region
          %s2505 = sand.u32 %s172, 1
          %s2506 = scalar_lea.sflag [#allocation5], %s2505
          %s2507 = sand.u32 %s172, 1
          %s2508 = smul.addr %s2507, 1024
          %s2509 = scalar_lea.vmem [#allocation4], %s2508
          %2510 = dma.done %s2506, 16384
        $region56: #{tpu_custom_call.1} parent=51 // pred_fallthru
          _
      $region52: #{tpu_custom_call.1} parent=5 // pred_fallthru
        _
    $region6: #{tpu_custom_call.1} parent=1 // loop_footer
      %s26 = sadd.s32 1, %s22
    $region7: #{tpu_custom_call.1} parent=1 // loop_footer_branch
      %21 = sbr.rel target = $region3
    $region8: #{tpu_custom_call.1} parent=1 // loop_exit
      _
    %2511 = vsyncpa [#allocation5], 1
    %s2512 = scalar_lea.sflag [#allocation5], 1
    %2513 = vsyncpa %s2512, 1

</llo_original>
